<compile_context>
chip_gen: v6e
topology: v6e:2x2x1
jax: 0.10.0
libtpu: 0.0.40
codegen_flags: <defaults>
</compile_context>

<pallas_src>
import functools

import jax
import jax.numpy as jnp
from jax import lax
from jax.experimental import pallas as pl
from jax.experimental.pallas import tpu as pltpu

KH = KW = 5
PAD = 2
EPS = 1e-5


def _double_blaze_kernel(x_ref, mask_ref, dw_ref, w1_ref, b1_ref,
                         w5_ref, w2_ref, b2_ref, o_ref, patches_ref, *, width):
    """Everything is channel-major 2D: (channels, H*W) with H*W on the lanes."""
    f32 = jnp.float32
    cin = x_ref.shape[1]
    S = x_ref.shape[2]            # H * W (lane axis)
    cmid = w5_ref.shape[0]

    x = x_ref[0]                  # (Cin, S) f32
    masks = mask_ref[...]         # (25, S)  tap-validity masks (zero padding)
    dww = dw_ref[...]             # (Cin, 25) depthwise tap weights

    def shift_lanes(v, off):
        # y[:, q] = v[:, q + off] if 0 <= q + off < S else 0   (off is static)
        if off == 0:
            return v
        c = v.shape[0]
        if off > 0:
            pad = jnp.zeros((c, off), v.dtype)
            return jnp.concatenate([v[:, off:], pad], axis=1)
        pad = jnp.zeros((c, -off), v.dtype)
        return jnp.concatenate([pad, v[:, :S + off]], axis=1)

    # ---- depthwise 5x5 (VPU). Conv bias + BN1 are folded into the 1x1. ----
    acc = jnp.zeros((cin, S), f32)
    for kh in range(KH):
        for kw in range(KW):
            k = kh * KW + kw
            off = (kh - PAD) * width + (kw - PAD)
            mk = masks[k:k + 1, :]                       # (1, S)
            acc = acc + shift_lanes(x, off) * mk * dww[:, k:k + 1]

    # ---- fused 1x1 Cin->Cmid (conv bias + BN1 + BN2 folded) + ReLU (MXU) ----
    t2 = jnp.dot(w1_ref[...], acc, preferred_element_type=f32) + b1_ref[...]
    t2 = jnp.maximum(t2, 0.0)                            # (Cmid, S) f32

    # ---- 5x5 Cmid->Cmid: masked-shift im2col + ONE big-K MXU matmul ----
    # patches[(kh*5+kw)*Cmid + i, q] = t2[i, q + off] (0 outside the image).
    for kh in range(KH):
        for kw in range(KW):
            k = kh * KW + kw
            off = (kh - PAD) * width + (kw - PAD)
            patch = shift_lanes(t2, off) * masks[k:k + 1, :]
            patches_ref[k * cmid:(k + 1) * cmid, :] = patch.astype(jnp.bfloat16)
    t3 = jnp.dot(w5_ref[...], patches_ref[...],
                 preferred_element_type=f32)             # (Cmid, S) f32

    # ---- fused 1x1 Cmid->Cout (conv biases + BN3 + BN4 folded) (MXU) ----
    t4 = jnp.dot(w2_ref[...], t3, preferred_element_type=f32) + b2_ref[...]

    # ---- residual add (Cout == Cin) + final ReLU, lane-dense store ----
    o_ref[0] = jnp.maximum(t4 + x, 0.0)                  # (Cout, S)


def double_blaze_block_v1(x_nchw, params):
    """x_nchw: (N, Cin, H, W) float32. Returns (N, Cout, H, W) float32."""
    (dw_mat, w1eff, b1eff, w5mat, w2eff, b2eff) = params
    N, Cin, H, W = x_nchw.shape
    Cout, Cmid = w2eff.shape
    assert Cout == Cin, "residual in forward() requires out_channels == in_channels"
    S = H * W

    x_cm = x_nchw.reshape(N, Cin, S).astype(jnp.float32)

    # Tap-validity masks (per output position): mask[k, q] == 1 iff the 5x5 tap
    # (kh, kw) at pixel q = h*W + w reads inside the image (zero padding else).
    q = jnp.arange(S)
    hh = q // W
    ww = q % W
    rows = []
    for kh in range(KH):
        for kw in range(KW):
            valid = ((hh + kh - PAD >= 0) & (hh + kh - PAD < H) &
                     (ww + kw - PAD >= 0) & (ww + kw - PAD < W))
            rows.append(valid)
    mask = jnp.stack(rows).astype(jnp.float32)            # (25, S)

    def full(arr):
        nd = arr.ndim
        return pl.BlockSpec(arr.shape, lambda n: (0,) * nd)

    out = pl.pallas_call(
        functools.partial(_double_blaze_kernel, width=W),
        out_shape=jax.ShapeDtypeStruct((N, Cout, S), jnp.float32),
        grid_spec=pltpu.PrefetchScalarGridSpec(
            num_scalar_prefetch=0,
            grid=(N,),                                    # one image per step
            in_specs=[
                pl.BlockSpec((1, Cin, S), lambda n: (n, 0, 0)),
                full(mask),
                full(dw_mat),
                full(w1eff), full(b1eff),
                full(w5mat),
                full(w2eff), full(b2eff),
            ],
            out_specs=pl.BlockSpec((1, Cout, S), lambda n: (n, 0, 0)),
            scratch_shapes=[
                pltpu.VMEM((w5mat.shape[1], S), jnp.bfloat16),  # im2col patches
            ],
        ),
        compiler_params=pltpu.CompilerParams(
            dimension_semantics=("parallel",)),           # batch shards over TCs
    )(x_cm, mask, dw_mat, w1eff, b1eff, w5mat, w2eff, b2eff)

    return out.reshape(N, Cout, H, W)


# ----------------------- deterministic parameter setup -----------------------
def make_raw_params(key, cin, cmid, cout):
    keys = iter(jax.random.split(key, 32))
    f32 = jnp.float32

    def conv_w(shape, scale):
        return jax.random.normal(next(keys), shape, f32) * scale

    def conv_b(c):
        return jax.random.normal(next(keys), (c,), f32) * 0.05

    def bn(c):
        gamma = jax.random.uniform(next(keys), (c,), f32, 0.5, 1.5)
        beta = jax.random.normal(next(keys), (c,), f32) * 0.1
        mean = jax.random.normal(next(keys), (c,), f32) * 0.1
        var = jax.random.uniform(next(keys), (c,), f32, 0.5, 1.5)
        return gamma, beta, mean, var

    raw = dict(
        dw=conv_w((KH, KW, 1, cin), 0.1), dw_b=conv_b(cin), bn1=bn(cin),
        w1=conv_w((1, 1, cin, cmid), 0.3), w1_b=conv_b(cmid), bn2=bn(cmid),
        w5=conv_w((KH, KW, cmid, cmid), 0.05), w5_b=conv_b(cmid), bn3=bn(cmid),
        w2=conv_w((1, 1, cmid, cout), 0.3), w2_b=conv_b(cout), bn4=bn(cout),
    )
    return raw


def fold_params(raw):
    """Fold all conv biases + eval-mode BatchNorms into the two 1x1 convs."""
    f32 = jnp.float32
    cin = raw['dw'].shape[3]
    cmid = raw['w5'].shape[3]
    cout = raw['w2'].shape[3]

    def bn_sb(bn_p):
        gamma, beta, mean, var = bn_p
        return gamma / jnp.sqrt(var + EPS), beta, mean

    s1, be1, m1 = bn_sb(raw['bn1'])
    s2, be2, m2 = bn_sb(raw['bn2'])
    s3, be3, m3 = bn_sb(raw['bn3'])
    s4, be4, m4 = bn_sb(raw['bn4'])

    # depthwise taps: dw_mat[c, kh*5+kw] = dw[kh, kw, 0, c]
    dw_mat = raw['dw'].reshape(KH * KW, cin).T

    # fused first 1x1: relu(W1eff @ dwconv_raw(x) + b1eff)
    w1_oi = raw['w1'].reshape(cin, cmid).T                    # (Cmid, Cin)
    c1 = s1 * (raw['dw_b'] - m1) + be1                        # dw bias + BN1
    w1eff = (s2[:, None] * w1_oi) * s1[None, :]
    b1eff = s2 * (w1_oi @ c1 + raw['w1_b'] - m2) + be2

    # 5x5 conv weight as an im2col matrix:
    #   W5mat[o, (kh*5+kw)*Cmid + i] = w5[kh, kw, i, o]   (bf16 MXU operand)
    w5mat = jnp.transpose(raw['w5'], (3, 0, 1, 2)).reshape(cmid, KH * KW * cmid)
    w5mat = w5mat.astype(jnp.bfloat16)

    # fused second 1x1: W2eff @ conv5x5_raw(t2) + b2eff
    w2_oi = raw['w2'].reshape(cmid, cout).T                   # (Cout, Cmid)
    d3 = s3 * (raw['w5_b'] - m3) + be3                        # w5 bias + BN3
    w2eff = (s4[:, None] * w2_oi) * s3[None, :]
    b2eff = s4 * (w2_oi @ d3 + raw['w2_b'] - m4) + be4

    return (dw_mat.astype(f32), w1eff.astype(f32), b1eff[:, None].astype(f32),
            w5mat, w2eff.astype(f32), b2eff[:, None].astype(f32))


# -------------------------- pure-JAX reference (NHWC) ------------------------
def reference(x_nchw, raw):
    dn = ('NHWC', 'HWIO', 'NHWC')
    x = jnp.transpose(x_nchw, (0, 2, 3, 1)).astype(jnp.float32)

    def bn_apply(y, bn_p):
        gamma, beta, mean, var = bn_p
        return (y - mean) * (gamma / jnp.sqrt(var + EPS)) + beta

    cin = x.shape[-1]
    pads = ((PAD, PAD), (PAD, PAD))
    y = lax.conv_general_dilated(x, raw['dw'], (1, 1), pads,
                                 dimension_numbers=dn, feature_group_count=cin)
    y = bn_apply(y + raw['dw_b'], raw['bn1'])
    y = lax.conv_general_dilated(y, raw['w1'], (1, 1), 'VALID',
                                 dimension_numbers=dn)
    y = jnp.maximum(bn_apply(y + raw['w1_b'], raw['bn2']), 0.0)
    y = lax.conv_general_dilated(y, raw['w5'], (1, 1), pads,
                                 dimension_numbers=dn)
    y = bn_apply(y + raw['w5_b'], raw['bn3'])
    y = lax.conv_general_dilated(y, raw['w2'], (1, 1), 'VALID',
                                 dimension_numbers=dn)
    y = bn_apply(y + raw['w2_b'], raw['bn4'])
    y = jnp.maximum(y + x, 0.0)
    return jnp.transpose(y, (0, 3, 1, 2))


if __name__ == "__main__":
    key = jax.random.PRNGKey(0)
    kx, kp = jax.random.split(key)

    N, Cin, H, W = 2, 8, 16, 16
    Cmid, Cout = 16, Cin   # residual in forward() requires Cout == Cin, stride == 1

    x = jax.random.normal(kx, (N, Cin, H, W), jnp.float32)
    raw = make_raw_params(kp, Cin, Cmid, Cout)
    params = fold_params(raw)

    out = double_blaze_block_v1(x, params)
    out = jax.block_until_ready(out)

    ref = reference(x, raw)
    err = float(jnp.max(jnp.abs(out - ref)))
    # The 5x5 conv uses bf16 im2col/weight operands (f32 accumulation); at these
    # magnitudes the K=400 contraction bounds the deviation from the pure-f32
    # reference at ~1e-2 worst case (the all-f32 path passes at 1e-3).
    assert err < 3e-2, f"max abs err {err}"
    print("KERNEL_OK")
</pallas_src>

<mosaic_0001>
module attributes {stable_mosaic.version = 11 : i64} {
  func.func @_double_blaze_kernel(%arg0: i32, %arg1: memref<1x8x256xf32, #tpu.memory_space<vmem>>, %arg2: memref<25x256xf32, #tpu.memory_space<vmem>>, %arg3: memref<8x25xf32, #tpu.memory_space<vmem>>, %arg4: memref<16x8xf32, #tpu.memory_space<vmem>>, %arg5: memref<16x1xf32, #tpu.memory_space<vmem>>, %arg6: memref<16x400xbf16, #tpu.memory_space<vmem>>, %arg7: memref<8x16xf32, #tpu.memory_space<vmem>>, %arg8: memref<8x1xf32, #tpu.memory_space<vmem>>, %arg9: memref<1x8x256xf32, #tpu.memory_space<vmem>>, %arg10: memref<400x256xbf16, #tpu.memory_space<vmem>>) attributes {dimension_semantics = [#tpu.dimension_semantics<parallel>], iteration_bounds = array<i64: 2>, scalar_prefetch = 0 : i64, scratch_operands = 1 : i64, tpu.core_type = #tpu.core_type<tc>, window_params = [{transform_indices = @transform_0, window_bounds = array<i64: 1, 8, 256>}, {pipeline_mode = #tpu.pipeline_mode<synchronous>, transform_indices = @transform_1, window_bounds = array<i64: 25, 256>}, {pipeline_mode = #tpu.pipeline_mode<synchronous>, transform_indices = @transform_2, window_bounds = array<i64: 8, 25>}, {pipeline_mode = #tpu.pipeline_mode<synchronous>, transform_indices = @transform_3, window_bounds = array<i64: 16, 8>}, {pipeline_mode = #tpu.pipeline_mode<synchronous>, transform_indices = @transform_4, window_bounds = array<i64: 16, 1>}, {pipeline_mode = #tpu.pipeline_mode<synchronous>, transform_indices = @transform_5, window_bounds = array<i64: 16, 400>}, {pipeline_mode = #tpu.pipeline_mode<synchronous>, transform_indices = @transform_6, window_bounds = array<i64: 8, 16>}, {pipeline_mode = #tpu.pipeline_mode<synchronous>, transform_indices = @transform_7, window_bounds = array<i64: 8, 1>}, {transform_indices = @transform_8, window_bounds = array<i64: 1, 8, 256>}]} {
    %c0 = arith.constant 0 : index
    %c0_0 = arith.constant 0 : index
    %c0_1 = arith.constant 0 : index
    %0 = vector.load %arg1[%c0, %c0_0, %c0_1] : memref<1x8x256xf32, #tpu.memory_space<vmem>>, vector<1x8x256xf32>
    %1 = vector.shape_cast %0 : vector<1x8x256xf32> to vector<8x256xf32>
    %c0_2 = arith.constant 0 : index
    %c0_3 = arith.constant 0 : index
    %2 = vector.load %arg2[%c0_2, %c0_3] : memref<25x256xf32, #tpu.memory_space<vmem>>, vector<25x256xf32>
    %c0_4 = arith.constant 0 : index
    %c0_5 = arith.constant 0 : index
    %3 = vector.load %arg3[%c0_4, %c0_5] : memref<8x25xf32, #tpu.memory_space<vmem>>, vector<8x25xf32>
    %cst = arith.constant 0.000000e+00 : f32
    %4 = vector.broadcast %cst : f32 to vector<8x256xf32>
    %5 = vector.extract_strided_slice %2 {offsets = [0, 0], sizes = [1, 256], strides = [1, 1]} : vector<25x256xf32> to vector<1x256xf32>
    %cst_6 = arith.constant 0.000000e+00 : f32
    %6 = vector.broadcast %cst_6 : f32 to vector<8x34xf32>
    %7 = vector.extract_strided_slice %1 {offsets = [0, 0], sizes = [8, 222], strides = [1, 1]} : vector<8x256xf32> to vector<8x222xf32>
    %8 = tpu.concatenate %6, %7 in 1 : vector<8x34xf32>, vector<8x222xf32> -> vector<8x256xf32>
    %9 = vector.broadcast %5 : vector<1x256xf32> to vector<8x256xf32>
    %10 = arith.mulf %8, %9 : vector<8x256xf32>
    %11 = vector.extract_strided_slice %3 {offsets = [0, 0], sizes = [8, 1], strides = [1, 1]} : vector<8x25xf32> to vector<8x1xf32>
    %12 = vector.broadcast %11 : vector<8x1xf32> to vector<8x256xf32>
    %13 = arith.mulf %10, %12 : vector<8x256xf32>
    %14 = arith.addf %4, %13 : vector<8x256xf32>
    %15 = vector.extract_strided_slice %2 {offsets = [1, 0], sizes = [1, 256], strides = [1, 1]} : vector<25x256xf32> to vector<1x256xf32>
    %cst_7 = arith.constant 0.000000e+00 : f32
    %16 = vector.broadcast %cst_7 : f32 to vector<8x33xf32>
    %17 = vector.extract_strided_slice %1 {offsets = [0, 0], sizes = [8, 223], strides = [1, 1]} : vector<8x256xf32> to vector<8x223xf32>
    %18 = tpu.concatenate %16, %17 in 1 : vector<8x33xf32>, vector<8x223xf32> -> vector<8x256xf32>
    %19 = vector.broadcast %15 : vector<1x256xf32> to vector<8x256xf32>
    %20 = arith.mulf %18, %19 : vector<8x256xf32>
    %21 = vector.extract_strided_slice %3 {offsets = [0, 1], sizes = [8, 1], strides = [1, 1]} : vector<8x25xf32> to vector<8x1xf32>
    %22 = vector.broadcast %21 : vector<8x1xf32> to vector<8x256xf32>
    %23 = arith.mulf %20, %22 : vector<8x256xf32>
    %24 = arith.addf %14, %23 : vector<8x256xf32>
    %25 = vector.extract_strided_slice %2 {offsets = [2, 0], sizes = [1, 256], strides = [1, 1]} : vector<25x256xf32> to vector<1x256xf32>
    %cst_8 = arith.constant 0.000000e+00 : f32
    %26 = vector.broadcast %cst_8 : f32 to vector<8x32xf32>
    %27 = vector.extract_strided_slice %1 {offsets = [0, 0], sizes = [8, 224], strides = [1, 1]} : vector<8x256xf32> to vector<8x224xf32>
    %28 = tpu.concatenate %26, %27 in 1 : vector<8x32xf32>, vector<8x224xf32> -> vector<8x256xf32>
    %29 = vector.broadcast %25 : vector<1x256xf32> to vector<8x256xf32>
    %30 = arith.mulf %28, %29 : vector<8x256xf32>
    %31 = vector.extract_strided_slice %3 {offsets = [0, 2], sizes = [8, 1], strides = [1, 1]} : vector<8x25xf32> to vector<8x1xf32>
    %32 = vector.broadcast %31 : vector<8x1xf32> to vector<8x256xf32>
    %33 = arith.mulf %30, %32 : vector<8x256xf32>
    %34 = arith.addf %24, %33 : vector<8x256xf32>
    %35 = vector.extract_strided_slice %2 {offsets = [3, 0], sizes = [1, 256], strides = [1, 1]} : vector<25x256xf32> to vector<1x256xf32>
    %cst_9 = arith.constant 0.000000e+00 : f32
    %36 = vector.broadcast %cst_9 : f32 to vector<8x31xf32>
    %37 = vector.extract_strided_slice %1 {offsets = [0, 0], sizes = [8, 225], strides = [1, 1]} : vector<8x256xf32> to vector<8x225xf32>
    %38 = tpu.concatenate %36, %37 in 1 : vector<8x31xf32>, vector<8x225xf32> -> vector<8x256xf32>
    %39 = vector.broadcast %35 : vector<1x256xf32> to vector<8x256xf32>
    %40 = arith.mulf %38, %39 : vector<8x256xf32>
    %41 = vector.extract_strided_slice %3 {offsets = [0, 3], sizes = [8, 1], strides = [1, 1]} : vector<8x25xf32> to vector<8x1xf32>
    %42 = vector.broadcast %41 : vector<8x1xf32> to vector<8x256xf32>
    %43 = arith.mulf %40, %42 : vector<8x256xf32>
    %44 = arith.addf %34, %43 : vector<8x256xf32>
    %45 = vector.extract_strided_slice %2 {offsets = [4, 0], sizes = [1, 256], strides = [1, 1]} : vector<25x256xf32> to vector<1x256xf32>
    %cst_10 = arith.constant 0.000000e+00 : f32
    %46 = vector.broadcast %cst_10 : f32 to vector<8x30xf32>
    %47 = vector.extract_strided_slice %1 {offsets = [0, 0], sizes = [8, 226], strides = [1, 1]} : vector<8x256xf32> to vector<8x226xf32>
    %48 = tpu.concatenate %46, %47 in 1 : vector<8x30xf32>, vector<8x226xf32> -> vector<8x256xf32>
    %49 = vector.broadcast %45 : vector<1x256xf32> to vector<8x256xf32>
    %50 = arith.mulf %48, %49 : vector<8x256xf32>
    %51 = vector.extract_strided_slice %3 {offsets = [0, 4], sizes = [8, 1], strides = [1, 1]} : vector<8x25xf32> to vector<8x1xf32>
    %52 = vector.broadcast %51 : vector<8x1xf32> to vector<8x256xf32>
    %53 = arith.mulf %50, %52 : vector<8x256xf32>
    %54 = arith.addf %44, %53 : vector<8x256xf32>
    %55 = vector.extract_strided_slice %2 {offsets = [5, 0], sizes = [1, 256], strides = [1, 1]} : vector<25x256xf32> to vector<1x256xf32>
    %cst_11 = arith.constant 0.000000e+00 : f32
    %56 = vector.broadcast %cst_11 : f32 to vector<8x18xf32>
    %57 = vector.extract_strided_slice %1 {offsets = [0, 0], sizes = [8, 238], strides = [1, 1]} : vector<8x256xf32> to vector<8x238xf32>
    %58 = tpu.concatenate %56, %57 in 1 : vector<8x18xf32>, vector<8x238xf32> -> vector<8x256xf32>
    %59 = vector.broadcast %55 : vector<1x256xf32> to vector<8x256xf32>
    %60 = arith.mulf %58, %59 : vector<8x256xf32>
    %61 = vector.extract_strided_slice %3 {offsets = [0, 5], sizes = [8, 1], strides = [1, 1]} : vector<8x25xf32> to vector<8x1xf32>
    %62 = vector.broadcast %61 : vector<8x1xf32> to vector<8x256xf32>
    %63 = arith.mulf %60, %62 : vector<8x256xf32>
    %64 = arith.addf %54, %63 : vector<8x256xf32>
    %65 = vector.extract_strided_slice %2 {offsets = [6, 0], sizes = [1, 256], strides = [1, 1]} : vector<25x256xf32> to vector<1x256xf32>
    %cst_12 = arith.constant 0.000000e+00 : f32
    %66 = vector.broadcast %cst_12 : f32 to vector<8x17xf32>
    %67 = vector.extract_strided_slice %1 {offsets = [0, 0], sizes = [8, 239], strides = [1, 1]} : vector<8x256xf32> to vector<8x239xf32>
    %68 = tpu.concatenate %66, %67 in 1 : vector<8x17xf32>, vector<8x239xf32> -> vector<8x256xf32>
    %69 = vector.broadcast %65 : vector<1x256xf32> to vector<8x256xf32>
    %70 = arith.mulf %68, %69 : vector<8x256xf32>
    %71 = vector.extract_strided_slice %3 {offsets = [0, 6], sizes = [8, 1], strides = [1, 1]} : vector<8x25xf32> to vector<8x1xf32>
    %72 = vector.broadcast %71 : vector<8x1xf32> to vector<8x256xf32>
    %73 = arith.mulf %70, %72 : vector<8x256xf32>
    %74 = arith.addf %64, %73 : vector<8x256xf32>
    %75 = vector.extract_strided_slice %2 {offsets = [7, 0], sizes = [1, 256], strides = [1, 1]} : vector<25x256xf32> to vector<1x256xf32>
    %cst_13 = arith.constant 0.000000e+00 : f32
    %76 = vector.broadcast %cst_13 : f32 to vector<8x16xf32>
    %77 = vector.extract_strided_slice %1 {offsets = [0, 0], sizes = [8, 240], strides = [1, 1]} : vector<8x256xf32> to vector<8x240xf32>
    %78 = tpu.concatenate %76, %77 in 1 : vector<8x16xf32>, vector<8x240xf32> -> vector<8x256xf32>
    %79 = vector.broadcast %75 : vector<1x256xf32> to vector<8x256xf32>
    %80 = arith.mulf %78, %79 : vector<8x256xf32>
    %81 = vector.extract_strided_slice %3 {offsets = [0, 7], sizes = [8, 1], strides = [1, 1]} : vector<8x25xf32> to vector<8x1xf32>
    %82 = vector.broadcast %81 : vector<8x1xf32> to vector<8x256xf32>
    %83 = arith.mulf %80, %82 : vector<8x256xf32>
    %84 = arith.addf %74, %83 : vector<8x256xf32>
    %85 = vector.extract_strided_slice %2 {offsets = [8, 0], sizes = [1, 256], strides = [1, 1]} : vector<25x256xf32> to vector<1x256xf32>
    %cst_14 = arith.constant 0.000000e+00 : f32
    %86 = vector.broadcast %cst_14 : f32 to vector<8x15xf32>
    %87 = vector.extract_strided_slice %1 {offsets = [0, 0], sizes = [8, 241], strides = [1, 1]} : vector<8x256xf32> to vector<8x241xf32>
    %88 = tpu.concatenate %86, %87 in 1 : vector<8x15xf32>, vector<8x241xf32> -> vector<8x256xf32>
    %89 = vector.broadcast %85 : vector<1x256xf32> to vector<8x256xf32>
    %90 = arith.mulf %88, %89 : vector<8x256xf32>
    %91 = vector.extract_strided_slice %3 {offsets = [0, 8], sizes = [8, 1], strides = [1, 1]} : vector<8x25xf32> to vector<8x1xf32>
    %92 = vector.broadcast %91 : vector<8x1xf32> to vector<8x256xf32>
    %93 = arith.mulf %90, %92 : vector<8x256xf32>
    %94 = arith.addf %84, %93 : vector<8x256xf32>
    %95 = vector.extract_strided_slice %2 {offsets = [9, 0], sizes = [1, 256], strides = [1, 1]} : vector<25x256xf32> to vector<1x256xf32>
    %cst_15 = arith.constant 0.000000e+00 : f32
    %96 = vector.broadcast %cst_15 : f32 to vector<8x14xf32>
    %97 = vector.extract_strided_slice %1 {offsets = [0, 0], sizes = [8, 242], strides = [1, 1]} : vector<8x256xf32> to vector<8x242xf32>
    %98 = tpu.concatenate %96, %97 in 1 : vector<8x14xf32>, vector<8x242xf32> -> vector<8x256xf32>
    %99 = vector.broadcast %95 : vector<1x256xf32> to vector<8x256xf32>
    %100 = arith.mulf %98, %99 : vector<8x256xf32>
    %101 = vector.extract_strided_slice %3 {offsets = [0, 9], sizes = [8, 1], strides = [1, 1]} : vector<8x25xf32> to vector<8x1xf32>
    %102 = vector.broadcast %101 : vector<8x1xf32> to vector<8x256xf32>
    %103 = arith.mulf %100, %102 : vector<8x256xf32>
    %104 = arith.addf %94, %103 : vector<8x256xf32>
    %105 = vector.extract_strided_slice %2 {offsets = [10, 0], sizes = [1, 256], strides = [1, 1]} : vector<25x256xf32> to vector<1x256xf32>
    %cst_16 = arith.constant 0.000000e+00 : f32
    %106 = vector.broadcast %cst_16 : f32 to vector<8x2xf32>
    %107 = vector.extract_strided_slice %1 {offsets = [0, 0], sizes = [8, 254], strides = [1, 1]} : vector<8x256xf32> to vector<8x254xf32>
    %108 = tpu.concatenate %106, %107 in 1 : vector<8x2xf32>, vector<8x254xf32> -> vector<8x256xf32>
    %109 = vector.broadcast %105 : vector<1x256xf32> to vector<8x256xf32>
    %110 = arith.mulf %108, %109 : vector<8x256xf32>
    %111 = vector.extract_strided_slice %3 {offsets = [0, 10], sizes = [8, 1], strides = [1, 1]} : vector<8x25xf32> to vector<8x1xf32>
    %112 = vector.broadcast %111 : vector<8x1xf32> to vector<8x256xf32>
    %113 = arith.mulf %110, %112 : vector<8x256xf32>
    %114 = arith.addf %104, %113 : vector<8x256xf32>
    %115 = vector.extract_strided_slice %2 {offsets = [11, 0], sizes = [1, 256], strides = [1, 1]} : vector<25x256xf32> to vector<1x256xf32>
    %cst_17 = arith.constant 0.000000e+00 : f32
    %116 = vector.broadcast %cst_17 : f32 to vector<8x1xf32>
    %117 = vector.extract_strided_slice %1 {offsets = [0, 0], sizes = [8, 255], strides = [1, 1]} : vector<8x256xf32> to vector<8x255xf32>
    %118 = tpu.concatenate %116, %117 in 1 : vector<8x1xf32>, vector<8x255xf32> -> vector<8x256xf32>
    %119 = vector.broadcast %115 : vector<1x256xf32> to vector<8x256xf32>
    %120 = arith.mulf %118, %119 : vector<8x256xf32>
    %121 = vector.extract_strided_slice %3 {offsets = [0, 11], sizes = [8, 1], strides = [1, 1]} : vector<8x25xf32> to vector<8x1xf32>
    %122 = vector.broadcast %121 : vector<8x1xf32> to vector<8x256xf32>
    %123 = arith.mulf %120, %122 : vector<8x256xf32>
    %124 = arith.addf %114, %123 : vector<8x256xf32>
    %125 = vector.extract_strided_slice %2 {offsets = [12, 0], sizes = [1, 256], strides = [1, 1]} : vector<25x256xf32> to vector<1x256xf32>
    %126 = vector.broadcast %125 : vector<1x256xf32> to vector<8x256xf32>
    %127 = arith.mulf %1, %126 : vector<8x256xf32>
    %128 = vector.extract_strided_slice %3 {offsets = [0, 12], sizes = [8, 1], strides = [1, 1]} : vector<8x25xf32> to vector<8x1xf32>
    %129 = vector.broadcast %128 : vector<8x1xf32> to vector<8x256xf32>
    %130 = arith.mulf %127, %129 : vector<8x256xf32>
    %131 = arith.addf %124, %130 : vector<8x256xf32>
    %132 = vector.extract_strided_slice %2 {offsets = [13, 0], sizes = [1, 256], strides = [1, 1]} : vector<25x256xf32> to vector<1x256xf32>
    %cst_18 = arith.constant 0.000000e+00 : f32
    %133 = vector.broadcast %cst_18 : f32 to vector<8x1xf32>
    %134 = vector.extract_strided_slice %1 {offsets = [0, 1], sizes = [8, 255], strides = [1, 1]} : vector<8x256xf32> to vector<8x255xf32>
    %135 = tpu.concatenate %134, %133 in 1 : vector<8x255xf32>, vector<8x1xf32> -> vector<8x256xf32>
    %136 = vector.broadcast %132 : vector<1x256xf32> to vector<8x256xf32>
    %137 = arith.mulf %135, %136 : vector<8x256xf32>
    %138 = vector.extract_strided_slice %3 {offsets = [0, 13], sizes = [8, 1], strides = [1, 1]} : vector<8x25xf32> to vector<8x1xf32>
    %139 = vector.broadcast %138 : vector<8x1xf32> to vector<8x256xf32>
    %140 = arith.mulf %137, %139 : vector<8x256xf32>
    %141 = arith.addf %131, %140 : vector<8x256xf32>
    %142 = vector.extract_strided_slice %2 {offsets = [14, 0], sizes = [1, 256], strides = [1, 1]} : vector<25x256xf32> to vector<1x256xf32>
    %cst_19 = arith.constant 0.000000e+00 : f32
    %143 = vector.broadcast %cst_19 : f32 to vector<8x2xf32>
    %144 = vector.extract_strided_slice %1 {offsets = [0, 2], sizes = [8, 254], strides = [1, 1]} : vector<8x256xf32> to vector<8x254xf32>
    %145 = tpu.concatenate %144, %143 in 1 : vector<8x254xf32>, vector<8x2xf32> -> vector<8x256xf32>
    %146 = vector.broadcast %142 : vector<1x256xf32> to vector<8x256xf32>
    %147 = arith.mulf %145, %146 : vector<8x256xf32>
    %148 = vector.extract_strided_slice %3 {offsets = [0, 14], sizes = [8, 1], strides = [1, 1]} : vector<8x25xf32> to vector<8x1xf32>
    %149 = vector.broadcast %148 : vector<8x1xf32> to vector<8x256xf32>
    %150 = arith.mulf %147, %149 : vector<8x256xf32>
    %151 = arith.addf %141, %150 : vector<8x256xf32>
    %152 = vector.extract_strided_slice %2 {offsets = [15, 0], sizes = [1, 256], strides = [1, 1]} : vector<25x256xf32> to vector<1x256xf32>
    %cst_20 = arith.constant 0.000000e+00 : f32
    %153 = vector.broadcast %cst_20 : f32 to vector<8x14xf32>
    %154 = vector.extract_strided_slice %1 {offsets = [0, 14], sizes = [8, 242], strides = [1, 1]} : vector<8x256xf32> to vector<8x242xf32>
    %155 = tpu.concatenate %154, %153 in 1 : vector<8x242xf32>, vector<8x14xf32> -> vector<8x256xf32>
    %156 = vector.broadcast %152 : vector<1x256xf32> to vector<8x256xf32>
    %157 = arith.mulf %155, %156 : vector<8x256xf32>
    %158 = vector.extract_strided_slice %3 {offsets = [0, 15], sizes = [8, 1], strides = [1, 1]} : vector<8x25xf32> to vector<8x1xf32>
    %159 = vector.broadcast %158 : vector<8x1xf32> to vector<8x256xf32>
    %160 = arith.mulf %157, %159 : vector<8x256xf32>
    %161 = arith.addf %151, %160 : vector<8x256xf32>
    %162 = vector.extract_strided_slice %2 {offsets = [16, 0], sizes = [1, 256], strides = [1, 1]} : vector<25x256xf32> to vector<1x256xf32>
    %cst_21 = arith.constant 0.000000e+00 : f32
    %163 = vector.broadcast %cst_21 : f32 to vector<8x15xf32>
    %164 = vector.extract_strided_slice %1 {offsets = [0, 15], sizes = [8, 241], strides = [1, 1]} : vector<8x256xf32> to vector<8x241xf32>
    %165 = tpu.concatenate %164, %163 in 1 : vector<8x241xf32>, vector<8x15xf32> -> vector<8x256xf32>
    %166 = vector.broadcast %162 : vector<1x256xf32> to vector<8x256xf32>
    %167 = arith.mulf %165, %166 : vector<8x256xf32>
    %168 = vector.extract_strided_slice %3 {offsets = [0, 16], sizes = [8, 1], strides = [1, 1]} : vector<8x25xf32> to vector<8x1xf32>
    %169 = vector.broadcast %168 : vector<8x1xf32> to vector<8x256xf32>
    %170 = arith.mulf %167, %169 : vector<8x256xf32>
    %171 = arith.addf %161, %170 : vector<8x256xf32>
    %172 = vector.extract_strided_slice %2 {offsets = [17, 0], sizes = [1, 256], strides = [1, 1]} : vector<25x256xf32> to vector<1x256xf32>
    %cst_22 = arith.constant 0.000000e+00 : f32
    %173 = vector.broadcast %cst_22 : f32 to vector<8x16xf32>
    %174 = vector.extract_strided_slice %1 {offsets = [0, 16], sizes = [8, 240], strides = [1, 1]} : vector<8x256xf32> to vector<8x240xf32>
    %175 = tpu.concatenate %174, %173 in 1 : vector<8x240xf32>, vector<8x16xf32> -> vector<8x256xf32>
    %176 = vector.broadcast %172 : vector<1x256xf32> to vector<8x256xf32>
    %177 = arith.mulf %175, %176 : vector<8x256xf32>
    %178 = vector.extract_strided_slice %3 {offsets = [0, 17], sizes = [8, 1], strides = [1, 1]} : vector<8x25xf32> to vector<8x1xf32>
    %179 = vector.broadcast %178 : vector<8x1xf32> to vector<8x256xf32>
    %180 = arith.mulf %177, %179 : vector<8x256xf32>
    %181 = arith.addf %171, %180 : vector<8x256xf32>
    %182 = vector.extract_strided_slice %2 {offsets = [18, 0], sizes = [1, 256], strides = [1, 1]} : vector<25x256xf32> to vector<1x256xf32>
    %cst_23 = arith.constant 0.000000e+00 : f32
    %183 = vector.broadcast %cst_23 : f32 to vector<8x17xf32>
    %184 = vector.extract_strided_slice %1 {offsets = [0, 17], sizes = [8, 239], strides = [1, 1]} : vector<8x256xf32> to vector<8x239xf32>
    %185 = tpu.concatenate %184, %183 in 1 : vector<8x239xf32>, vector<8x17xf32> -> vector<8x256xf32>
    %186 = vector.broadcast %182 : vector<1x256xf32> to vector<8x256xf32>
    %187 = arith.mulf %185, %186 : vector<8x256xf32>
    %188 = vector.extract_strided_slice %3 {offsets = [0, 18], sizes = [8, 1], strides = [1, 1]} : vector<8x25xf32> to vector<8x1xf32>
    %189 = vector.broadcast %188 : vector<8x1xf32> to vector<8x256xf32>
    %190 = arith.mulf %187, %189 : vector<8x256xf32>
    %191 = arith.addf %181, %190 : vector<8x256xf32>
    %192 = vector.extract_strided_slice %2 {offsets = [19, 0], sizes = [1, 256], strides = [1, 1]} : vector<25x256xf32> to vector<1x256xf32>
    %cst_24 = arith.constant 0.000000e+00 : f32
    %193 = vector.broadcast %cst_24 : f32 to vector<8x18xf32>
    %194 = vector.extract_strided_slice %1 {offsets = [0, 18], sizes = [8, 238], strides = [1, 1]} : vector<8x256xf32> to vector<8x238xf32>
    %195 = tpu.concatenate %194, %193 in 1 : vector<8x238xf32>, vector<8x18xf32> -> vector<8x256xf32>
    %196 = vector.broadcast %192 : vector<1x256xf32> to vector<8x256xf32>
    %197 = arith.mulf %195, %196 : vector<8x256xf32>
    %198 = vector.extract_strided_slice %3 {offsets = [0, 19], sizes = [8, 1], strides = [1, 1]} : vector<8x25xf32> to vector<8x1xf32>
    %199 = vector.broadcast %198 : vector<8x1xf32> to vector<8x256xf32>
    %200 = arith.mulf %197, %199 : vector<8x256xf32>
    %201 = arith.addf %191, %200 : vector<8x256xf32>
    %202 = vector.extract_strided_slice %2 {offsets = [20, 0], sizes = [1, 256], strides = [1, 1]} : vector<25x256xf32> to vector<1x256xf32>
    %cst_25 = arith.constant 0.000000e+00 : f32
    %203 = vector.broadcast %cst_25 : f32 to vector<8x30xf32>
    %204 = vector.extract_strided_slice %1 {offsets = [0, 30], sizes = [8, 226], strides = [1, 1]} : vector<8x256xf32> to vector<8x226xf32>
    %205 = tpu.concatenate %204, %203 in 1 : vector<8x226xf32>, vector<8x30xf32> -> vector<8x256xf32>
    %206 = vector.broadcast %202 : vector<1x256xf32> to vector<8x256xf32>
    %207 = arith.mulf %205, %206 : vector<8x256xf32>
    %208 = vector.extract_strided_slice %3 {offsets = [0, 20], sizes = [8, 1], strides = [1, 1]} : vector<8x25xf32> to vector<8x1xf32>
    %209 = vector.broadcast %208 : vector<8x1xf32> to vector<8x256xf32>
    %210 = arith.mulf %207, %209 : vector<8x256xf32>
    %211 = arith.addf %201, %210 : vector<8x256xf32>
    %212 = vector.extract_strided_slice %2 {offsets = [21, 0], sizes = [1, 256], strides = [1, 1]} : vector<25x256xf32> to vector<1x256xf32>
    %cst_26 = arith.constant 0.000000e+00 : f32
    %213 = vector.broadcast %cst_26 : f32 to vector<8x31xf32>
    %214 = vector.extract_strided_slice %1 {offsets = [0, 31], sizes = [8, 225], strides = [1, 1]} : vector<8x256xf32> to vector<8x225xf32>
    %215 = tpu.concatenate %214, %213 in 1 : vector<8x225xf32>, vector<8x31xf32> -> vector<8x256xf32>
    %216 = vector.broadcast %212 : vector<1x256xf32> to vector<8x256xf32>
    %217 = arith.mulf %215, %216 : vector<8x256xf32>
    %218 = vector.extract_strided_slice %3 {offsets = [0, 21], sizes = [8, 1], strides = [1, 1]} : vector<8x25xf32> to vector<8x1xf32>
    %219 = vector.broadcast %218 : vector<8x1xf32> to vector<8x256xf32>
    %220 = arith.mulf %217, %219 : vector<8x256xf32>
    %221 = arith.addf %211, %220 : vector<8x256xf32>
    %222 = vector.extract_strided_slice %2 {offsets = [22, 0], sizes = [1, 256], strides = [1, 1]} : vector<25x256xf32> to vector<1x256xf32>
    %cst_27 = arith.constant 0.000000e+00 : f32
    %223 = vector.broadcast %cst_27 : f32 to vector<8x32xf32>
    %224 = vector.extract_strided_slice %1 {offsets = [0, 32], sizes = [8, 224], strides = [1, 1]} : vector<8x256xf32> to vector<8x224xf32>
    %225 = tpu.concatenate %224, %223 in 1 : vector<8x224xf32>, vector<8x32xf32> -> vector<8x256xf32>
    %226 = vector.broadcast %222 : vector<1x256xf32> to vector<8x256xf32>
    %227 = arith.mulf %225, %226 : vector<8x256xf32>
    %228 = vector.extract_strided_slice %3 {offsets = [0, 22], sizes = [8, 1], strides = [1, 1]} : vector<8x25xf32> to vector<8x1xf32>
    %229 = vector.broadcast %228 : vector<8x1xf32> to vector<8x256xf32>
    %230 = arith.mulf %227, %229 : vector<8x256xf32>
    %231 = arith.addf %221, %230 : vector<8x256xf32>
    %232 = vector.extract_strided_slice %2 {offsets = [23, 0], sizes = [1, 256], strides = [1, 1]} : vector<25x256xf32> to vector<1x256xf32>
    %cst_28 = arith.constant 0.000000e+00 : f32
    %233 = vector.broadcast %cst_28 : f32 to vector<8x33xf32>
    %234 = vector.extract_strided_slice %1 {offsets = [0, 33], sizes = [8, 223], strides = [1, 1]} : vector<8x256xf32> to vector<8x223xf32>
    %235 = tpu.concatenate %234, %233 in 1 : vector<8x223xf32>, vector<8x33xf32> -> vector<8x256xf32>
    %236 = vector.broadcast %232 : vector<1x256xf32> to vector<8x256xf32>
    %237 = arith.mulf %235, %236 : vector<8x256xf32>
    %238 = vector.extract_strided_slice %3 {offsets = [0, 23], sizes = [8, 1], strides = [1, 1]} : vector<8x25xf32> to vector<8x1xf32>
    %239 = vector.broadcast %238 : vector<8x1xf32> to vector<8x256xf32>
    %240 = arith.mulf %237, %239 : vector<8x256xf32>
    %241 = arith.addf %231, %240 : vector<8x256xf32>
    %242 = vector.extract_strided_slice %2 {offsets = [24, 0], sizes = [1, 256], strides = [1, 1]} : vector<25x256xf32> to vector<1x256xf32>
    %cst_29 = arith.constant 0.000000e+00 : f32
    %243 = vector.broadcast %cst_29 : f32 to vector<8x34xf32>
    %244 = vector.extract_strided_slice %1 {offsets = [0, 34], sizes = [8, 222], strides = [1, 1]} : vector<8x256xf32> to vector<8x222xf32>
    %245 = tpu.concatenate %244, %243 in 1 : vector<8x222xf32>, vector<8x34xf32> -> vector<8x256xf32>
    %246 = vector.broadcast %242 : vector<1x256xf32> to vector<8x256xf32>
    %247 = arith.mulf %245, %246 : vector<8x256xf32>
    %248 = vector.extract_strided_slice %3 {offsets = [0, 24], sizes = [8, 1], strides = [1, 1]} : vector<8x25xf32> to vector<8x1xf32>
    %249 = vector.broadcast %248 : vector<8x1xf32> to vector<8x256xf32>
    %250 = arith.mulf %247, %249 : vector<8x256xf32>
    %251 = arith.addf %241, %250 : vector<8x256xf32>
    %c0_30 = arith.constant 0 : index
    %c0_31 = arith.constant 0 : index
    %252 = vector.load %arg4[%c0_30, %c0_31] : memref<16x8xf32, #tpu.memory_space<vmem>>, vector<16x8xf32>
    %cst_32 = arith.constant dense<0.000000e+00> : vector<16x256xf32>
    %253 = tpu.matmul %252, %251, %cst_32 {dimension_numbers = #tpu.dot_dimension_numbers<[1], [0], [0], [1], [0, 0, 1, 1], [], []>} : vector<16x8xf32>, vector<8x256xf32>, vector<16x256xf32> -> vector<16x256xf32>
    %c0_33 = arith.constant 0 : index
    %c0_34 = arith.constant 0 : index
    %254 = vector.load %arg5[%c0_33, %c0_34] : memref<16x1xf32, #tpu.memory_space<vmem>>, vector<16x1xf32>
    %255 = vector.broadcast %254 : vector<16x1xf32> to vector<16x256xf32>
    %256 = arith.addf %253, %255 : vector<16x256xf32>
    %cst_35 = arith.constant 0.000000e+00 : f32
    %257 = vector.broadcast %cst_35 : f32 to vector<16x256xf32>
    %258 = arith.maximumf %256, %257 : vector<16x256xf32>
    %cst_36 = arith.constant 0.000000e+00 : f32
    %259 = vector.broadcast %cst_36 : f32 to vector<16x34xf32>
    %260 = vector.extract_strided_slice %258 {offsets = [0, 0], sizes = [16, 222], strides = [1, 1]} : vector<16x256xf32> to vector<16x222xf32>
    %261 = tpu.concatenate %259, %260 in 1 : vector<16x34xf32>, vector<16x222xf32> -> vector<16x256xf32>
    %262 = vector.extract_strided_slice %2 {offsets = [0, 0], sizes = [1, 256], strides = [1, 1]} : vector<25x256xf32> to vector<1x256xf32>
    %263 = vector.broadcast %262 : vector<1x256xf32> to vector<16x256xf32>
    %264 = arith.mulf %261, %263 : vector<16x256xf32>
    %265 = arith.truncf %264 : vector<16x256xf32> to vector<16x256xbf16>
    %c0_37 = arith.constant 0 : index
    %c0_38 = arith.constant 0 : index
    %266 = vector.load %arg10[%c0_37, %c0_38] : memref<400x256xbf16, #tpu.memory_space<vmem>>, vector<16x256xbf16>
    tpu.vector_store %arg10[%c0_37, %c0_38], %265 {strides = array<i32>} : memref<400x256xbf16, #tpu.memory_space<vmem>>, vector<16x256xbf16>,
    %cst_39 = arith.constant 0.000000e+00 : f32
    %267 = vector.broadcast %cst_39 : f32 to vector<16x33xf32>
    %268 = vector.extract_strided_slice %258 {offsets = [0, 0], sizes = [16, 223], strides = [1, 1]} : vector<16x256xf32> to vector<16x223xf32>
    %269 = tpu.concatenate %267, %268 in 1 : vector<16x33xf32>, vector<16x223xf32> -> vector<16x256xf32>
    %270 = vector.extract_strided_slice %2 {offsets = [1, 0], sizes = [1, 256], strides = [1, 1]} : vector<25x256xf32> to vector<1x256xf32>
    %271 = vector.broadcast %270 : vector<1x256xf32> to vector<16x256xf32>
    %272 = arith.mulf %269, %271 : vector<16x256xf32>
    %273 = arith.truncf %272 : vector<16x256xf32> to vector<16x256xbf16>
    %c16 = arith.constant 16 : index
    %c0_40 = arith.constant 0 : index
    %274 = vector.load %arg10[%c16, %c0_40] : memref<400x256xbf16, #tpu.memory_space<vmem>>, vector<16x256xbf16>
    tpu.vector_store %arg10[%c16, %c0_40], %273 {strides = array<i32>} : memref<400x256xbf16, #tpu.memory_space<vmem>>, vector<16x256xbf16>,
    %cst_41 = arith.constant 0.000000e+00 : f32
    %275 = vector.broadcast %cst_41 : f32 to vector<16x32xf32>
    %276 = vector.extract_strided_slice %258 {offsets = [0, 0], sizes = [16, 224], strides = [1, 1]} : vector<16x256xf32> to vector<16x224xf32>
    %277 = tpu.concatenate %275, %276 in 1 : vector<16x32xf32>, vector<16x224xf32> -> vector<16x256xf32>
    %278 = vector.extract_strided_slice %2 {offsets = [2, 0], sizes = [1, 256], strides = [1, 1]} : vector<25x256xf32> to vector<1x256xf32>
    %279 = vector.broadcast %278 : vector<1x256xf32> to vector<16x256xf32>
    %280 = arith.mulf %277, %279 : vector<16x256xf32>
    %281 = arith.truncf %280 : vector<16x256xf32> to vector<16x256xbf16>
    %c32 = arith.constant 32 : index
    %c0_42 = arith.constant 0 : index
    %282 = vector.load %arg10[%c32, %c0_42] : memref<400x256xbf16, #tpu.memory_space<vmem>>, vector<16x256xbf16>
    tpu.vector_store %arg10[%c32, %c0_42], %281 {strides = array<i32>} : memref<400x256xbf16, #tpu.memory_space<vmem>>, vector<16x256xbf16>,
    %cst_43 = arith.constant 0.000000e+00 : f32
    %283 = vector.broadcast %cst_43 : f32 to vector<16x31xf32>
    %284 = vector.extract_strided_slice %258 {offsets = [0, 0], sizes = [16, 225], strides = [1, 1]} : vector<16x256xf32> to vector<16x225xf32>
    %285 = tpu.concatenate %283, %284 in 1 : vector<16x31xf32>, vector<16x225xf32> -> vector<16x256xf32>
    %286 = vector.extract_strided_slice %2 {offsets = [3, 0], sizes = [1, 256], strides = [1, 1]} : vector<25x256xf32> to vector<1x256xf32>
    %287 = vector.broadcast %286 : vector<1x256xf32> to vector<16x256xf32>
    %288 = arith.mulf %285, %287 : vector<16x256xf32>
    %289 = arith.truncf %288 : vector<16x256xf32> to vector<16x256xbf16>
    %c48 = arith.constant 48 : index
    %c0_44 = arith.constant 0 : index
    %290 = vector.load %arg10[%c48, %c0_44] : memref<400x256xbf16, #tpu.memory_space<vmem>>, vector<16x256xbf16>
    tpu.vector_store %arg10[%c48, %c0_44], %289 {strides = array<i32>} : memref<400x256xbf16, #tpu.memory_space<vmem>>, vector<16x256xbf16>,
    %cst_45 = arith.constant 0.000000e+00 : f32
    %291 = vector.broadcast %cst_45 : f32 to vector<16x30xf32>
    %292 = vector.extract_strided_slice %258 {offsets = [0, 0], sizes = [16, 226], strides = [1, 1]} : vector<16x256xf32> to vector<16x226xf32>
    %293 = tpu.concatenate %291, %292 in 1 : vector<16x30xf32>, vector<16x226xf32> -> vector<16x256xf32>
    %294 = vector.extract_strided_slice %2 {offsets = [4, 0], sizes = [1, 256], strides = [1, 1]} : vector<25x256xf32> to vector<1x256xf32>
    %295 = vector.broadcast %294 : vector<1x256xf32> to vector<16x256xf32>
    %296 = arith.mulf %293, %295 : vector<16x256xf32>
    %297 = arith.truncf %296 : vector<16x256xf32> to vector<16x256xbf16>
    %c64 = arith.constant 64 : index
    %c0_46 = arith.constant 0 : index
    %298 = vector.load %arg10[%c64, %c0_46] : memref<400x256xbf16, #tpu.memory_space<vmem>>, vector<16x256xbf16>
    tpu.vector_store %arg10[%c64, %c0_46], %297 {strides = array<i32>} : memref<400x256xbf16, #tpu.memory_space<vmem>>, vector<16x256xbf16>,
    %cst_47 = arith.constant 0.000000e+00 : f32
    %299 = vector.broadcast %cst_47 : f32 to vector<16x18xf32>
    %300 = vector.extract_strided_slice %258 {offsets = [0, 0], sizes = [16, 238], strides = [1, 1]} : vector<16x256xf32> to vector<16x238xf32>
    %301 = tpu.concatenate %299, %300 in 1 : vector<16x18xf32>, vector<16x238xf32> -> vector<16x256xf32>
    %302 = vector.extract_strided_slice %2 {offsets = [5, 0], sizes = [1, 256], strides = [1, 1]} : vector<25x256xf32> to vector<1x256xf32>
    %303 = vector.broadcast %302 : vector<1x256xf32> to vector<16x256xf32>
    %304 = arith.mulf %301, %303 : vector<16x256xf32>
    %305 = arith.truncf %304 : vector<16x256xf32> to vector<16x256xbf16>
    %c80 = arith.constant 80 : index
    %c0_48 = arith.constant 0 : index
    %306 = vector.load %arg10[%c80, %c0_48] : memref<400x256xbf16, #tpu.memory_space<vmem>>, vector<16x256xbf16>
    tpu.vector_store %arg10[%c80, %c0_48], %305 {strides = array<i32>} : memref<400x256xbf16, #tpu.memory_space<vmem>>, vector<16x256xbf16>,
    %cst_49 = arith.constant 0.000000e+00 : f32
    %307 = vector.broadcast %cst_49 : f32 to vector<16x17xf32>
    %308 = vector.extract_strided_slice %258 {offsets = [0, 0], sizes = [16, 239], strides = [1, 1]} : vector<16x256xf32> to vector<16x239xf32>
    %309 = tpu.concatenate %307, %308 in 1 : vector<16x17xf32>, vector<16x239xf32> -> vector<16x256xf32>
    %310 = vector.extract_strided_slice %2 {offsets = [6, 0], sizes = [1, 256], strides = [1, 1]} : vector<25x256xf32> to vector<1x256xf32>
    %311 = vector.broadcast %310 : vector<1x256xf32> to vector<16x256xf32>
    %312 = arith.mulf %309, %311 : vector<16x256xf32>
    %313 = arith.truncf %312 : vector<16x256xf32> to vector<16x256xbf16>
    %c96 = arith.constant 96 : index
    %c0_50 = arith.constant 0 : index
    %314 = vector.load %arg10[%c96, %c0_50] : memref<400x256xbf16, #tpu.memory_space<vmem>>, vector<16x256xbf16>
    tpu.vector_store %arg10[%c96, %c0_50], %313 {strides = array<i32>} : memref<400x256xbf16, #tpu.memory_space<vmem>>, vector<16x256xbf16>,
    %cst_51 = arith.constant 0.000000e+00 : f32
    %315 = vector.broadcast %cst_51 : f32 to vector<16x16xf32>
    %316 = vector.extract_strided_slice %258 {offsets = [0, 0], sizes = [16, 240], strides = [1, 1]} : vector<16x256xf32> to vector<16x240xf32>
    %317 = tpu.concatenate %315, %316 in 1 : vector<16x16xf32>, vector<16x240xf32> -> vector<16x256xf32>
    %318 = vector.extract_strided_slice %2 {offsets = [7, 0], sizes = [1, 256], strides = [1, 1]} : vector<25x256xf32> to vector<1x256xf32>
    %319 = vector.broadcast %318 : vector<1x256xf32> to vector<16x256xf32>
    %320 = arith.mulf %317, %319 : vector<16x256xf32>
    %321 = arith.truncf %320 : vector<16x256xf32> to vector<16x256xbf16>
    %c112 = arith.constant 112 : index
    %c0_52 = arith.constant 0 : index
    %322 = vector.load %arg10[%c112, %c0_52] : memref<400x256xbf16, #tpu.memory_space<vmem>>, vector<16x256xbf16>
    tpu.vector_store %arg10[%c112, %c0_52], %321 {strides = array<i32>} : memref<400x256xbf16, #tpu.memory_space<vmem>>, vector<16x256xbf16>,
    %cst_53 = arith.constant 0.000000e+00 : f32
    %323 = vector.broadcast %cst_53 : f32 to vector<16x15xf32>
    %324 = vector.extract_strided_slice %258 {offsets = [0, 0], sizes = [16, 241], strides = [1, 1]} : vector<16x256xf32> to vector<16x241xf32>
    %325 = tpu.concatenate %323, %324 in 1 : vector<16x15xf32>, vector<16x241xf32> -> vector<16x256xf32>
    %326 = vector.extract_strided_slice %2 {offsets = [8, 0], sizes = [1, 256], strides = [1, 1]} : vector<25x256xf32> to vector<1x256xf32>
    %327 = vector.broadcast %326 : vector<1x256xf32> to vector<16x256xf32>
    %328 = arith.mulf %325, %327 : vector<16x256xf32>
    %329 = arith.truncf %328 : vector<16x256xf32> to vector<16x256xbf16>
    %c128 = arith.constant 128 : index
    %c0_54 = arith.constant 0 : index
    %330 = vector.load %arg10[%c128, %c0_54] : memref<400x256xbf16, #tpu.memory_space<vmem>>, vector<16x256xbf16>
    tpu.vector_store %arg10[%c128, %c0_54], %329 {strides = array<i32>} : memref<400x256xbf16, #tpu.memory_space<vmem>>, vector<16x256xbf16>,
    %cst_55 = arith.constant 0.000000e+00 : f32
    %331 = vector.broadcast %cst_55 : f32 to vector<16x14xf32>
    %332 = vector.extract_strided_slice %258 {offsets = [0, 0], sizes = [16, 242], strides = [1, 1]} : vector<16x256xf32> to vector<16x242xf32>
    %333 = tpu.concatenate %331, %332 in 1 : vector<16x14xf32>, vector<16x242xf32> -> vector<16x256xf32>
    %334 = vector.extract_strided_slice %2 {offsets = [9, 0], sizes = [1, 256], strides = [1, 1]} : vector<25x256xf32> to vector<1x256xf32>
    %335 = vector.broadcast %334 : vector<1x256xf32> to vector<16x256xf32>
    %336 = arith.mulf %333, %335 : vector<16x256xf32>
    %337 = arith.truncf %336 : vector<16x256xf32> to vector<16x256xbf16>
    %c144 = arith.constant 144 : index
    %c0_56 = arith.constant 0 : index
    %338 = vector.load %arg10[%c144, %c0_56] : memref<400x256xbf16, #tpu.memory_space<vmem>>, vector<16x256xbf16>
    tpu.vector_store %arg10[%c144, %c0_56], %337 {strides = array<i32>} : memref<400x256xbf16, #tpu.memory_space<vmem>>, vector<16x256xbf16>,
    %cst_57 = arith.constant 0.000000e+00 : f32
    %339 = vector.broadcast %cst_57 : f32 to vector<16x2xf32>
    %340 = vector.extract_strided_slice %258 {offsets = [0, 0], sizes = [16, 254], strides = [1, 1]} : vector<16x256xf32> to vector<16x254xf32>
    %341 = tpu.concatenate %339, %340 in 1 : vector<16x2xf32>, vector<16x254xf32> -> vector<16x256xf32>
    %342 = vector.extract_strided_slice %2 {offsets = [10, 0], sizes = [1, 256], strides = [1, 1]} : vector<25x256xf32> to vector<1x256xf32>
    %343 = vector.broadcast %342 : vector<1x256xf32> to vector<16x256xf32>
    %344 = arith.mulf %341, %343 : vector<16x256xf32>
    %345 = arith.truncf %344 : vector<16x256xf32> to vector<16x256xbf16>
    %c160 = arith.constant 160 : index
    %c0_58 = arith.constant 0 : index
    %346 = vector.load %arg10[%c160, %c0_58] : memref<400x256xbf16, #tpu.memory_space<vmem>>, vector<16x256xbf16>
    tpu.vector_store %arg10[%c160, %c0_58], %345 {strides = array<i32>} : memref<400x256xbf16, #tpu.memory_space<vmem>>, vector<16x256xbf16>,
    %cst_59 = arith.constant 0.000000e+00 : f32
    %347 = vector.broadcast %cst_59 : f32 to vector<16x1xf32>
    %348 = vector.extract_strided_slice %258 {offsets = [0, 0], sizes = [16, 255], strides = [1, 1]} : vector<16x256xf32> to vector<16x255xf32>
    %349 = tpu.concatenate %347, %348 in 1 : vector<16x1xf32>, vector<16x255xf32> -> vector<16x256xf32>
    %350 = vector.extract_strided_slice %2 {offsets = [11, 0], sizes = [1, 256], strides = [1, 1]} : vector<25x256xf32> to vector<1x256xf32>
    %351 = vector.broadcast %350 : vector<1x256xf32> to vector<16x256xf32>
    %352 = arith.mulf %349, %351 : vector<16x256xf32>
    %353 = arith.truncf %352 : vector<16x256xf32> to vector<16x256xbf16>
    %c176 = arith.constant 176 : index
    %c0_60 = arith.constant 0 : index
    %354 = vector.load %arg10[%c176, %c0_60] : memref<400x256xbf16, #tpu.memory_space<vmem>>, vector<16x256xbf16>
    tpu.vector_store %arg10[%c176, %c0_60], %353 {strides = array<i32>} : memref<400x256xbf16, #tpu.memory_space<vmem>>, vector<16x256xbf16>,
    %355 = vector.extract_strided_slice %2 {offsets = [12, 0], sizes = [1, 256], strides = [1, 1]} : vector<25x256xf32> to vector<1x256xf32>
    %356 = vector.broadcast %355 : vector<1x256xf32> to vector<16x256xf32>
    %357 = arith.mulf %258, %356 : vector<16x256xf32>
    %358 = arith.truncf %357 : vector<16x256xf32> to vector<16x256xbf16>
    %c192 = arith.constant 192 : index
    %c0_61 = arith.constant 0 : index
    %359 = vector.load %arg10[%c192, %c0_61] : memref<400x256xbf16, #tpu.memory_space<vmem>>, vector<16x256xbf16>
    tpu.vector_store %arg10[%c192, %c0_61], %358 {strides = array<i32>} : memref<400x256xbf16, #tpu.memory_space<vmem>>, vector<16x256xbf16>,
    %cst_62 = arith.constant 0.000000e+00 : f32
    %360 = vector.broadcast %cst_62 : f32 to vector<16x1xf32>
    %361 = vector.extract_strided_slice %258 {offsets = [0, 1], sizes = [16, 255], strides = [1, 1]} : vector<16x256xf32> to vector<16x255xf32>
    %362 = tpu.concatenate %361, %360 in 1 : vector<16x255xf32>, vector<16x1xf32> -> vector<16x256xf32>
    %363 = vector.extract_strided_slice %2 {offsets = [13, 0], sizes = [1, 256], strides = [1, 1]} : vector<25x256xf32> to vector<1x256xf32>
    %364 = vector.broadcast %363 : vector<1x256xf32> to vector<16x256xf32>
    %365 = arith.mulf %362, %364 : vector<16x256xf32>
    %366 = arith.truncf %365 : vector<16x256xf32> to vector<16x256xbf16>
    %c208 = arith.constant 208 : index
    %c0_63 = arith.constant 0 : index
    %367 = vector.load %arg10[%c208, %c0_63] : memref<400x256xbf16, #tpu.memory_space<vmem>>, vector<16x256xbf16>
    tpu.vector_store %arg10[%c208, %c0_63], %366 {strides = array<i32>} : memref<400x256xbf16, #tpu.memory_space<vmem>>, vector<16x256xbf16>,
    %cst_64 = arith.constant 0.000000e+00 : f32
    %368 = vector.broadcast %cst_64 : f32 to vector<16x2xf32>
    %369 = vector.extract_strided_slice %258 {offsets = [0, 2], sizes = [16, 254], strides = [1, 1]} : vector<16x256xf32> to vector<16x254xf32>
    %370 = tpu.concatenate %369, %368 in 1 : vector<16x254xf32>, vector<16x2xf32> -> vector<16x256xf32>
    %371 = vector.extract_strided_slice %2 {offsets = [14, 0], sizes = [1, 256], strides = [1, 1]} : vector<25x256xf32> to vector<1x256xf32>
    %372 = vector.broadcast %371 : vector<1x256xf32> to vector<16x256xf32>
    %373 = arith.mulf %370, %372 : vector<16x256xf32>
    %374 = arith.truncf %373 : vector<16x256xf32> to vector<16x256xbf16>
    %c224 = arith.constant 224 : index
    %c0_65 = arith.constant 0 : index
    %375 = vector.load %arg10[%c224, %c0_65] : memref<400x256xbf16, #tpu.memory_space<vmem>>, vector<16x256xbf16>
    tpu.vector_store %arg10[%c224, %c0_65], %374 {strides = array<i32>} : memref<400x256xbf16, #tpu.memory_space<vmem>>, vector<16x256xbf16>,
    %cst_66 = arith.constant 0.000000e+00 : f32
    %376 = vector.broadcast %cst_66 : f32 to vector<16x14xf32>
    %377 = vector.extract_strided_slice %258 {offsets = [0, 14], sizes = [16, 242], strides = [1, 1]} : vector<16x256xf32> to vector<16x242xf32>
    %378 = tpu.concatenate %377, %376 in 1 : vector<16x242xf32>, vector<16x14xf32> -> vector<16x256xf32>
    %379 = vector.extract_strided_slice %2 {offsets = [15, 0], sizes = [1, 256], strides = [1, 1]} : vector<25x256xf32> to vector<1x256xf32>
    %380 = vector.broadcast %379 : vector<1x256xf32> to vector<16x256xf32>
    %381 = arith.mulf %378, %380 : vector<16x256xf32>
    %382 = arith.truncf %381 : vector<16x256xf32> to vector<16x256xbf16>
    %c240 = arith.constant 240 : index
    %c0_67 = arith.constant 0 : index
    %383 = vector.load %arg10[%c240, %c0_67] : memref<400x256xbf16, #tpu.memory_space<vmem>>, vector<16x256xbf16>
    tpu.vector_store %arg10[%c240, %c0_67], %382 {strides = array<i32>} : memref<400x256xbf16, #tpu.memory_space<vmem>>, vector<16x256xbf16>,
    %cst_68 = arith.constant 0.000000e+00 : f32
    %384 = vector.broadcast %cst_68 : f32 to vector<16x15xf32>
    %385 = vector.extract_strided_slice %258 {offsets = [0, 15], sizes = [16, 241], strides = [1, 1]} : vector<16x256xf32> to vector<16x241xf32>
    %386 = tpu.concatenate %385, %384 in 1 : vector<16x241xf32>, vector<16x15xf32> -> vector<16x256xf32>
    %387 = vector.extract_strided_slice %2 {offsets = [16, 0], sizes = [1, 256], strides = [1, 1]} : vector<25x256xf32> to vector<1x256xf32>
    %388 = vector.broadcast %387 : vector<1x256xf32> to vector<16x256xf32>
    %389 = arith.mulf %386, %388 : vector<16x256xf32>
    %390 = arith.truncf %389 : vector<16x256xf32> to vector<16x256xbf16>
    %c256 = arith.constant 256 : index
    %c0_69 = arith.constant 0 : index
    %391 = vector.load %arg10[%c256, %c0_69] : memref<400x256xbf16, #tpu.memory_space<vmem>>, vector<16x256xbf16>
    tpu.vector_store %arg10[%c256, %c0_69], %390 {strides = array<i32>} : memref<400x256xbf16, #tpu.memory_space<vmem>>, vector<16x256xbf16>,
    %cst_70 = arith.constant 0.000000e+00 : f32
    %392 = vector.broadcast %cst_70 : f32 to vector<16x16xf32>
    %393 = vector.extract_strided_slice %258 {offsets = [0, 16], sizes = [16, 240], strides = [1, 1]} : vector<16x256xf32> to vector<16x240xf32>
    %394 = tpu.concatenate %393, %392 in 1 : vector<16x240xf32>, vector<16x16xf32> -> vector<16x256xf32>
    %395 = vector.extract_strided_slice %2 {offsets = [17, 0], sizes = [1, 256], strides = [1, 1]} : vector<25x256xf32> to vector<1x256xf32>
    %396 = vector.broadcast %395 : vector<1x256xf32> to vector<16x256xf32>
    %397 = arith.mulf %394, %396 : vector<16x256xf32>
    %398 = arith.truncf %397 : vector<16x256xf32> to vector<16x256xbf16>
    %c272 = arith.constant 272 : index
    %c0_71 = arith.constant 0 : index
    %399 = vector.load %arg10[%c272, %c0_71] : memref<400x256xbf16, #tpu.memory_space<vmem>>, vector<16x256xbf16>
    tpu.vector_store %arg10[%c272, %c0_71], %398 {strides = array<i32>} : memref<400x256xbf16, #tpu.memory_space<vmem>>, vector<16x256xbf16>,
    %cst_72 = arith.constant 0.000000e+00 : f32
    %400 = vector.broadcast %cst_72 : f32 to vector<16x17xf32>
    %401 = vector.extract_strided_slice %258 {offsets = [0, 17], sizes = [16, 239], strides = [1, 1]} : vector<16x256xf32> to vector<16x239xf32>
    %402 = tpu.concatenate %401, %400 in 1 : vector<16x239xf32>, vector<16x17xf32> -> vector<16x256xf32>
    %403 = vector.extract_strided_slice %2 {offsets = [18, 0], sizes = [1, 256], strides = [1, 1]} : vector<25x256xf32> to vector<1x256xf32>
    %404 = vector.broadcast %403 : vector<1x256xf32> to vector<16x256xf32>
    %405 = arith.mulf %402, %404 : vector<16x256xf32>
    %406 = arith.truncf %405 : vector<16x256xf32> to vector<16x256xbf16>
    %c288 = arith.constant 288 : index
    %c0_73 = arith.constant 0 : index
    %407 = vector.load %arg10[%c288, %c0_73] : memref<400x256xbf16, #tpu.memory_space<vmem>>, vector<16x256xbf16>
    tpu.vector_store %arg10[%c288, %c0_73], %406 {strides = array<i32>} : memref<400x256xbf16, #tpu.memory_space<vmem>>, vector<16x256xbf16>,
    %cst_74 = arith.constant 0.000000e+00 : f32
    %408 = vector.broadcast %cst_74 : f32 to vector<16x18xf32>
    %409 = vector.extract_strided_slice %258 {offsets = [0, 18], sizes = [16, 238], strides = [1, 1]} : vector<16x256xf32> to vector<16x238xf32>
    %410 = tpu.concatenate %409, %408 in 1 : vector<16x238xf32>, vector<16x18xf32> -> vector<16x256xf32>
    %411 = vector.extract_strided_slice %2 {offsets = [19, 0], sizes = [1, 256], strides = [1, 1]} : vector<25x256xf32> to vector<1x256xf32>
    %412 = vector.broadcast %411 : vector<1x256xf32> to vector<16x256xf32>
    %413 = arith.mulf %410, %412 : vector<16x256xf32>
    %414 = arith.truncf %413 : vector<16x256xf32> to vector<16x256xbf16>
    %c304 = arith.constant 304 : index
    %c0_75 = arith.constant 0 : index
    %415 = vector.load %arg10[%c304, %c0_75] : memref<400x256xbf16, #tpu.memory_space<vmem>>, vector<16x256xbf16>
    tpu.vector_store %arg10[%c304, %c0_75], %414 {strides = array<i32>} : memref<400x256xbf16, #tpu.memory_space<vmem>>, vector<16x256xbf16>,
    %cst_76 = arith.constant 0.000000e+00 : f32
    %416 = vector.broadcast %cst_76 : f32 to vector<16x30xf32>
    %417 = vector.extract_strided_slice %258 {offsets = [0, 30], sizes = [16, 226], strides = [1, 1]} : vector<16x256xf32> to vector<16x226xf32>
    %418 = tpu.concatenate %417, %416 in 1 : vector<16x226xf32>, vector<16x30xf32> -> vector<16x256xf32>
    %419 = vector.extract_strided_slice %2 {offsets = [20, 0], sizes = [1, 256], strides = [1, 1]} : vector<25x256xf32> to vector<1x256xf32>
    %420 = vector.broadcast %419 : vector<1x256xf32> to vector<16x256xf32>
    %421 = arith.mulf %418, %420 : vector<16x256xf32>
    %422 = arith.truncf %421 : vector<16x256xf32> to vector<16x256xbf16>
    %c320 = arith.constant 320 : index
    %c0_77 = arith.constant 0 : index
    %423 = vector.load %arg10[%c320, %c0_77] : memref<400x256xbf16, #tpu.memory_space<vmem>>, vector<16x256xbf16>
    tpu.vector_store %arg10[%c320, %c0_77], %422 {strides = array<i32>} : memref<400x256xbf16, #tpu.memory_space<vmem>>, vector<16x256xbf16>,
    %cst_78 = arith.constant 0.000000e+00 : f32
    %424 = vector.broadcast %cst_78 : f32 to vector<16x31xf32>
    %425 = vector.extract_strided_slice %258 {offsets = [0, 31], sizes = [16, 225], strides = [1, 1]} : vector<16x256xf32> to vector<16x225xf32>
    %426 = tpu.concatenate %425, %424 in 1 : vector<16x225xf32>, vector<16x31xf32> -> vector<16x256xf32>
    %427 = vector.extract_strided_slice %2 {offsets = [21, 0], sizes = [1, 256], strides = [1, 1]} : vector<25x256xf32> to vector<1x256xf32>
    %428 = vector.broadcast %427 : vector<1x256xf32> to vector<16x256xf32>
    %429 = arith.mulf %426, %428 : vector<16x256xf32>
    %430 = arith.truncf %429 : vector<16x256xf32> to vector<16x256xbf16>
    %c336 = arith.constant 336 : index
    %c0_79 = arith.constant 0 : index
    %431 = vector.load %arg10[%c336, %c0_79] : memref<400x256xbf16, #tpu.memory_space<vmem>>, vector<16x256xbf16>
    tpu.vector_store %arg10[%c336, %c0_79], %430 {strides = array<i32>} : memref<400x256xbf16, #tpu.memory_space<vmem>>, vector<16x256xbf16>,
    %cst_80 = arith.constant 0.000000e+00 : f32
    %432 = vector.broadcast %cst_80 : f32 to vector<16x32xf32>
    %433 = vector.extract_strided_slice %258 {offsets = [0, 32], sizes = [16, 224], strides = [1, 1]} : vector<16x256xf32> to vector<16x224xf32>
    %434 = tpu.concatenate %433, %432 in 1 : vector<16x224xf32>, vector<16x32xf32> -> vector<16x256xf32>
    %435 = vector.extract_strided_slice %2 {offsets = [22, 0], sizes = [1, 256], strides = [1, 1]} : vector<25x256xf32> to vector<1x256xf32>
    %436 = vector.broadcast %435 : vector<1x256xf32> to vector<16x256xf32>
    %437 = arith.mulf %434, %436 : vector<16x256xf32>
    %438 = arith.truncf %437 : vector<16x256xf32> to vector<16x256xbf16>
    %c352 = arith.constant 352 : index
    %c0_81 = arith.constant 0 : index
    %439 = vector.load %arg10[%c352, %c0_81] : memref<400x256xbf16, #tpu.memory_space<vmem>>, vector<16x256xbf16>
    tpu.vector_store %arg10[%c352, %c0_81], %438 {strides = array<i32>} : memref<400x256xbf16, #tpu.memory_space<vmem>>, vector<16x256xbf16>,
    %cst_82 = arith.constant 0.000000e+00 : f32
    %440 = vector.broadcast %cst_82 : f32 to vector<16x33xf32>
    %441 = vector.extract_strided_slice %258 {offsets = [0, 33], sizes = [16, 223], strides = [1, 1]} : vector<16x256xf32> to vector<16x223xf32>
    %442 = tpu.concatenate %441, %440 in 1 : vector<16x223xf32>, vector<16x33xf32> -> vector<16x256xf32>
    %443 = vector.extract_strided_slice %2 {offsets = [23, 0], sizes = [1, 256], strides = [1, 1]} : vector<25x256xf32> to vector<1x256xf32>
    %444 = vector.broadcast %443 : vector<1x256xf32> to vector<16x256xf32>
    %445 = arith.mulf %442, %444 : vector<16x256xf32>
    %446 = arith.truncf %445 : vector<16x256xf32> to vector<16x256xbf16>
    %c368 = arith.constant 368 : index
    %c0_83 = arith.constant 0 : index
    %447 = vector.load %arg10[%c368, %c0_83] : memref<400x256xbf16, #tpu.memory_space<vmem>>, vector<16x256xbf16>
    tpu.vector_store %arg10[%c368, %c0_83], %446 {strides = array<i32>} : memref<400x256xbf16, #tpu.memory_space<vmem>>, vector<16x256xbf16>,
    %cst_84 = arith.constant 0.000000e+00 : f32
    %448 = vector.broadcast %cst_84 : f32 to vector<16x34xf32>
    %449 = vector.extract_strided_slice %258 {offsets = [0, 34], sizes = [16, 222], strides = [1, 1]} : vector<16x256xf32> to vector<16x222xf32>
    %450 = tpu.concatenate %449, %448 in 1 : vector<16x222xf32>, vector<16x34xf32> -> vector<16x256xf32>
    %451 = vector.extract_strided_slice %2 {offsets = [24, 0], sizes = [1, 256], strides = [1, 1]} : vector<25x256xf32> to vector<1x256xf32>
    %452 = vector.broadcast %451 : vector<1x256xf32> to vector<16x256xf32>
    %453 = arith.mulf %450, %452 : vector<16x256xf32>
    %454 = arith.truncf %453 : vector<16x256xf32> to vector<16x256xbf16>
    %c384 = arith.constant 384 : index
    %c0_85 = arith.constant 0 : index
    %455 = vector.load %arg10[%c384, %c0_85] : memref<400x256xbf16, #tpu.memory_space<vmem>>, vector<16x256xbf16>
    tpu.vector_store %arg10[%c384, %c0_85], %454 {strides = array<i32>} : memref<400x256xbf16, #tpu.memory_space<vmem>>, vector<16x256xbf16>,
    %c0_86 = arith.constant 0 : index
    %c0_87 = arith.constant 0 : index
    %456 = vector.load %arg6[%c0_86, %c0_87] : memref<16x400xbf16, #tpu.memory_space<vmem>>, vector<16x400xbf16>
    %c0_88 = arith.constant 0 : index
    %c0_89 = arith.constant 0 : index
    %457 = vector.load %arg10[%c0_88, %c0_89] : memref<400x256xbf16, #tpu.memory_space<vmem>>, vector<400x256xbf16>
    %cst_90 = arith.constant dense<0.000000e+00> : vector<16x256xf32>
    %458 = tpu.matmul %456, %457, %cst_90 {dimension_numbers = #tpu.dot_dimension_numbers<[1], [0], [0], [1], [0, 0, 1, 1], [], []>} : vector<16x400xbf16>, vector<400x256xbf16>, vector<16x256xf32> -> vector<16x256xf32>
    %c0_91 = arith.constant 0 : index
    %c0_92 = arith.constant 0 : index
    %459 = vector.load %arg7[%c0_91, %c0_92] : memref<8x16xf32, #tpu.memory_space<vmem>>, vector<8x16xf32>
    %cst_93 = arith.constant dense<0.000000e+00> : vector<8x256xf32>
    %460 = tpu.matmul %459, %458, %cst_93 {dimension_numbers = #tpu.dot_dimension_numbers<[1], [0], [0], [1], [0, 0, 1, 1], [], []>} : vector<8x16xf32>, vector<16x256xf32>, vector<8x256xf32> -> vector<8x256xf32>
    %c0_94 = arith.constant 0 : index
    %c0_95 = arith.constant 0 : index
    %461 = vector.load %arg8[%c0_94, %c0_95] : memref<8x1xf32, #tpu.memory_space<vmem>>, vector<8x1xf32>
    %462 = vector.broadcast %461 : vector<8x1xf32> to vector<8x256xf32>
    %463 = arith.addf %460, %462 : vector<8x256xf32>
    %464 = arith.addf %463, %1 : vector<8x256xf32>
    %cst_96 = arith.constant 0.000000e+00 : f32
    %465 = vector.broadcast %cst_96 : f32 to vector<8x256xf32>
    %466 = arith.maximumf %464, %465 : vector<8x256xf32>
    %c0_97 = arith.constant 0 : index
    %c0_98 = arith.constant 0 : index
    %c0_99 = arith.constant 0 : index
    %467 = vector.load %arg9[%c0_97, %c0_98, %c0_99] : memref<1x8x256xf32, #tpu.memory_space<vmem>>, vector<1x8x256xf32>
    %468 = vector.shape_cast %467 : vector<1x8x256xf32> to vector<8x256xf32>
    %469 = vector.shape_cast %466 : vector<8x256xf32> to vector<1x8x256xf32>
    tpu.vector_store %arg9[%c0_97, %c0_98, %c0_99], %469 {strides = array<i32>} : memref<1x8x256xf32, #tpu.memory_space<vmem>>, vector<1x8x256xf32>,
    return
  }
  func.func @transform_0(%arg0: i32) -> (i32, i32, i32) {
    %c0_i32 = arith.constant 0 : i32
    %c0_i32_0 = arith.constant 0 : i32
    %c0_i32_1 = arith.constant 0 : i32
    return %arg0, %c0_i32, %c0_i32_0 : i32, i32, i32
  }
  func.func @transform_1(%arg0: i32) -> (i32, i32) {
    %c0_i32 = arith.constant 0 : i32
    %c0_i32_0 = arith.constant 0 : i32
    %c0_i32_1 = arith.constant 0 : i32
    return %c0_i32, %c0_i32_0 : i32, i32
  }
  func.func @transform_2(%arg0: i32) -> (i32, i32) {
    %c0_i32 = arith.constant 0 : i32
    %c0_i32_0 = arith.constant 0 : i32
    %c0_i32_1 = arith.constant 0 : i32
    return %c0_i32, %c0_i32_0 : i32, i32
  }
  func.func @transform_3(%arg0: i32) -> (i32, i32) {
    %c0_i32 = arith.constant 0 : i32
    %c0_i32_0 = arith.constant 0 : i32
    %c0_i32_1 = arith.constant 0 : i32
    return %c0_i32, %c0_i32_0 : i32, i32
  }
  func.func @transform_4(%arg0: i32) -> (i32, i32) {
    %c0_i32 = arith.constant 0 : i32
    %c0_i32_0 = arith.constant 0 : i32
    %c0_i32_1 = arith.constant 0 : i32
    return %c0_i32, %c0_i32_0 : i32, i32
  }
  func.func @transform_5(%arg0: i32) -> (i32, i32) {
    %c0_i32 = arith.constant 0 : i32
    %c0_i32_0 = arith.constant 0 : i32
    %c0_i32_1 = arith.constant 0 : i32
    return %c0_i32, %c0_i32_0 : i32, i32
  }
  func.func @transform_6(%arg0: i32) -> (i32, i32) {
    %c0_i32 = arith.constant 0 : i32
    %c0_i32_0 = arith.constant 0 : i32
    %c0_i32_1 = arith.constant 0 : i32
    return %c0_i32, %c0_i32_0 : i32, i32
  }
  func.func @transform_7(%arg0: i32) -> (i32, i32) {
    %c0_i32 = arith.constant 0 : i32
    %c0_i32_0 = arith.constant 0 : i32
    %c0_i32_1 = arith.constant 0 : i32
    return %c0_i32, %c0_i32_0 : i32, i32
  }
  func.func @transform_8(%arg0: i32) -> (i32, i32, i32) {
    %c0_i32 = arith.constant 0 : i32
    %c0_i32_0 = arith.constant 0 : i32
    %c0_i32_1 = arith.constant 0 : i32
    return %arg0, %c0_i32, %c0_i32_0 : i32, i32, i32
  }
}

</mosaic_0001>

<llo_original>
// kernel: tpu_custom_call.1
$region0: #{tpu_custom_call.1}
  #allocation0 [shape = 'u32[]', space=smem, size = 0x4, offset = 0x4, fixed_abs, tag = 'smem constant byte address 0x4 - core index']
  #allocation1 [shape = 'u32[144,128]{1,0:T(1,128)}', space=vmem, size = 0x12000, scoped, tag = 'internal scratch']
  #allocation2 [shape = 'bf16[400,256]{1,0:T(8,128)(2,1)}', space=vmem, size = 0x32000, scoped, tag = 'scratch operand']
  %s0 = inlined_call_operand.vmem [shape: f32[2,8,256], index: 0, kind: input, shape index: {}]
  %s1 = inlined_call_operand.hbm [shape: f32[25,256], index: 1, kind: input, shape index: {}]
  %s2 = inlined_call_operand.vmem [shape: f32[8,25], index: 2, kind: input, shape index: {}]
  %s3 = inlined_call_operand.vmem [shape: f32[16,8], index: 3, kind: input, shape index: {}]
  %s4 = inlined_call_operand.vmem [shape: f32[16,1], index: 4, kind: input, shape index: {}]
  %s5 = inlined_call_operand.hbm [shape: bf16[16,400], index: 5, kind: input, shape index: {}]
  %s6 = inlined_call_operand.vmem [shape: f32[8,16], index: 6, kind: input, shape index: {}]
  %s7 = inlined_call_operand.vmem [shape: f32[8,1], index: 7, kind: input, shape index: {}]
  %s8 = inlined_call_operand.hbm [shape: f32[2,8,256], index: 8, kind: output, shape index: {}]
  %s9 = sld [smem:[#allocation0]]
  $region73: #{tpu_custom_call.1} parent=0
    _
  %s11 = ssub.s32 1, %s9
  %s12 = scalar_select 0, %s11, %s9
  $region1: #{tpu_custom_call.1} parent=0
    #allocation3 [shape = 'u8[32768]{0}', space=vmem, size = 0x8000, scoped, tag = 'input window, operand 1, single buffered']
    #allocation4 [shape = 's32[2]{0}', space=sflag, size = 0x8, scoped, tag = 'scoped memory for tpu_custom_call.1']
    #allocation5 [shape = 's32[2]{0}', space=sflag, size = 0x8, scoped, tag = 'scoped memory for tpu_custom_call.1']
    #allocation6 [shape = 'u8[16384]{0}', space=vmem, size = 0x4000, scoped, tag = 'input window, operand 5, single buffered']
    #allocation7 [shape = 's32[1]{0}', space=sflag, size = 0x4, scoped, tag = 'scoped memory for tpu_custom_call.1']
    #allocation8 [shape = 'u8[16384]{0}', space=vmem, size = 0x4000, scoped, tag = 'output window, operand 0']
    %13 = vsyncpa [#allocation4], 0
    %14 = vsyncpa [#allocation7], 0
    %15 = vsyncpa [#allocation5], 0
    %s16 = scalar_lea.sflag [#allocation5], 1
    %17 = vsyncpa %s16, 0
    loop: start=0, step=1, limit=4
    $region2: #{tpu_custom_call.1} parent=1 // loop_pre_header
      _
    $region3: #{tpu_custom_call.1} parent=1 // loop_header
      %s19 = sphi 0, %s23
      %p20 = scmp.ge.s32.totalorder %s19, 4
      %s29 = sphi 0, %s31
      %s32 = sphi 0, %s29
      %s33 = sphi 0, %s32
      %s49 = sphi 0, %s33
      %s53 = sphi 0, %s53
      %s55 = sphi 0, %s53
      %s56 = sphi 0, %s55
      %s70 = sphi 0, %s56
      %s74 = sphi 0, %s74
      %s76 = sphi 0, %s74
      %s77 = sphi 0, %s76
      %s91 = sphi 0, %s77
      %s95 = sphi 0, %s95
      %s97 = sphi 0, %s95
      %s98 = sphi 0, %s97
      %s112 = sphi 0, %s98
      %s116 = sphi 0, %s116
      %s118 = sphi 0, %s116
      %s119 = sphi 0, %s118
      %s133 = sphi 0, %s119
      %s137 = sphi 0, %s137
      %s139 = sphi 0, %s137
      %s140 = sphi 0, %s139
      %s154 = sphi 0, %s140
      %s158 = sphi 0, %s158
      %s160 = sphi 0, %s158
      %s161 = sphi 0, %s160
      %s175 = sphi 0, %s161
      %s179 = sphi 0, %s179
      %s181 = sphi 0, %s179
      %s182 = sphi 0, %s181
      %s196 = sphi 0, %s182
      %s202 = sphi 0, %s204
      %s205 = sphi 0, %s202
      %s206 = sphi 0, %s205
      %s222 = sphi 0, %s206
    $region4: #{tpu_custom_call.1} parent=1 // loop_header_branch
      %22 = sbr.rel (%p20) target = $region8
    $region5: #{tpu_custom_call.1} parent=1 // loop_body
      %s24 = ssub.s32 %s19, 1
      %s25 = ssub.s32 %s19, 2
      %s26 = sadd.s32 %s19, 1
      %s27 = ssub.s32 %s19, %s26
      %p28 = scmp.eq.s32.totalorder %s27, 0
      %s30 = sadd.s32 %s29, 1
      %s31 = scalar_select %p28, %s29, %s30
      %p34 = pneg %p28
      %p35 = scmp.eq.s32.totalorder %s19, 1
      %p36 = por %p34, %p35
      %p37 = scmp.ne.s32.totalorder %s29, %s32
      %p38 = scmp.eq.s32.totalorder %s19, 0
      %p39 = por %p37, %p38
      %p40 = scmp.ne.s32.totalorder %s29, %s32
      %p41 = scmp.eq.s32.totalorder %s24, 1
      %p42 = por %p40, %p41
      %p43 = scmp.ne.s32.totalorder %s32, %s33
      %p44 = scmp.eq.s32.totalorder %s24, 0
      %p45 = por %p43, %p44
      %p46 = scmp.ne.s32.totalorder %s32, %s33
      %p47 = scmp.eq.s32.totalorder %s25, 1
      %p48 = por %p46, %p47
      %p50 = scmp.ne.s32.totalorder %s33, %s49
      %p51 = scmp.eq.s32.totalorder %s25, 0
      %p52 = por %p50, %p51
      %s54 = sadd.s32 %s53, 1
      %p57 = scmp.eq.s32.totalorder %s19, 1
      %p58 = scmp.ne.s32.totalorder %s53, %s55
      %p59 = scmp.eq.s32.totalorder %s19, 0
      %p60 = por %p58, %p59
      %p61 = scmp.ne.s32.totalorder %s53, %s55
      %p62 = scmp.eq.s32.totalorder %s24, 1
      %p63 = por %p61, %p62
      %p64 = scmp.ne.s32.totalorder %s55, %s56
      %p65 = scmp.eq.s32.totalorder %s24, 0
      %p66 = por %p64, %p65
      %p67 = scmp.ne.s32.totalorder %s55, %s56
      %p68 = scmp.eq.s32.totalorder %s25, 1
      %p69 = por %p67, %p68
      %p71 = scmp.ne.s32.totalorder %s56, %s70
      %p72 = scmp.eq.s32.totalorder %s25, 0
      %p73 = por %p71, %p72
      %s75 = sadd.s32 %s74, 1
      %p78 = scmp.eq.s32.totalorder %s19, 1
      %p79 = scmp.ne.s32.totalorder %s74, %s76
      %p80 = scmp.eq.s32.totalorder %s19, 0
      %p81 = por %p79, %p80
      %p82 = scmp.ne.s32.totalorder %s74, %s76
      %p83 = scmp.eq.s32.totalorder %s24, 1
      %p84 = por %p82, %p83
      %p85 = scmp.ne.s32.totalorder %s76, %s77
      %p86 = scmp.eq.s32.totalorder %s24, 0
      %p87 = por %p85, %p86
      %p88 = scmp.ne.s32.totalorder %s76, %s77
      %p89 = scmp.eq.s32.totalorder %s25, 1
      %p90 = por %p88, %p89
      %p92 = scmp.ne.s32.totalorder %s77, %s91
      %p93 = scmp.eq.s32.totalorder %s25, 0
      %p94 = por %p92, %p93
      %s96 = sadd.s32 %s95, 1
      %p99 = scmp.eq.s32.totalorder %s19, 1
      %p100 = scmp.ne.s32.totalorder %s95, %s97
      %p101 = scmp.eq.s32.totalorder %s19, 0
      %p102 = por %p100, %p101
      %p103 = scmp.ne.s32.totalorder %s95, %s97
      %p104 = scmp.eq.s32.totalorder %s24, 1
      %p105 = por %p103, %p104
      %p106 = scmp.ne.s32.totalorder %s97, %s98
      %p107 = scmp.eq.s32.totalorder %s24, 0
      %p108 = por %p106, %p107
      %p109 = scmp.ne.s32.totalorder %s97, %s98
      %p110 = scmp.eq.s32.totalorder %s25, 1
      %p111 = por %p109, %p110
      %p113 = scmp.ne.s32.totalorder %s98, %s112
      %p114 = scmp.eq.s32.totalorder %s25, 0
      %p115 = por %p113, %p114
      %s117 = sadd.s32 %s116, 1
      %p120 = scmp.eq.s32.totalorder %s19, 1
      %p121 = scmp.ne.s32.totalorder %s116, %s118
      %p122 = scmp.eq.s32.totalorder %s19, 0
      %p123 = por %p121, %p122
      %p124 = scmp.ne.s32.totalorder %s116, %s118
      %p125 = scmp.eq.s32.totalorder %s24, 1
      %p126 = por %p124, %p125
      %p127 = scmp.ne.s32.totalorder %s118, %s119
      %p128 = scmp.eq.s32.totalorder %s24, 0
      %p129 = por %p127, %p128
      %p130 = scmp.ne.s32.totalorder %s118, %s119
      %p131 = scmp.eq.s32.totalorder %s25, 1
      %p132 = por %p130, %p131
      %p134 = scmp.ne.s32.totalorder %s119, %s133
      %p135 = scmp.eq.s32.totalorder %s25, 0
      %p136 = por %p134, %p135
      %s138 = sadd.s32 %s137, 1
      %p141 = scmp.eq.s32.totalorder %s19, 1
      %p142 = scmp.ne.s32.totalorder %s137, %s139
      %p143 = scmp.eq.s32.totalorder %s19, 0
      %p144 = por %p142, %p143
      %p145 = scmp.ne.s32.totalorder %s137, %s139
      %p146 = scmp.eq.s32.totalorder %s24, 1
      %p147 = por %p145, %p146
      %p148 = scmp.ne.s32.totalorder %s139, %s140
      %p149 = scmp.eq.s32.totalorder %s24, 0
      %p150 = por %p148, %p149
      %p151 = scmp.ne.s32.totalorder %s139, %s140
      %p152 = scmp.eq.s32.totalorder %s25, 1
      %p153 = por %p151, %p152
      %p155 = scmp.ne.s32.totalorder %s140, %s154
      %p156 = scmp.eq.s32.totalorder %s25, 0
      %p157 = por %p155, %p156
      %s159 = sadd.s32 %s158, 1
      %p162 = scmp.eq.s32.totalorder %s19, 1
      %p163 = scmp.ne.s32.totalorder %s158, %s160
      %p164 = scmp.eq.s32.totalorder %s19, 0
      %p165 = por %p163, %p164
      %p166 = scmp.ne.s32.totalorder %s158, %s160
      %p167 = scmp.eq.s32.totalorder %s24, 1
      %p168 = por %p166, %p167
      %p169 = scmp.ne.s32.totalorder %s160, %s161
      %p170 = scmp.eq.s32.totalorder %s24, 0
      %p171 = por %p169, %p170
      %p172 = scmp.ne.s32.totalorder %s160, %s161
      %p173 = scmp.eq.s32.totalorder %s25, 1
      %p174 = por %p172, %p173
      %p176 = scmp.ne.s32.totalorder %s161, %s175
      %p177 = scmp.eq.s32.totalorder %s25, 0
      %p178 = por %p176, %p177
      %s180 = sadd.s32 %s179, 1
      %p183 = scmp.eq.s32.totalorder %s19, 1
      %p184 = scmp.ne.s32.totalorder %s179, %s181
      %p185 = scmp.eq.s32.totalorder %s19, 0
      %p186 = por %p184, %p185
      %p187 = scmp.ne.s32.totalorder %s179, %s181
      %p188 = scmp.eq.s32.totalorder %s24, 1
      %p189 = por %p187, %p188
      %p190 = scmp.ne.s32.totalorder %s181, %s182
      %p191 = scmp.eq.s32.totalorder %s24, 0
      %p192 = por %p190, %p191
      %p193 = scmp.ne.s32.totalorder %s181, %s182
      %p194 = scmp.eq.s32.totalorder %s25, 1
      %p195 = por %p193, %p194
      %p197 = scmp.ne.s32.totalorder %s182, %s196
      %p198 = scmp.eq.s32.totalorder %s25, 0
      %p199 = por %p197, %p198
      %s200 = ssub.s32 %s19, %s26
      %p201 = scmp.eq.s32.totalorder %s200, 0
      %s203 = sadd.s32 %s202, 1
      %s204 = scalar_select %p201, %s202, %s203
      %p207 = pneg %p201
      %p208 = scmp.eq.s32.totalorder %s19, 1
      %p209 = por %p207, %p208
      %p210 = scmp.ne.s32.totalorder %s202, %s205
      %p211 = scmp.eq.s32.totalorder %s19, 0
      %p212 = por %p210, %p211
      %p213 = scmp.ne.s32.totalorder %s202, %s205
      %p214 = scmp.eq.s32.totalorder %s24, 1
      %p215 = por %p213, %p214
      %p216 = scmp.ne.s32.totalorder %s205, %s206
      %p217 = scmp.eq.s32.totalorder %s24, 0
      %p218 = por %p216, %p217
      %p219 = scmp.ne.s32.totalorder %s205, %s206
      %p220 = scmp.eq.s32.totalorder %s25, 1
      %p221 = por %p219, %p220
      %p223 = scmp.ne.s32.totalorder %s206, %s222
      %p224 = scmp.eq.s32.totalorder %s25, 0
      %p225 = por %p223, %p224
      %p226 = scmp.le.s32.totalorder 1, %s19
      %p227 = scmp.lt.s32.totalorder %s19, 3
      %p228 = pnand %p226, %p227
      %p229 = pneg %p228
      // Predicated region
      $region9: #{tpu_custom_call.1} parent=5 // pred_check
        _
      $region10: #{tpu_custom_call.1} parent=5 // pred_check_branch
        %231 = sbr.rel (%p228) target = $region12
      $region11: #{tpu_custom_call.1} parent=5 // pred_region
        %s232 = ssub.s32 %s19, 1
        // Predicated region
        $region13: #{tpu_custom_call.1} parent=11 // pred_check
          %p233 = pneg %p66
        $region14: #{tpu_custom_call.1} parent=11 // pred_check_branch
          %235 = sbr.rel (%p233) target = $region16
        $region15: #{tpu_custom_call.1} parent=11 // pred_region
          %s237 = ssub.s32 1024, 1024
          %238 = vsyncadd [#allocation4], %s237
          %s239 = sshll.u32 [#allocation3], 4
          %s240 = int_to_ptr.vmem [resolvable:$true] %s239
          %245 = dma.hbm_to_vmem [thread:$0]  %s1, 1024, %s240, [#allocation4], 256, 256, 16
        $region16: #{tpu_custom_call.1} parent=11 // pred_fallthru
          _
        // Predicated region
        $region17: #{tpu_custom_call.1} parent=11 // pred_check
          %p246 = pneg %p87
        $region18: #{tpu_custom_call.1} parent=11 // pred_check_branch
          %248 = sbr.rel (%p246) target = $region20
        $region19: #{tpu_custom_call.1} parent=11 // pred_region
          _
        $region20: #{tpu_custom_call.1} parent=11 // pred_fallthru
          _
        // Predicated region
        $region21: #{tpu_custom_call.1} parent=11 // pred_check
          %p249 = pneg %p108
        $region22: #{tpu_custom_call.1} parent=11 // pred_check_branch
          %251 = sbr.rel (%p249) target = $region24
        $region23: #{tpu_custom_call.1} parent=11 // pred_region
          _
        $region24: #{tpu_custom_call.1} parent=11 // pred_fallthru
          _
        // Predicated region
        $region25: #{tpu_custom_call.1} parent=11 // pred_check
          %p252 = pneg %p129
        $region26: #{tpu_custom_call.1} parent=11 // pred_check_branch
          %254 = sbr.rel (%p252) target = $region28
        $region27: #{tpu_custom_call.1} parent=11 // pred_region
          _
        $region28: #{tpu_custom_call.1} parent=11 // pred_fallthru
          _
        // Predicated region
        $region29: #{tpu_custom_call.1} parent=11 // pred_check
          %p255 = pneg %p150
        $region30: #{tpu_custom_call.1} parent=11 // pred_check_branch
          %257 = sbr.rel (%p255) target = $region32
        $region31: #{tpu_custom_call.1} parent=11 // pred_region
          %s259 = ssub.s32 512, 512
          %260 = vsyncadd [#allocation7], %s259
          %s261 = sshll.u32 [#allocation6], 4
          %s262 = int_to_ptr.vmem [resolvable:$true] %s261
          %267 = dma.hbm_to_vmem [thread:$0]  %s5, 512, %s262, [#allocation7], 256, 256, 16
        $region32: #{tpu_custom_call.1} parent=11 // pred_fallthru
          _
        // Predicated region
        $region33: #{tpu_custom_call.1} parent=11 // pred_check
          %p268 = pneg %p171
        $region34: #{tpu_custom_call.1} parent=11 // pred_check_branch
          %270 = sbr.rel (%p268) target = $region36
        $region35: #{tpu_custom_call.1} parent=11 // pred_region
          _
        $region36: #{tpu_custom_call.1} parent=11 // pred_fallthru
          _
        // Predicated region
        $region37: #{tpu_custom_call.1} parent=11 // pred_check
          %p271 = pneg %p192
        $region38: #{tpu_custom_call.1} parent=11 // pred_check_branch
          %273 = sbr.rel (%p271) target = $region40
        $region39: #{tpu_custom_call.1} parent=11 // pred_region
          _
        $region40: #{tpu_custom_call.1} parent=11 // pred_fallthru
          _
      $region12: #{tpu_custom_call.1} parent=5 // pred_fallthru
        _
      %p274 = scmp.lt.s32.totalorder %s19, 2
      // Predicated region
      $region41: #{tpu_custom_call.1} parent=5 // pred_check
        %p275 = pneg %p274
      $region42: #{tpu_custom_call.1} parent=5 // pred_check_branch
        %277 = sbr.rel (%p275) target = $region44
      $region43: #{tpu_custom_call.1} parent=5 // pred_region
        // Predicated region
        $region45: #{tpu_custom_call.1} parent=43 // pred_check
          %p278 = pneg %p39
        $region46: #{tpu_custom_call.1} parent=43 // pred_check_branch
          %280 = sbr.rel (%p278) target = $region48
        $region47: #{tpu_custom_call.1} parent=43 // pred_region
          %p281 = scmp.lt.s32.totalorder %s19, 1
          %s282 = scalar_select %p281, %s19, 1
          %s283 = smul.addr %s282, 2
          %s284 = smul.addr %s283, 8
          %s285 = scalar_lea.vmem %s0, %s284
        $region48: #{tpu_custom_call.1} parent=43 // pred_fallthru
          _
      $region44: #{tpu_custom_call.1} parent=5 // pred_fallthru
        _
      %p286 = scmp.le.s32.totalorder 1, %s19
      %p287 = scmp.lt.s32.totalorder %s19, 3
      %p288 = pnand %p286, %p287
      %p289 = pneg %p288
      // Predicated region
      $region49: #{tpu_custom_call.1} parent=5 // pred_check
        _
      $region50: #{tpu_custom_call.1} parent=5 // pred_check_branch
        %291 = sbr.rel (%p288) target = $region52
      $region51: #{tpu_custom_call.1} parent=5 // pred_region
        %s292 = ssub.s32 %s19, 1
        // Predicated region
        $region53: #{tpu_custom_call.1} parent=51 // pred_check
          %p293 = pneg %p66
        $region54: #{tpu_custom_call.1} parent=51 // pred_check_branch
          %295 = sbr.rel (%p293) target = $region56
        $region55: #{tpu_custom_call.1} parent=51 // pred_region
          %296 = dma.done [#allocation4], 1024
        $region56: #{tpu_custom_call.1} parent=51 // pred_fallthru
          _
        // Predicated region
        $region57: #{tpu_custom_call.1} parent=51 // pred_check
          %p297 = pneg %p150
        $region58: #{tpu_custom_call.1} parent=51 // pred_check_branch
          %299 = sbr.rel (%p297) target = $region60
        $region59: #{tpu_custom_call.1} parent=51 // pred_region
          %300 = dma.done [#allocation7], 512
        $region60: #{tpu_custom_call.1} parent=51 // pred_fallthru
          _
        %p301 = scmp.lt.s32.totalorder %s24, 1
        %s302 = scalar_select %p301, %s24, 1
        %s303 = smul.addr %s302, 2
        %s304 = smul.addr %s303, 8
        %s305 = scalar_lea.vmem %s0, %s304
        %p306 = pneg %p45
        %p307 = pneg %p42
        %p308 = pneg %p66
        %p309 = pneg %p63
        %p310 = pneg %p87
        %p311 = pneg %p84
        %p312 = pneg %p108
        %p313 = pneg %p105
        %p314 = pneg %p129
        %p315 = pneg %p126
        %p316 = pneg %p150
        %p317 = pneg %p147
        %p318 = pneg %p171
        %p319 = pneg %p168
        %p320 = pneg %p192
        %p321 = pneg %p189
        %p322 = pneg %p218
        %p323 = pneg %p215
        %s324 = sand.u32 %s205, 1
        %s325 = scalar_lea.sflag [#allocation5], %s324
        %s326 = sand.u32 %s205, 1
        %s327 = smul.addr %s326, 16
        %s328 = scalar_lea.vmem [#allocation8], %s327
        %p329 = scmp.lt.s32.totalorder %s24, 1
        %s330 = scalar_select %p329, %s24, 1
        %s331 = smul.addr %s330, 2
        %s332 = smul.addr %s331, 8
        %s333 = scalar_lea.vmem %s0, %s332
        %v335 = vld [vmem:[%s333] sm:$0xff]
        %v336 = vld [vmem:[%s333 + $0x8] sm:$0xff]
        %v337 = vld [vmem:[#allocation3] sm:$0xff]
        %v338 = vld [vmem:[#allocation3 + $0x8] sm:$0xff]
        %v339 = vld [vmem:[#allocation3 + $0x10] sm:$0xff]
        %v340 = vld [vmem:[#allocation3 + $0x18] sm:$0xff]
        %v341 = vld [vmem:[#allocation3 + $0x20] sm:$0xff]
        %v342 = vld [vmem:[#allocation3 + $0x28] sm:$0xff]
        %v343 = vld [vmem:[#allocation3 + $0x30] sm:$0x1]
        %v344 = vld [vmem:[#allocation3 + $0x38] sm:$0x1]
        %v345 = vld [vmem:[%s2] sm:$0xff]
        %348 = vrot.lane.b32.xlu0 %v335, 34
        %v349 = vpop.permute.xlu0 %348
        %350 = vrot.lane.b32.xlu0 %v336, 34
        %v351 = vpop.permute.xlu0 %350
        %vm352 = vcmask 277504
        %v353 = vsel %vm352, %v349, %v351
        %v356 = vsel %vm352, 0.0, %v349
        %v357 = vlaneseq
        %v358 = vshrl.u32 %v357, 7
        %v359 = vsub.s32 0, %v358
        %v360 = vrot.slane %v337, %v359
        %v361 = vlaneseq
        %v362 = vshrl.u32 %v361, 7
        %v363 = vsub.s32 0, %v362
        %v364 = vrot.slane %v338, %v363
        %v365 = vmul.f32 %v356, %v360
        %v366 = vmul.f32 %v353, %v364
        %368 = vset.pattern.permute.xlu0 0
        %369 = vperm.xlu0 %368, %v345
        %v370 = vpop.permute.xlu0 %369
        %v372 = vmul.f32 %v365, %v370
        %v373 = vmul.f32 %v366, %v370
        %v374 = vadd.f32 %v372, 0.0
        %v375 = vadd.f32 %v373, 0.0
        %376 = vrot.lane.b32.xlu0 %v335, 33
        %v377 = vpop.permute.xlu0 %376
        %378 = vrot.lane.b32.xlu0 %v336, 33
        %v379 = vpop.permute.xlu0 %378
        %vm380 = vcmask 269312
        %v381 = vsel %vm380, %v377, %v379
        %v384 = vsel %vm380, 0.0, %v377
        %v385 = vlaneseq
        %v386 = vshrl.u32 %v385, 7
        %v387 = vsub.s32 1, %v386
        %v388 = vrot.slane %v337, %v387
        %v389 = vlaneseq
        %v390 = vshrl.u32 %v389, 7
        %v391 = vsub.s32 1, %v390
        %v392 = vrot.slane %v338, %v391
        %v393 = vmul.f32 %v384, %v388
        %v394 = vmul.f32 %v381, %v392
        %395 = vset.pattern.permute.xlu0 1
        %396 = vperm.xlu0 %395, %v345
        %v397 = vpop.permute.xlu0 %396
        %v399 = vmul.f32 %v393, %v397
        %v400 = vmul.f32 %v394, %v397
        %v401 = vadd.f32 %v374, %v399
        %v402 = vadd.f32 %v375, %v400
        %403 = vrot.lane.b32.xlu0 %v335, 32
        %v404 = vpop.permute.xlu0 %403
        %405 = vrot.lane.b32.xlu0 %v336, 32
        %v406 = vpop.permute.xlu0 %405
        %vm407 = vcmask 261120
        %v408 = vsel %vm407, %v404, %v406
        %v411 = vsel %vm407, 0.0, %v404
        %v412 = vlaneseq
        %v413 = vshrl.u32 %v412, 7
        %v414 = vsub.s32 2, %v413
        %v415 = vrot.slane %v337, %v414
        %v416 = vlaneseq
        %v417 = vshrl.u32 %v416, 7
        %v418 = vsub.s32 2, %v417
        %v419 = vrot.slane %v338, %v418
        %v420 = vmul.f32 %v411, %v415
        %v421 = vmul.f32 %v408, %v419
        %422 = vset.pattern.permute.xlu0 2
        %423 = vperm.xlu0 %422, %v345
        %v424 = vpop.permute.xlu0 %423
        %v426 = vmul.f32 %v420, %v424
        %v427 = vmul.f32 %v421, %v424
        %v428 = vadd.f32 %v401, %v426
        %v429 = vadd.f32 %v402, %v427
        %430 = vrot.lane.b32.xlu0 %v335, 31
        %v431 = vpop.permute.xlu0 %430
        %432 = vrot.lane.b32.xlu0 %v336, 31
        %v433 = vpop.permute.xlu0 %432
        %vm434 = vcmask 252928
        %v435 = vsel %vm434, %v431, %v433
        %v438 = vsel %vm434, 0.0, %v431
        %v439 = vlaneseq
        %v440 = vshrl.u32 %v439, 7
        %v441 = vsub.s32 3, %v440
        %v442 = vrot.slane %v337, %v441
        %v443 = vlaneseq
        %v444 = vshrl.u32 %v443, 7
        %v445 = vsub.s32 3, %v444
        %v446 = vrot.slane %v338, %v445
        %v447 = vmul.f32 %v438, %v442
        %v448 = vmul.f32 %v435, %v446
        %449 = vset.pattern.permute.xlu0 3
        %450 = vperm.xlu0 %449, %v345
        %v451 = vpop.permute.xlu0 %450
        %v453 = vmul.f32 %v447, %v451
        %v454 = vmul.f32 %v448, %v451
        %v455 = vadd.f32 %v428, %v453
        %v456 = vadd.f32 %v429, %v454
        %457 = vrot.lane.b32.xlu0 %v335, 30
        %v458 = vpop.permute.xlu0 %457
        %459 = vrot.lane.b32.xlu0 %v336, 30
        %v460 = vpop.permute.xlu0 %459
        %vm461 = vcmask 244736
        %v462 = vsel %vm461, %v458, %v460
        %v465 = vsel %vm461, 0.0, %v458
        %v466 = vlaneseq
        %v467 = vshrl.u32 %v466, 7
        %v468 = vsub.s32 4, %v467
        %v469 = vrot.slane %v337, %v468
        %v470 = vlaneseq
        %v471 = vshrl.u32 %v470, 7
        %v472 = vsub.s32 4, %v471
        %v473 = vrot.slane %v338, %v472
        %v474 = vmul.f32 %v465, %v469
        %v475 = vmul.f32 %v462, %v473
        %476 = vset.pattern.permute.xlu0 4
        %477 = vperm.xlu0 %476, %v345
        %v478 = vpop.permute.xlu0 %477
        %v480 = vmul.f32 %v474, %v478
        %v481 = vmul.f32 %v475, %v478
        %v482 = vadd.f32 %v455, %v480
        %v483 = vadd.f32 %v456, %v481
        %484 = vrot.lane.b32.xlu0 %v335, 18
        %v485 = vpop.permute.xlu0 %484
        %486 = vrot.lane.b32.xlu0 %v336, 18
        %v487 = vpop.permute.xlu0 %486
        %vm488 = vcmask 146432
        %v489 = vsel %vm488, %v485, %v487
        %v492 = vsel %vm488, 0.0, %v485
        %v493 = vlaneseq
        %v494 = vshrl.u32 %v493, 7
        %v495 = vsub.s32 5, %v494
        %v496 = vrot.slane %v337, %v495
        %v497 = vlaneseq
        %v498 = vshrl.u32 %v497, 7
        %v499 = vsub.s32 5, %v498
        %v500 = vrot.slane %v338, %v499
        %v501 = vmul.f32 %v492, %v496
        %v502 = vmul.f32 %v489, %v500
        %503 = vset.pattern.permute.xlu0 5
        %504 = vperm.xlu0 %503, %v345
        %v505 = vpop.permute.xlu0 %504
        %v507 = vmul.f32 %v501, %v505
        %v508 = vmul.f32 %v502, %v505
        %v509 = vadd.f32 %v482, %v507
        %v510 = vadd.f32 %v483, %v508
        %511 = vrot.lane.b32.xlu0 %v335, 17
        %v512 = vpop.permute.xlu0 %511
        %513 = vrot.lane.b32.xlu0 %v336, 17
        %v514 = vpop.permute.xlu0 %513
        %vm515 = vcmask 138240
        %v516 = vsel %vm515, %v512, %v514
        %v519 = vsel %vm515, 0.0, %v512
        %v520 = vlaneseq
        %v521 = vshrl.u32 %v520, 7
        %v522 = vsub.s32 6, %v521
        %v523 = vrot.slane %v337, %v522
        %v524 = vlaneseq
        %v525 = vshrl.u32 %v524, 7
        %v526 = vsub.s32 6, %v525
        %v527 = vrot.slane %v338, %v526
        %v528 = vmul.f32 %v519, %v523
        %v529 = vmul.f32 %v516, %v527
        %530 = vset.pattern.permute.xlu0 6
        %531 = vperm.xlu0 %530, %v345
        %v532 = vpop.permute.xlu0 %531
        %v534 = vmul.f32 %v528, %v532
        %v535 = vmul.f32 %v529, %v532
        %v536 = vadd.f32 %v509, %v534
        %v537 = vadd.f32 %v510, %v535
        %538 = vrot.lane.b32.xlu0 %v335, 16
        %v539 = vpop.permute.xlu0 %538
        %540 = vrot.lane.b32.xlu0 %v336, 16
        %v541 = vpop.permute.xlu0 %540
        %vm542 = vcmask 130048
        %v543 = vsel %vm542, %v539, %v541
        %v546 = vsel %vm542, 0.0, %v539
        %v547 = vlaneseq
        %v548 = vshrl.u32 %v547, 7
        %v549 = vsub.s32 7, %v548
        %v550 = vrot.slane %v337, %v549
        %v551 = vlaneseq
        %v552 = vshrl.u32 %v551, 7
        %v553 = vsub.s32 7, %v552
        %v554 = vrot.slane %v338, %v553
        %v555 = vmul.f32 %v546, %v550
        %v556 = vmul.f32 %v543, %v554
        %557 = vset.pattern.permute.xlu0 7
        %558 = vperm.xlu0 %557, %v345
        %v559 = vpop.permute.xlu0 %558
        %v561 = vmul.f32 %v555, %v559
        %v562 = vmul.f32 %v556, %v559
        %v563 = vadd.f32 %v536, %v561
        %v564 = vadd.f32 %v537, %v562
        %565 = vrot.lane.b32.xlu0 %v335, 15
        %v566 = vpop.permute.xlu0 %565
        %567 = vrot.lane.b32.xlu0 %v336, 15
        %v568 = vpop.permute.xlu0 %567
        %vm569 = vcmask 121856
        %v570 = vsel %vm569, %v566, %v568
        %v573 = vsel %vm569, 0.0, %v566
        %v574 = vlaneseq
        %v575 = vshrl.u32 %v574, 7
        %v576 = vsub.s32 0, %v575
        %v577 = vrot.slane %v339, %v576
        %v578 = vlaneseq
        %v579 = vshrl.u32 %v578, 7
        %v580 = vsub.s32 0, %v579
        %v581 = vrot.slane %v340, %v580
        %v582 = vmul.f32 %v573, %v577
        %v583 = vmul.f32 %v570, %v581
        %584 = vset.pattern.permute.xlu0 8
        %585 = vperm.xlu0 %584, %v345
        %v586 = vpop.permute.xlu0 %585
        %v588 = vmul.f32 %v582, %v586
        %v589 = vmul.f32 %v583, %v586
        %v590 = vadd.f32 %v563, %v588
        %v591 = vadd.f32 %v564, %v589
        %592 = vrot.lane.b32.xlu0 %v335, 14
        %v593 = vpop.permute.xlu0 %592
        %594 = vrot.lane.b32.xlu0 %v336, 14
        %v595 = vpop.permute.xlu0 %594
        %vm596 = vcmask 113664
        %v597 = vsel %vm596, %v593, %v595
        %v600 = vsel %vm596, 0.0, %v593
        %v601 = vlaneseq
        %v602 = vshrl.u32 %v601, 7
        %v603 = vsub.s32 1, %v602
        %v604 = vrot.slane %v339, %v603
        %v605 = vlaneseq
        %v606 = vshrl.u32 %v605, 7
        %v607 = vsub.s32 1, %v606
        %v608 = vrot.slane %v340, %v607
        %v609 = vmul.f32 %v600, %v604
        %v610 = vmul.f32 %v597, %v608
        %611 = vset.pattern.permute.xlu0 9
        %612 = vperm.xlu0 %611, %v345
        %v613 = vpop.permute.xlu0 %612
        %v615 = vmul.f32 %v609, %v613
        %v616 = vmul.f32 %v610, %v613
        %v617 = vadd.f32 %v590, %v615
        %v618 = vadd.f32 %v591, %v616
        %619 = vrot.lane.b32.xlu0 %v335, 2
        %v620 = vpop.permute.xlu0 %619
        %621 = vrot.lane.b32.xlu0 %v336, 2
        %v622 = vpop.permute.xlu0 %621
        %vm623 = vcmask 15360
        %v624 = vsel %vm623, %v620, %v622
        %v627 = vsel %vm623, 0.0, %v620
        %v628 = vlaneseq
        %v629 = vshrl.u32 %v628, 7
        %v630 = vsub.s32 2, %v629
        %v631 = vrot.slane %v339, %v630
        %v632 = vlaneseq
        %v633 = vshrl.u32 %v632, 7
        %v634 = vsub.s32 2, %v633
        %v635 = vrot.slane %v340, %v634
        %v636 = vmul.f32 %v627, %v631
        %v637 = vmul.f32 %v624, %v635
        %638 = vset.pattern.permute.xlu0 10
        %639 = vperm.xlu0 %638, %v345
        %v640 = vpop.permute.xlu0 %639
        %v642 = vmul.f32 %v636, %v640
        %v643 = vmul.f32 %v637, %v640
        %v644 = vadd.f32 %v617, %v642
        %v645 = vadd.f32 %v618, %v643
        %646 = vrot.lane.b32.xlu0 %v335, 1
        %v647 = vpop.permute.xlu0 %646
        %648 = vrot.lane.b32.xlu0 %v336, 1
        %v649 = vpop.permute.xlu0 %648
        %vm650 = vcmask 7168
        %v651 = vsel %vm650, %v647, %v649
        %v654 = vsel %vm650, 0.0, %v647
        %v655 = vlaneseq
        %v656 = vshrl.u32 %v655, 7
        %v657 = vsub.s32 3, %v656
        %v658 = vrot.slane %v339, %v657
        %v659 = vlaneseq
        %v660 = vshrl.u32 %v659, 7
        %v661 = vsub.s32 3, %v660
        %v662 = vrot.slane %v340, %v661
        %v663 = vmul.f32 %v654, %v658
        %v664 = vmul.f32 %v651, %v662
        %665 = vset.pattern.permute.xlu0 11
        %666 = vperm.xlu0 %665, %v345
        %v667 = vpop.permute.xlu0 %666
        %v669 = vmul.f32 %v663, %v667
        %v670 = vmul.f32 %v664, %v667
        %v671 = vadd.f32 %v644, %v669
        %v672 = vadd.f32 %v645, %v670
        %v673 = vlaneseq
        %v674 = vshrl.u32 %v673, 7
        %v675 = vsub.s32 4, %v674
        %v676 = vrot.slane %v339, %v675
        %v677 = vlaneseq
        %v678 = vshrl.u32 %v677, 7
        %v679 = vsub.s32 4, %v678
        %v680 = vrot.slane %v340, %v679
        %v681 = vmul.f32 %v335, %v676
        %v682 = vmul.f32 %v336, %v680
        %683 = vset.pattern.permute.xlu0 12
        %684 = vperm.xlu0 %683, %v345
        %v685 = vpop.permute.xlu0 %684
        %v687 = vmul.f32 %v681, %v685
        %v688 = vmul.f32 %v682, %v685
        %v689 = vadd.f32 %v671, %v687
        %v690 = vadd.f32 %v672, %v688
        %691 = vrot.lane.b32.xlu0 %v335, 127
        %v692 = vpop.permute.xlu0 %691
        %693 = vrot.lane.b32.xlu0 %v336, 127
        %v694 = vpop.permute.xlu0 %693
        %vm695 = vcmask 1039360
        %v696 = vsel %vm695, %v692, %v694
        %v699 = vsel %vm695, %v694, 0.0
        %v700 = vlaneseq
        %v701 = vshrl.u32 %v700, 7
        %v702 = vsub.s32 5, %v701
        %v703 = vrot.slane %v339, %v702
        %v704 = vlaneseq
        %v705 = vshrl.u32 %v704, 7
        %v706 = vsub.s32 5, %v705
        %v707 = vrot.slane %v340, %v706
        %v708 = vmul.f32 %v696, %v703
        %v709 = vmul.f32 %v699, %v707
        %710 = vset.pattern.permute.xlu0 13
        %711 = vperm.xlu0 %710, %v345
        %v712 = vpop.permute.xlu0 %711
        %v714 = vmul.f32 %v708, %v712
        %v715 = vmul.f32 %v709, %v712
        %v716 = vadd.f32 %v689, %v714
        %v717 = vadd.f32 %v690, %v715
        %718 = vrot.lane.b32.xlu0 %v335, 126
        %v719 = vpop.permute.xlu0 %718
        %720 = vrot.lane.b32.xlu0 %v336, 126
        %v721 = vpop.permute.xlu0 %720
        %vm722 = vcmask 1031168
        %v723 = vsel %vm722, %v719, %v721
        %v726 = vsel %vm722, %v721, 0.0
        %v727 = vlaneseq
        %v728 = vshrl.u32 %v727, 7
        %v729 = vsub.s32 6, %v728
        %v730 = vrot.slane %v339, %v729
        %v731 = vlaneseq
        %v732 = vshrl.u32 %v731, 7
        %v733 = vsub.s32 6, %v732
        %v734 = vrot.slane %v340, %v733
        %v735 = vmul.f32 %v723, %v730
        %v736 = vmul.f32 %v726, %v734
        %737 = vset.pattern.permute.xlu0 14
        %738 = vperm.xlu0 %737, %v345
        %v739 = vpop.permute.xlu0 %738
        %v741 = vmul.f32 %v735, %v739
        %v742 = vmul.f32 %v736, %v739
        %v743 = vadd.f32 %v716, %v741
        %v744 = vadd.f32 %v717, %v742
        %745 = vrot.lane.b32.xlu0 %v335, 114
        %v746 = vpop.permute.xlu0 %745
        %747 = vrot.lane.b32.xlu0 %v336, 114
        %v748 = vpop.permute.xlu0 %747
        %vm749 = vcmask 932864
        %v750 = vsel %vm749, %v746, %v748
        %v753 = vsel %vm749, %v748, 0.0
        %v754 = vlaneseq
        %v755 = vshrl.u32 %v754, 7
        %v756 = vsub.s32 7, %v755
        %v757 = vrot.slane %v339, %v756
        %v758 = vlaneseq
        %v759 = vshrl.u32 %v758, 7
        %v760 = vsub.s32 7, %v759
        %v761 = vrot.slane %v340, %v760
        %v762 = vmul.f32 %v750, %v757
        %v763 = vmul.f32 %v753, %v761
        %764 = vset.pattern.permute.xlu0 15
        %765 = vperm.xlu0 %764, %v345
        %v766 = vpop.permute.xlu0 %765
        %v768 = vmul.f32 %v762, %v766
        %v769 = vmul.f32 %v763, %v766
        %v770 = vadd.f32 %v743, %v768
        %v771 = vadd.f32 %v744, %v769
        %772 = vrot.lane.b32.xlu0 %v335, 113
        %v773 = vpop.permute.xlu0 %772
        %774 = vrot.lane.b32.xlu0 %v336, 113
        %v775 = vpop.permute.xlu0 %774
        %vm776 = vcmask 924672
        %v777 = vsel %vm776, %v773, %v775
        %v780 = vsel %vm776, %v775, 0.0
        %v781 = vlaneseq
        %v782 = vshrl.u32 %v781, 7
        %v783 = vsub.s32 0, %v782
        %v784 = vrot.slane %v341, %v783
        %v785 = vlaneseq
        %v786 = vshrl.u32 %v785, 7
        %v787 = vsub.s32 0, %v786
        %v788 = vrot.slane %v342, %v787
        %v789 = vmul.f32 %v777, %v784
        %v790 = vmul.f32 %v780, %v788
        %791 = vset.pattern.permute.xlu0 16
        %792 = vperm.xlu0 %791, %v345
        %v793 = vpop.permute.xlu0 %792
        %v795 = vmul.f32 %v789, %v793
        %v796 = vmul.f32 %v790, %v793
        %v797 = vadd.f32 %v770, %v795
        %v798 = vadd.f32 %v771, %v796
        %799 = vrot.lane.b32.xlu0 %v335, 112
        %v800 = vpop.permute.xlu0 %799
        %801 = vrot.lane.b32.xlu0 %v336, 112
        %v802 = vpop.permute.xlu0 %801
        %vm803 = vcmask 916480
        %v804 = vsel %vm803, %v800, %v802
        %v807 = vsel %vm803, %v802, 0.0
        %v808 = vlaneseq
        %v809 = vshrl.u32 %v808, 7
        %v810 = vsub.s32 1, %v809
        %v811 = vrot.slane %v341, %v810
        %v812 = vlaneseq
        %v813 = vshrl.u32 %v812, 7
        %v814 = vsub.s32 1, %v813
        %v815 = vrot.slane %v342, %v814
        %v816 = vmul.f32 %v804, %v811
        %v817 = vmul.f32 %v807, %v815
        %818 = vset.pattern.permute.xlu0 17
        %819 = vperm.xlu0 %818, %v345
        %v820 = vpop.permute.xlu0 %819
        %v822 = vmul.f32 %v816, %v820
        %v823 = vmul.f32 %v817, %v820
        %v824 = vadd.f32 %v797, %v822
        %v825 = vadd.f32 %v798, %v823
        %826 = vrot.lane.b32.xlu0 %v335, 111
        %v827 = vpop.permute.xlu0 %826
        %828 = vrot.lane.b32.xlu0 %v336, 111
        %v829 = vpop.permute.xlu0 %828
        %vm830 = vcmask 908288
        %v831 = vsel %vm830, %v827, %v829
        %v834 = vsel %vm830, %v829, 0.0
        %v835 = vlaneseq
        %v836 = vshrl.u32 %v835, 7
        %v837 = vsub.s32 2, %v836
        %v838 = vrot.slane %v341, %v837
        %v839 = vlaneseq
        %v840 = vshrl.u32 %v839, 7
        %v841 = vsub.s32 2, %v840
        %v842 = vrot.slane %v342, %v841
        %v843 = vmul.f32 %v831, %v838
        %v844 = vmul.f32 %v834, %v842
        %845 = vset.pattern.permute.xlu0 18
        %846 = vperm.xlu0 %845, %v345
        %v847 = vpop.permute.xlu0 %846
        %v849 = vmul.f32 %v843, %v847
        %v850 = vmul.f32 %v844, %v847
        %v851 = vadd.f32 %v824, %v849
        %v852 = vadd.f32 %v825, %v850
        %853 = vrot.lane.b32.xlu0 %v335, 110
        %v854 = vpop.permute.xlu0 %853
        %855 = vrot.lane.b32.xlu0 %v336, 110
        %v856 = vpop.permute.xlu0 %855
        %vm857 = vcmask 900096
        %v858 = vsel %vm857, %v854, %v856
        %v861 = vsel %vm857, %v856, 0.0
        %v862 = vlaneseq
        %v863 = vshrl.u32 %v862, 7
        %v864 = vsub.s32 3, %v863
        %v865 = vrot.slane %v341, %v864
        %v866 = vlaneseq
        %v867 = vshrl.u32 %v866, 7
        %v868 = vsub.s32 3, %v867
        %v869 = vrot.slane %v342, %v868
        %v870 = vmul.f32 %v858, %v865
        %v871 = vmul.f32 %v861, %v869
        %872 = vset.pattern.permute.xlu0 19
        %873 = vperm.xlu0 %872, %v345
        %v874 = vpop.permute.xlu0 %873
        %v876 = vmul.f32 %v870, %v874
        %v877 = vmul.f32 %v871, %v874
        %v878 = vadd.f32 %v851, %v876
        %v879 = vadd.f32 %v852, %v877
        %880 = vrot.lane.b32.xlu0 %v335, 98
        %v881 = vpop.permute.xlu0 %880
        %882 = vrot.lane.b32.xlu0 %v336, 98
        %v883 = vpop.permute.xlu0 %882
        %vm884 = vcmask 801792
        %v885 = vsel %vm884, %v881, %v883
        %v888 = vsel %vm884, %v883, 0.0
        %v889 = vlaneseq
        %v890 = vshrl.u32 %v889, 7
        %v891 = vsub.s32 4, %v890
        %v892 = vrot.slane %v341, %v891
        %v893 = vlaneseq
        %v894 = vshrl.u32 %v893, 7
        %v895 = vsub.s32 4, %v894
        %v896 = vrot.slane %v342, %v895
        %v897 = vmul.f32 %v885, %v892
        %v898 = vmul.f32 %v888, %v896
        %899 = vset.pattern.permute.xlu0 20
        %900 = vperm.xlu0 %899, %v345
        %v901 = vpop.permute.xlu0 %900
        %v903 = vmul.f32 %v897, %v901
        %v904 = vmul.f32 %v898, %v901
        %v905 = vadd.f32 %v878, %v903
        %v906 = vadd.f32 %v879, %v904
        %907 = vrot.lane.b32.xlu0 %v335, 97
        %v908 = vpop.permute.xlu0 %907
        %909 = vrot.lane.b32.xlu0 %v336, 97
        %v910 = vpop.permute.xlu0 %909
        %vm911 = vcmask 793600
        %v912 = vsel %vm911, %v908, %v910
        %v915 = vsel %vm911, %v910, 0.0
        %v916 = vlaneseq
        %v917 = vshrl.u32 %v916, 7
        %v918 = vsub.s32 5, %v917
        %v919 = vrot.slane %v341, %v918
        %v920 = vlaneseq
        %v921 = vshrl.u32 %v920, 7
        %v922 = vsub.s32 5, %v921
        %v923 = vrot.slane %v342, %v922
        %v924 = vmul.f32 %v912, %v919
        %v925 = vmul.f32 %v915, %v923
        %926 = vset.pattern.permute.xlu0 21
        %927 = vperm.xlu0 %926, %v345
        %v928 = vpop.permute.xlu0 %927
        %v930 = vmul.f32 %v924, %v928
        %v931 = vmul.f32 %v925, %v928
        %v932 = vadd.f32 %v905, %v930
        %v933 = vadd.f32 %v906, %v931
        %934 = vrot.lane.b32.xlu0 %v335, 96
        %v935 = vpop.permute.xlu0 %934
        %936 = vrot.lane.b32.xlu0 %v336, 96
        %v937 = vpop.permute.xlu0 %936
        %vm938 = vcmask 785408
        %v939 = vsel %vm938, %v935, %v937
        %v942 = vsel %vm938, %v937, 0.0
        %v943 = vlaneseq
        %v944 = vshrl.u32 %v943, 7
        %v945 = vsub.s32 6, %v944
        %v946 = vrot.slane %v341, %v945
        %v947 = vlaneseq
        %v948 = vshrl.u32 %v947, 7
        %v949 = vsub.s32 6, %v948
        %v950 = vrot.slane %v342, %v949
        %v951 = vmul.f32 %v939, %v946
        %v952 = vmul.f32 %v942, %v950
        %953 = vset.pattern.permute.xlu0 22
        %954 = vperm.xlu0 %953, %v345
        %v955 = vpop.permute.xlu0 %954
        %v957 = vmul.f32 %v951, %v955
        %v958 = vmul.f32 %v952, %v955
        %v959 = vadd.f32 %v932, %v957
        %v960 = vadd.f32 %v933, %v958
        %961 = vrot.lane.b32.xlu0 %v335, 95
        %v962 = vpop.permute.xlu0 %961
        %963 = vrot.lane.b32.xlu0 %v336, 95
        %v964 = vpop.permute.xlu0 %963
        %vm965 = vcmask 777216
        %v966 = vsel %vm965, %v962, %v964
        %v969 = vsel %vm965, %v964, 0.0
        %v970 = vlaneseq
        %v971 = vshrl.u32 %v970, 7
        %v972 = vsub.s32 7, %v971
        %v973 = vrot.slane %v341, %v972
        %v974 = vlaneseq
        %v975 = vshrl.u32 %v974, 7
        %v976 = vsub.s32 7, %v975
        %v977 = vrot.slane %v342, %v976
        %v978 = vmul.f32 %v966, %v973
        %v979 = vmul.f32 %v969, %v977
        %980 = vset.pattern.permute.xlu0 23
        %981 = vperm.xlu0 %980, %v345
        %v982 = vpop.permute.xlu0 %981
        %v984 = vmul.f32 %v978, %v982
        %v985 = vmul.f32 %v979, %v982
        %v986 = vadd.f32 %v959, %v984
        %v987 = vadd.f32 %v960, %v985
        %988 = vrot.lane.b32.xlu0 %v335, 94
        %v989 = vpop.permute.xlu0 %988
        %990 = vrot.lane.b32.xlu0 %v336, 94
        %v991 = vpop.permute.xlu0 %990
        %vm992 = vcmask 769024
        %v993 = vsel %vm992, %v989, %v991
        %v996 = vsel %vm992, %v991, 0.0
        %v997 = vlaneseq
        %v998 = vshrl.u32 %v997, 7
        %v999 = vsub.s32 0, %v998
        %v1000 = vrot.slane %v343, %v999
        %v1001 = vlaneseq
        %v1002 = vshrl.u32 %v1001, 7
        %v1003 = vsub.s32 0, %v1002
        %v1004 = vrot.slane %v344, %v1003
        %v1005 = vmul.f32 %v993, %v1000
        %v1006 = vmul.f32 %v996, %v1004
        %1007 = vset.pattern.permute.xlu0 24
        %1008 = vperm.xlu0 %1007, %v345
        %v1009 = vpop.permute.xlu0 %1008
        %v1011 = vmul.f32 %v1005, %v1009
        %v1012 = vmul.f32 %v1006, %v1009
        %v1013 = vadd.f32 %v986, %v1011
        %v1014 = vadd.f32 %v987, %v1012
        %v1015 = vld [vmem:[%s3] sm:$0xff]
        %v1016 = vld [vmem:[%s3 + $0x8] sm:$0xff]
        %v1017 = vld [vmem:[%s4] sm:$0xff]
        %v1018 = vld [vmem:[%s4 + $0x8] sm:$0xff]
        %1020 = vset.pattern.permute.xlu0 0
        %1021 = vperm.xlu0 %1020, %v1017
        %v1022 = vpop.permute.xlu0 %1021
        %1025 = vset.pattern.permute.xlu0 0
        %1026 = vperm.xlu0 %1025, %v1018
        %v1027 = vpop.permute.xlu0 %1026
        %vm1029 = vcmask 64512
        %v1031 = vsel %vm1029, %v1015, 0
        %v1034 = vsel %vm1029, %v1016, 0
        %1036 = vmatprep.subr.mxu0 0.0
        %1037 = vmatpush1.msra.mxu0 0.0
        %1038 = vmatprep.subr.mxu0 0.0
        %1039 = vmatpush1.msra.mxu0 0.0
        %1040 = vmatprep.subr.mxu0 0.0
        %1041 = vmatpush1.msra.mxu0 0.0
        %1042 = vmatprep.subr.mxu0 0.0
        %1043 = vmatpush1.msra.mxu0 0.0
        %1044 = vmatprep.subr.mxu0 0.0
        %1045 = vmatpush1.msra.mxu0 0.0
        %1046 = vmatprep.subr.mxu0 0.0
        %1047 = vmatpush1.msra.mxu0 0.0
        %1048 = vmatprep.subr.mxu0 0.0
        %1049 = vmatpush1.msra.mxu0 0.0
        %1050 = vmatprep.subr.mxu0 0.0
        %1051 = vmatpush1.msra.mxu0 0.0
        %1052 = vmatprep.subr.mxu0 0.0
        %1053 = vmatpush1.msra.mxu0 0.0
        %1054 = vmatprep.subr.mxu0 0.0
        %1055 = vmatpush1.msra.mxu0 0.0
        %1056 = vmatprep.subr.mxu0 0.0
        %1057 = vmatpush1.msra.mxu0 0.0
        %1058 = vmatprep.subr.mxu0 0.0
        %1059 = vmatpush1.msra.mxu0 0.0
        %1060 = vmatprep.subr.mxu0 0.0
        %1061 = vmatpush1.msra.mxu0 0.0
        %1062 = vmatprep.subr.mxu0 0.0
        %1063 = vmatpush1.msra.mxu0 0.0
        %1064 = vmatprep.subr.mxu0 0.0
        %1065 = vmatpush1.msra.mxu0 0.0
        %1066 = vmatprep.subr.mxu0 %v1014
        %1067 = vmatpush1.msra.mxu0 %v1013
        %1068 = vmatprep.subr.mxu0 0.0
        %1069 = vmatpush2.msra.mxu0 0.0
        %1070 = vmatprep.subr.mxu0 0.0
        %1071 = vmatpush2.msra.mxu0 0.0
        %1072 = vmatprep.subr.mxu0 0.0
        %1073 = vmatpush2.msra.mxu0 0.0
        %1074 = vmatprep.subr.mxu0 0.0
        %1075 = vmatpush2.msra.mxu0 0.0
        %1076 = vmatprep.subr.mxu0 0.0
        %1077 = vmatpush2.msra.mxu0 0.0
        %1078 = vmatprep.subr.mxu0 0.0
        %1079 = vmatpush2.msra.mxu0 0.0
        %1080 = vmatprep.subr.mxu0 0.0
        %1081 = vmatpush2.msra.mxu0 0.0
        %1082 = vmatprep.subr.mxu0 0.0
        %1083 = vmatpush2.msra.mxu0 0.0
        %1084 = vmatprep.subr.mxu0 0.0
        %1085 = vmatpush2.msra.mxu0 0.0
        %1086 = vmatprep.subr.mxu0 0.0
        %1087 = vmatpush2.msra.mxu0 0.0
        %1088 = vmatprep.subr.mxu0 0.0
        %1089 = vmatpush2.msra.mxu0 0.0
        %1090 = vmatprep.subr.mxu0 0.0
        %1091 = vmatpush2.msra.mxu0 0.0
        %1092 = vmatprep.subr.mxu0 0.0
        %1093 = vmatpush2.msra.mxu0 0.0
        %1094 = vmatprep.subr.mxu0 0.0
        %1095 = vmatpush2.msra.mxu0 0.0
        %1096 = vmatprep.subr.mxu0 0.0
        %1097 = vmatpush2.msra.mxu0 0.0
        %1098 = vmatprep.subr.mxu0 0.0
        %1099 = vmatpush2.msra.mxu0 0.0
        %1100 = vmatprep.mubr.f32.mxu0 0.0
        %1101 = vmatmul.mubr.f32.gmra.mxu0 %v1031
        %v1102 = vpop.f32.mrf.mxu0
        %v1103 = vadd.f32 %v1022, %v1102
        %v1104 = vpop.f32.mrf.mxu0
        %v1105 = vadd.f32 %v1022, %v1104
        %1106 = vmatprep.mubr.f32.mxu0 0.0
        %1107 = vmatmul.mubr.f32.gmra.mxu0 %v1034
        %v1108 = vpop.f32.mrf.mxu0
        %v1109 = vadd.f32 %v1027, %v1108
        %v1110 = vpop.f32.mrf.mxu0
        %v1111 = vadd.f32 %v1027, %v1110
        %1112 = vdwg.mxu0
        %v1113 = vmax.f32 %v1103, 0.0
        %v1114 = vmax.f32 %v1105, 0.0
        %v1115 = vmax.f32 %v1109, 0.0
        %v1116 = vmax.f32 %v1111, 0.0
        %1121 = vrot.lane.b32.xlu0 %v1113, 34
        %v1122 = vpop.permute.xlu0 %1121
        %1123 = vrot.lane.b32.xlu0 %v1114, 34
        %v1124 = vpop.permute.xlu0 %1123
        %1125 = vrot.lane.b32.xlu0 %v1115, 34
        %v1126 = vpop.permute.xlu0 %1125
        %1127 = vrot.lane.b32.xlu0 %v1116, 34
        %v1128 = vpop.permute.xlu0 %1127
        %v1129 = vsel %vm352, %v1122, %v1124
        %v1130 = vsel %vm352, %v1126, %v1128
        %v1135 = vsel %vm352, 0.0, %v1122
        %v1136 = vsel %vm352, 0.0, %v1126
        %v1137 = vmul.f32 %v1135, %v360
        %v1138 = vmul.f32 %v1129, %v364
        %v1139 = vmul.f32 %v1136, %v360
        %v1140 = vmul.f32 %v1130, %v364
        %v1141 = vpack.c.bf16 %v1139, %v1137
        %v1142 = vpack.c.bf16 %v1140, %v1138
        %v1145 = vunpack.c.l.b16 %v1141
        %v1146 = vunpack.c.l.b16 %v1142
        %v1147 = vunpack.c.h.b16 %v1141
        %v1148 = vunpack.c.h.b16 %v1142
        %v1149 = vpack.c.b16 %v1146, %v1145
        %v1150 = vpack.c.b16 %v1148, %v1147
        %1153 = vst [vmem:[#allocation2] sm:$0xff] %v1149
        %1154 = vst [vmem:[#allocation2 + $0x8] sm:$0xff] %v1150
        %1155 = vrot.lane.b32.xlu0 %v1113, 33
        %v1156 = vpop.permute.xlu0 %1155
        %1157 = vrot.lane.b32.xlu0 %v1114, 33
        %v1158 = vpop.permute.xlu0 %1157
        %1159 = vrot.lane.b32.xlu0 %v1115, 33
        %v1160 = vpop.permute.xlu0 %1159
        %1161 = vrot.lane.b32.xlu0 %v1116, 33
        %v1162 = vpop.permute.xlu0 %1161
        %v1163 = vsel %vm380, %v1156, %v1158
        %v1164 = vsel %vm380, %v1160, %v1162
        %v1169 = vsel %vm380, 0.0, %v1156
        %v1170 = vsel %vm380, 0.0, %v1160
        %v1171 = vmul.f32 %v1169, %v388
        %v1172 = vmul.f32 %v1163, %v392
        %v1173 = vmul.f32 %v1170, %v388
        %v1174 = vmul.f32 %v1164, %v392
        %v1175 = vpack.c.bf16 %v1173, %v1171
        %v1176 = vpack.c.bf16 %v1174, %v1172
        %v1179 = vunpack.c.l.b16 %v1175
        %v1180 = vunpack.c.l.b16 %v1176
        %v1181 = vunpack.c.h.b16 %v1175
        %v1182 = vunpack.c.h.b16 %v1176
        %v1183 = vpack.c.b16 %v1180, %v1179
        %v1184 = vpack.c.b16 %v1182, %v1181
        %1187 = vst [vmem:[#allocation2 + $0x10] sm:$0xff] %v1183
        %1188 = vst [vmem:[#allocation2 + $0x18] sm:$0xff] %v1184
        %1189 = vrot.lane.b32.xlu0 %v1113, 32
        %v1190 = vpop.permute.xlu0 %1189
        %1191 = vrot.lane.b32.xlu0 %v1114, 32
        %v1192 = vpop.permute.xlu0 %1191
        %1193 = vrot.lane.b32.xlu0 %v1115, 32
        %v1194 = vpop.permute.xlu0 %1193
        %1195 = vrot.lane.b32.xlu0 %v1116, 32
        %v1196 = vpop.permute.xlu0 %1195
        %v1197 = vsel %vm407, %v1190, %v1192
        %v1198 = vsel %vm407, %v1194, %v1196
        %v1203 = vsel %vm407, 0.0, %v1190
        %v1204 = vsel %vm407, 0.0, %v1194
        %v1205 = vmul.f32 %v1203, %v415
        %v1206 = vmul.f32 %v1197, %v419
        %v1207 = vmul.f32 %v1204, %v415
        %v1208 = vmul.f32 %v1198, %v419
        %v1209 = vpack.c.bf16 %v1207, %v1205
        %v1210 = vpack.c.bf16 %v1208, %v1206
        %v1213 = vunpack.c.l.b16 %v1209
        %v1214 = vunpack.c.l.b16 %v1210
        %v1215 = vunpack.c.h.b16 %v1209
        %v1216 = vunpack.c.h.b16 %v1210
        %v1217 = vpack.c.b16 %v1214, %v1213
        %v1218 = vpack.c.b16 %v1216, %v1215
        %1221 = vst [vmem:[#allocation2 + $0x20] sm:$0xff] %v1217
        %1222 = vst [vmem:[#allocation2 + $0x28] sm:$0xff] %v1218
        %1223 = vrot.lane.b32.xlu0 %v1113, 31
        %v1224 = vpop.permute.xlu0 %1223
        %1225 = vrot.lane.b32.xlu0 %v1114, 31
        %v1226 = vpop.permute.xlu0 %1225
        %1227 = vrot.lane.b32.xlu0 %v1115, 31
        %v1228 = vpop.permute.xlu0 %1227
        %1229 = vrot.lane.b32.xlu0 %v1116, 31
        %v1230 = vpop.permute.xlu0 %1229
        %v1231 = vsel %vm434, %v1224, %v1226
        %v1232 = vsel %vm434, %v1228, %v1230
        %v1237 = vsel %vm434, 0.0, %v1224
        %v1238 = vsel %vm434, 0.0, %v1228
        %v1239 = vmul.f32 %v1237, %v442
        %v1240 = vmul.f32 %v1231, %v446
        %v1241 = vmul.f32 %v1238, %v442
        %v1242 = vmul.f32 %v1232, %v446
        %v1243 = vpack.c.bf16 %v1241, %v1239
        %v1244 = vpack.c.bf16 %v1242, %v1240
        %v1247 = vunpack.c.l.b16 %v1243
        %v1248 = vunpack.c.l.b16 %v1244
        %v1249 = vunpack.c.h.b16 %v1243
        %v1250 = vunpack.c.h.b16 %v1244
        %v1251 = vpack.c.b16 %v1248, %v1247
        %v1252 = vpack.c.b16 %v1250, %v1249
        %1255 = vst [vmem:[#allocation2 + $0x30] sm:$0xff] %v1251
        %1256 = vst [vmem:[#allocation2 + $0x38] sm:$0xff] %v1252
        %1257 = vrot.lane.b32.xlu0 %v1113, 30
        %v1258 = vpop.permute.xlu0 %1257
        %1259 = vrot.lane.b32.xlu0 %v1114, 30
        %v1260 = vpop.permute.xlu0 %1259
        %1261 = vrot.lane.b32.xlu0 %v1115, 30
        %v1262 = vpop.permute.xlu0 %1261
        %1263 = vrot.lane.b32.xlu0 %v1116, 30
        %v1264 = vpop.permute.xlu0 %1263
        %v1265 = vsel %vm461, %v1258, %v1260
        %v1266 = vsel %vm461, %v1262, %v1264
        %v1271 = vsel %vm461, 0.0, %v1258
        %v1272 = vsel %vm461, 0.0, %v1262
        %v1273 = vmul.f32 %v1271, %v469
        %v1274 = vmul.f32 %v1265, %v473
        %v1275 = vmul.f32 %v1272, %v469
        %v1276 = vmul.f32 %v1266, %v473
        %v1277 = vpack.c.bf16 %v1275, %v1273
        %v1278 = vpack.c.bf16 %v1276, %v1274
        %v1281 = vunpack.c.l.b16 %v1277
        %v1282 = vunpack.c.l.b16 %v1278
        %v1283 = vunpack.c.h.b16 %v1277
        %v1284 = vunpack.c.h.b16 %v1278
        %v1285 = vpack.c.b16 %v1282, %v1281
        %v1286 = vpack.c.b16 %v1284, %v1283
        %1289 = vst [vmem:[#allocation2 + $0x40] sm:$0xff] %v1285
        %1290 = vst [vmem:[#allocation2 + $0x48] sm:$0xff] %v1286
        %1291 = vrot.lane.b32.xlu0 %v1113, 18
        %v1292 = vpop.permute.xlu0 %1291
        %1293 = vrot.lane.b32.xlu0 %v1114, 18
        %v1294 = vpop.permute.xlu0 %1293
        %1295 = vrot.lane.b32.xlu0 %v1115, 18
        %v1296 = vpop.permute.xlu0 %1295
        %1297 = vrot.lane.b32.xlu0 %v1116, 18
        %v1298 = vpop.permute.xlu0 %1297
        %v1299 = vsel %vm488, %v1292, %v1294
        %v1300 = vsel %vm488, %v1296, %v1298
        %v1305 = vsel %vm488, 0.0, %v1292
        %v1306 = vsel %vm488, 0.0, %v1296
        %v1307 = vmul.f32 %v1305, %v496
        %v1308 = vmul.f32 %v1299, %v500
        %v1309 = vmul.f32 %v1306, %v496
        %v1310 = vmul.f32 %v1300, %v500
        %v1311 = vpack.c.bf16 %v1309, %v1307
        %v1312 = vpack.c.bf16 %v1310, %v1308
        %v1315 = vunpack.c.l.b16 %v1311
        %v1316 = vunpack.c.l.b16 %v1312
        %v1317 = vunpack.c.h.b16 %v1311
        %v1318 = vunpack.c.h.b16 %v1312
        %v1319 = vpack.c.b16 %v1316, %v1315
        %v1320 = vpack.c.b16 %v1318, %v1317
        %1323 = vst [vmem:[#allocation2 + $0x50] sm:$0xff] %v1319
        %1324 = vst [vmem:[#allocation2 + $0x58] sm:$0xff] %v1320
        %1325 = vrot.lane.b32.xlu0 %v1113, 17
        %v1326 = vpop.permute.xlu0 %1325
        %1327 = vrot.lane.b32.xlu0 %v1114, 17
        %v1328 = vpop.permute.xlu0 %1327
        %1329 = vrot.lane.b32.xlu0 %v1115, 17
        %v1330 = vpop.permute.xlu0 %1329
        %1331 = vrot.lane.b32.xlu0 %v1116, 17
        %v1332 = vpop.permute.xlu0 %1331
        %v1333 = vsel %vm515, %v1326, %v1328
        %v1334 = vsel %vm515, %v1330, %v1332
        %v1339 = vsel %vm515, 0.0, %v1326
        %v1340 = vsel %vm515, 0.0, %v1330
        %v1341 = vmul.f32 %v1339, %v523
        %v1342 = vmul.f32 %v1333, %v527
        %v1343 = vmul.f32 %v1340, %v523
        %v1344 = vmul.f32 %v1334, %v527
        %v1345 = vpack.c.bf16 %v1343, %v1341
        %v1346 = vpack.c.bf16 %v1344, %v1342
        %v1349 = vunpack.c.l.b16 %v1345
        %v1350 = vunpack.c.l.b16 %v1346
        %v1351 = vunpack.c.h.b16 %v1345
        %v1352 = vunpack.c.h.b16 %v1346
        %v1353 = vpack.c.b16 %v1350, %v1349
        %v1354 = vpack.c.b16 %v1352, %v1351
        %1357 = vst [vmem:[#allocation2 + $0x60] sm:$0xff] %v1353
        %1358 = vst [vmem:[#allocation2 + $0x68] sm:$0xff] %v1354
        %1359 = vrot.lane.b32.xlu0 %v1113, 16
        %v1360 = vpop.permute.xlu0 %1359
        %1361 = vrot.lane.b32.xlu0 %v1114, 16
        %v1362 = vpop.permute.xlu0 %1361
        %1363 = vrot.lane.b32.xlu0 %v1115, 16
        %v1364 = vpop.permute.xlu0 %1363
        %1365 = vrot.lane.b32.xlu0 %v1116, 16
        %v1366 = vpop.permute.xlu0 %1365
        %v1367 = vsel %vm542, %v1360, %v1362
        %v1368 = vsel %vm542, %v1364, %v1366
        %v1373 = vsel %vm542, 0.0, %v1360
        %v1374 = vsel %vm542, 0.0, %v1364
        %v1375 = vmul.f32 %v1373, %v550
        %v1376 = vmul.f32 %v1367, %v554
        %v1377 = vmul.f32 %v1374, %v550
        %v1378 = vmul.f32 %v1368, %v554
        %v1379 = vpack.c.bf16 %v1377, %v1375
        %v1380 = vpack.c.bf16 %v1378, %v1376
        %v1383 = vunpack.c.l.b16 %v1379
        %v1384 = vunpack.c.l.b16 %v1380
        %v1385 = vunpack.c.h.b16 %v1379
        %v1386 = vunpack.c.h.b16 %v1380
        %v1387 = vpack.c.b16 %v1384, %v1383
        %v1388 = vpack.c.b16 %v1386, %v1385
        %1391 = vst [vmem:[#allocation2 + $0x70] sm:$0xff] %v1387
        %1392 = vst [vmem:[#allocation2 + $0x78] sm:$0xff] %v1388
        %1393 = vrot.lane.b32.xlu0 %v1113, 15
        %v1394 = vpop.permute.xlu0 %1393
        %1395 = vrot.lane.b32.xlu0 %v1114, 15
        %v1396 = vpop.permute.xlu0 %1395
        %1397 = vrot.lane.b32.xlu0 %v1115, 15
        %v1398 = vpop.permute.xlu0 %1397
        %1399 = vrot.lane.b32.xlu0 %v1116, 15
        %v1400 = vpop.permute.xlu0 %1399
        %v1401 = vsel %vm569, %v1394, %v1396
        %v1402 = vsel %vm569, %v1398, %v1400
        %v1407 = vsel %vm569, 0.0, %v1394
        %v1408 = vsel %vm569, 0.0, %v1398
        %v1409 = vmul.f32 %v1407, %v577
        %v1410 = vmul.f32 %v1401, %v581
        %v1411 = vmul.f32 %v1408, %v577
        %v1412 = vmul.f32 %v1402, %v581
        %v1413 = vpack.c.bf16 %v1411, %v1409
        %v1414 = vpack.c.bf16 %v1412, %v1410
        %v1417 = vunpack.c.l.b16 %v1413
        %v1418 = vunpack.c.l.b16 %v1414
        %v1419 = vunpack.c.h.b16 %v1413
        %v1420 = vunpack.c.h.b16 %v1414
        %v1421 = vpack.c.b16 %v1418, %v1417
        %v1422 = vpack.c.b16 %v1420, %v1419
        %1425 = vst [vmem:[#allocation2 + $0x80] sm:$0xff] %v1421
        %1426 = vst [vmem:[#allocation2 + $0x88] sm:$0xff] %v1422
        %1427 = vrot.lane.b32.xlu0 %v1113, 14
        %v1428 = vpop.permute.xlu0 %1427
        %1429 = vrot.lane.b32.xlu0 %v1114, 14
        %v1430 = vpop.permute.xlu0 %1429
        %1431 = vrot.lane.b32.xlu0 %v1115, 14
        %v1432 = vpop.permute.xlu0 %1431
        %1433 = vrot.lane.b32.xlu0 %v1116, 14
        %v1434 = vpop.permute.xlu0 %1433
        %v1435 = vsel %vm596, %v1428, %v1430
        %v1436 = vsel %vm596, %v1432, %v1434
        %v1441 = vsel %vm596, 0.0, %v1428
        %v1442 = vsel %vm596, 0.0, %v1432
        %v1443 = vmul.f32 %v1441, %v604
        %v1444 = vmul.f32 %v1435, %v608
        %v1445 = vmul.f32 %v1442, %v604
        %v1446 = vmul.f32 %v1436, %v608
        %v1447 = vpack.c.bf16 %v1445, %v1443
        %v1448 = vpack.c.bf16 %v1446, %v1444
        %v1451 = vunpack.c.l.b16 %v1447
        %v1452 = vunpack.c.l.b16 %v1448
        %v1453 = vunpack.c.h.b16 %v1447
        %v1454 = vunpack.c.h.b16 %v1448
        %v1455 = vpack.c.b16 %v1452, %v1451
        %v1456 = vpack.c.b16 %v1454, %v1453
        %1459 = vst [vmem:[#allocation2 + $0x90] sm:$0xff] %v1455
        %1460 = vst [vmem:[#allocation2 + $0x98] sm:$0xff] %v1456
        %1461 = vrot.lane.b32.xlu0 %v1113, 2
        %v1462 = vpop.permute.xlu0 %1461
        %1463 = vrot.lane.b32.xlu0 %v1114, 2
        %v1464 = vpop.permute.xlu0 %1463
        %1465 = vrot.lane.b32.xlu0 %v1115, 2
        %v1466 = vpop.permute.xlu0 %1465
        %1467 = vrot.lane.b32.xlu0 %v1116, 2
        %v1468 = vpop.permute.xlu0 %1467
        %v1469 = vsel %vm623, %v1462, %v1464
        %v1470 = vsel %vm623, %v1466, %v1468
        %v1475 = vsel %vm623, 0.0, %v1462
        %v1476 = vsel %vm623, 0.0, %v1466
        %v1477 = vmul.f32 %v1475, %v631
        %v1478 = vmul.f32 %v1469, %v635
        %v1479 = vmul.f32 %v1476, %v631
        %v1480 = vmul.f32 %v1470, %v635
        %v1481 = vpack.c.bf16 %v1479, %v1477
        %v1482 = vpack.c.bf16 %v1480, %v1478
        %v1485 = vunpack.c.l.b16 %v1481
        %v1486 = vunpack.c.l.b16 %v1482
        %v1487 = vunpack.c.h.b16 %v1481
        %v1488 = vunpack.c.h.b16 %v1482
        %v1489 = vpack.c.b16 %v1486, %v1485
        %v1490 = vpack.c.b16 %v1488, %v1487
        %1493 = vst [vmem:[#allocation2 + $0xa0] sm:$0xff] %v1489
        %1494 = vst [vmem:[#allocation2 + $0xa8] sm:$0xff] %v1490
        %1495 = vrot.lane.b32.xlu0 %v1113, 1
        %v1496 = vpop.permute.xlu0 %1495
        %1497 = vrot.lane.b32.xlu0 %v1114, 1
        %v1498 = vpop.permute.xlu0 %1497
        %1499 = vrot.lane.b32.xlu0 %v1115, 1
        %v1500 = vpop.permute.xlu0 %1499
        %1501 = vrot.lane.b32.xlu0 %v1116, 1
        %v1502 = vpop.permute.xlu0 %1501
        %v1503 = vsel %vm650, %v1496, %v1498
        %v1504 = vsel %vm650, %v1500, %v1502
        %v1509 = vsel %vm650, 0.0, %v1496
        %v1510 = vsel %vm650, 0.0, %v1500
        %v1511 = vmul.f32 %v1509, %v658
        %v1512 = vmul.f32 %v1503, %v662
        %v1513 = vmul.f32 %v1510, %v658
        %v1514 = vmul.f32 %v1504, %v662
        %v1515 = vpack.c.bf16 %v1513, %v1511
        %v1516 = vpack.c.bf16 %v1514, %v1512
        %v1519 = vunpack.c.l.b16 %v1515
        %v1520 = vunpack.c.l.b16 %v1516
        %v1521 = vunpack.c.h.b16 %v1515
        %v1522 = vunpack.c.h.b16 %v1516
        %v1523 = vpack.c.b16 %v1520, %v1519
        %v1524 = vpack.c.b16 %v1522, %v1521
        %1527 = vst [vmem:[#allocation2 + $0xb0] sm:$0xff] %v1523
        %1528 = vst [vmem:[#allocation2 + $0xb8] sm:$0xff] %v1524
        %v1529 = vmul.f32 %v1113, %v676
        %v1530 = vmul.f32 %v1114, %v680
        %v1531 = vmul.f32 %v1115, %v676
        %v1532 = vmul.f32 %v1116, %v680
        %v1533 = vpack.c.bf16 %v1531, %v1529
        %v1534 = vpack.c.bf16 %v1532, %v1530
        %v1537 = vunpack.c.l.b16 %v1533
        %v1538 = vunpack.c.l.b16 %v1534
        %v1539 = vunpack.c.h.b16 %v1533
        %v1540 = vunpack.c.h.b16 %v1534
        %v1541 = vpack.c.b16 %v1538, %v1537
        %v1542 = vpack.c.b16 %v1540, %v1539
        %1545 = vst [vmem:[#allocation2 + $0xc0] sm:$0xff] %v1541
        %1546 = vst [vmem:[#allocation2 + $0xc8] sm:$0xff] %v1542
        %1547 = vrot.lane.b32.xlu0 %v1113, 127
        %v1548 = vpop.permute.xlu0 %1547
        %1549 = vrot.lane.b32.xlu0 %v1114, 127
        %v1550 = vpop.permute.xlu0 %1549
        %1551 = vrot.lane.b32.xlu0 %v1115, 127
        %v1552 = vpop.permute.xlu0 %1551
        %1553 = vrot.lane.b32.xlu0 %v1116, 127
        %v1554 = vpop.permute.xlu0 %1553
        %v1555 = vsel %vm695, %v1548, %v1550
        %v1556 = vsel %vm695, %v1552, %v1554
        %v1561 = vsel %vm695, %v1550, 0.0
        %v1562 = vsel %vm695, %v1554, 0.0
        %v1563 = vmul.f32 %v1555, %v703
        %v1564 = vmul.f32 %v1561, %v707
        %v1565 = vmul.f32 %v1556, %v703
        %v1566 = vmul.f32 %v1562, %v707
        %v1567 = vpack.c.bf16 %v1565, %v1563
        %v1568 = vpack.c.bf16 %v1566, %v1564
        %v1571 = vunpack.c.l.b16 %v1567
        %v1572 = vunpack.c.l.b16 %v1568
        %v1573 = vunpack.c.h.b16 %v1567
        %v1574 = vunpack.c.h.b16 %v1568
        %v1575 = vpack.c.b16 %v1572, %v1571
        %v1576 = vpack.c.b16 %v1574, %v1573
        %1579 = vst [vmem:[#allocation2 + $0xd0] sm:$0xff] %v1575
        %1580 = vst [vmem:[#allocation2 + $0xd8] sm:$0xff] %v1576
        %1581 = vrot.lane.b32.xlu0 %v1113, 126
        %v1582 = vpop.permute.xlu0 %1581
        %1583 = vrot.lane.b32.xlu0 %v1114, 126
        %v1584 = vpop.permute.xlu0 %1583
        %1585 = vrot.lane.b32.xlu0 %v1115, 126
        %v1586 = vpop.permute.xlu0 %1585
        %1587 = vrot.lane.b32.xlu0 %v1116, 126
        %v1588 = vpop.permute.xlu0 %1587
        %v1589 = vsel %vm722, %v1582, %v1584
        %v1590 = vsel %vm722, %v1586, %v1588
        %v1595 = vsel %vm722, %v1584, 0.0
        %v1596 = vsel %vm722, %v1588, 0.0
        %v1597 = vmul.f32 %v1589, %v730
        %v1598 = vmul.f32 %v1595, %v734
        %v1599 = vmul.f32 %v1590, %v730
        %v1600 = vmul.f32 %v1596, %v734
        %v1601 = vpack.c.bf16 %v1599, %v1597
        %v1602 = vpack.c.bf16 %v1600, %v1598
        %v1605 = vunpack.c.l.b16 %v1601
        %v1606 = vunpack.c.l.b16 %v1602
        %v1607 = vunpack.c.h.b16 %v1601
        %v1608 = vunpack.c.h.b16 %v1602
        %v1609 = vpack.c.b16 %v1606, %v1605
        %v1610 = vpack.c.b16 %v1608, %v1607
        %1613 = vst [vmem:[#allocation2 + $0xe0] sm:$0xff] %v1609
        %1614 = vst [vmem:[#allocation2 + $0xe8] sm:$0xff] %v1610
        %1615 = vrot.lane.b32.xlu0 %v1113, 114
        %v1616 = vpop.permute.xlu0 %1615
        %1617 = vrot.lane.b32.xlu0 %v1114, 114
        %v1618 = vpop.permute.xlu0 %1617
        %1619 = vrot.lane.b32.xlu0 %v1115, 114
        %v1620 = vpop.permute.xlu0 %1619
        %1621 = vrot.lane.b32.xlu0 %v1116, 114
        %v1622 = vpop.permute.xlu0 %1621
        %v1623 = vsel %vm749, %v1616, %v1618
        %v1624 = vsel %vm749, %v1620, %v1622
        %v1629 = vsel %vm749, %v1618, 0.0
        %v1630 = vsel %vm749, %v1622, 0.0
        %v1631 = vmul.f32 %v1623, %v757
        %v1632 = vmul.f32 %v1629, %v761
        %v1633 = vmul.f32 %v1624, %v757
        %v1634 = vmul.f32 %v1630, %v761
        %v1635 = vpack.c.bf16 %v1633, %v1631
        %v1636 = vpack.c.bf16 %v1634, %v1632
        %v1639 = vunpack.c.l.b16 %v1635
        %v1640 = vunpack.c.l.b16 %v1636
        %v1641 = vunpack.c.h.b16 %v1635
        %v1642 = vunpack.c.h.b16 %v1636
        %v1643 = vpack.c.b16 %v1640, %v1639
        %v1644 = vpack.c.b16 %v1642, %v1641
        %1647 = vst [vmem:[#allocation2 + $0xf0] sm:$0xff] %v1643
        %1648 = vst [vmem:[#allocation2 + $0xf8] sm:$0xff] %v1644
        %1649 = vrot.lane.b32.xlu0 %v1113, 113
        %v1650 = vpop.permute.xlu0 %1649
        %1651 = vrot.lane.b32.xlu0 %v1114, 113
        %v1652 = vpop.permute.xlu0 %1651
        %1653 = vrot.lane.b32.xlu0 %v1115, 113
        %v1654 = vpop.permute.xlu0 %1653
        %1655 = vrot.lane.b32.xlu0 %v1116, 113
        %v1656 = vpop.permute.xlu0 %1655
        %v1657 = vsel %vm776, %v1650, %v1652
        %v1658 = vsel %vm776, %v1654, %v1656
        %v1663 = vsel %vm776, %v1652, 0.0
        %v1664 = vsel %vm776, %v1656, 0.0
        %v1665 = vmul.f32 %v1657, %v784
        %v1666 = vmul.f32 %v1663, %v788
        %v1667 = vmul.f32 %v1658, %v784
        %v1668 = vmul.f32 %v1664, %v788
        %v1669 = vpack.c.bf16 %v1667, %v1665
        %v1670 = vpack.c.bf16 %v1668, %v1666
        %v1673 = vunpack.c.l.b16 %v1669
        %v1674 = vunpack.c.l.b16 %v1670
        %v1675 = vunpack.c.h.b16 %v1669
        %v1676 = vunpack.c.h.b16 %v1670
        %v1677 = vpack.c.b16 %v1674, %v1673
        %v1678 = vpack.c.b16 %v1676, %v1675
        %1681 = vst [vmem:[#allocation2 + $0x100] sm:$0xff] %v1677
        %1682 = vst [vmem:[#allocation2 + $0x108] sm:$0xff] %v1678
        %1683 = vrot.lane.b32.xlu0 %v1113, 112
        %v1684 = vpop.permute.xlu0 %1683
        %1685 = vrot.lane.b32.xlu0 %v1114, 112
        %v1686 = vpop.permute.xlu0 %1685
        %1687 = vrot.lane.b32.xlu0 %v1115, 112
        %v1688 = vpop.permute.xlu0 %1687
        %1689 = vrot.lane.b32.xlu0 %v1116, 112
        %v1690 = vpop.permute.xlu0 %1689
        %v1691 = vsel %vm803, %v1684, %v1686
        %v1692 = vsel %vm803, %v1688, %v1690
        %v1697 = vsel %vm803, %v1686, 0.0
        %v1698 = vsel %vm803, %v1690, 0.0
        %v1699 = vmul.f32 %v1691, %v811
        %v1700 = vmul.f32 %v1697, %v815
        %v1701 = vmul.f32 %v1692, %v811
        %v1702 = vmul.f32 %v1698, %v815
        %v1703 = vpack.c.bf16 %v1701, %v1699
        %v1704 = vpack.c.bf16 %v1702, %v1700
        %v1707 = vunpack.c.l.b16 %v1703
        %v1708 = vunpack.c.l.b16 %v1704
        %v1709 = vunpack.c.h.b16 %v1703
        %v1710 = vunpack.c.h.b16 %v1704
        %v1711 = vpack.c.b16 %v1708, %v1707
        %v1712 = vpack.c.b16 %v1710, %v1709
        %1715 = vst [vmem:[#allocation2 + $0x110] sm:$0xff] %v1711
        %1716 = vst [vmem:[#allocation2 + $0x118] sm:$0xff] %v1712
        %1717 = vrot.lane.b32.xlu0 %v1113, 111
        %v1718 = vpop.permute.xlu0 %1717
        %1719 = vrot.lane.b32.xlu0 %v1114, 111
        %v1720 = vpop.permute.xlu0 %1719
        %1721 = vrot.lane.b32.xlu0 %v1115, 111
        %v1722 = vpop.permute.xlu0 %1721
        %1723 = vrot.lane.b32.xlu0 %v1116, 111
        %v1724 = vpop.permute.xlu0 %1723
        %v1725 = vsel %vm830, %v1718, %v1720
        %v1726 = vsel %vm830, %v1722, %v1724
        %v1731 = vsel %vm830, %v1720, 0.0
        %v1732 = vsel %vm830, %v1724, 0.0
        %v1733 = vmul.f32 %v1725, %v838
        %v1734 = vmul.f32 %v1731, %v842
        %v1735 = vmul.f32 %v1726, %v838
        %v1736 = vmul.f32 %v1732, %v842
        %v1737 = vpack.c.bf16 %v1735, %v1733
        %v1738 = vpack.c.bf16 %v1736, %v1734
        %v1741 = vunpack.c.l.b16 %v1737
        %v1742 = vunpack.c.l.b16 %v1738
        %v1743 = vunpack.c.h.b16 %v1737
        %v1744 = vunpack.c.h.b16 %v1738
        %v1745 = vpack.c.b16 %v1742, %v1741
        %v1746 = vpack.c.b16 %v1744, %v1743
        %1749 = vst [vmem:[#allocation2 + $0x120] sm:$0xff] %v1745
        %1750 = vst [vmem:[#allocation2 + $0x128] sm:$0xff] %v1746
        %1751 = vrot.lane.b32.xlu0 %v1113, 110
        %v1752 = vpop.permute.xlu0 %1751
        %1753 = vrot.lane.b32.xlu0 %v1114, 110
        %v1754 = vpop.permute.xlu0 %1753
        %1755 = vrot.lane.b32.xlu0 %v1115, 110
        %v1756 = vpop.permute.xlu0 %1755
        %1757 = vrot.lane.b32.xlu0 %v1116, 110
        %v1758 = vpop.permute.xlu0 %1757
        %v1759 = vsel %vm857, %v1752, %v1754
        %v1760 = vsel %vm857, %v1756, %v1758
        %v1765 = vsel %vm857, %v1754, 0.0
        %v1766 = vsel %vm857, %v1758, 0.0
        %v1767 = vmul.f32 %v1759, %v865
        %v1768 = vmul.f32 %v1765, %v869
        %v1769 = vmul.f32 %v1760, %v865
        %v1770 = vmul.f32 %v1766, %v869
        %v1771 = vpack.c.bf16 %v1769, %v1767
        %v1772 = vpack.c.bf16 %v1770, %v1768
        %v1775 = vunpack.c.l.b16 %v1771
        %v1776 = vunpack.c.l.b16 %v1772
        %v1777 = vunpack.c.h.b16 %v1771
        %v1778 = vunpack.c.h.b16 %v1772
        %v1779 = vpack.c.b16 %v1776, %v1775
        %v1780 = vpack.c.b16 %v1778, %v1777
        %1783 = vst [vmem:[#allocation2 + $0x130] sm:$0xff] %v1779
        %1784 = vst [vmem:[#allocation2 + $0x138] sm:$0xff] %v1780
        %1785 = vrot.lane.b32.xlu0 %v1113, 98
        %v1786 = vpop.permute.xlu0 %1785
        %1787 = vrot.lane.b32.xlu0 %v1114, 98
        %v1788 = vpop.permute.xlu0 %1787
        %1789 = vrot.lane.b32.xlu0 %v1115, 98
        %v1790 = vpop.permute.xlu0 %1789
        %1791 = vrot.lane.b32.xlu0 %v1116, 98
        %v1792 = vpop.permute.xlu0 %1791
        %v1793 = vsel %vm884, %v1786, %v1788
        %v1794 = vsel %vm884, %v1790, %v1792
        %v1799 = vsel %vm884, %v1788, 0.0
        %v1800 = vsel %vm884, %v1792, 0.0
        %v1801 = vmul.f32 %v1793, %v892
        %v1802 = vmul.f32 %v1799, %v896
        %v1803 = vmul.f32 %v1794, %v892
        %v1804 = vmul.f32 %v1800, %v896
        %v1805 = vpack.c.bf16 %v1803, %v1801
        %v1806 = vpack.c.bf16 %v1804, %v1802
        %v1809 = vunpack.c.l.b16 %v1805
        %v1810 = vunpack.c.l.b16 %v1806
        %v1811 = vunpack.c.h.b16 %v1805
        %v1812 = vunpack.c.h.b16 %v1806
        %v1813 = vpack.c.b16 %v1810, %v1809
        %v1814 = vpack.c.b16 %v1812, %v1811
        %1817 = vst [vmem:[#allocation2 + $0x140] sm:$0xff] %v1813
        %1818 = vst [vmem:[#allocation2 + $0x148] sm:$0xff] %v1814
        %1819 = vrot.lane.b32.xlu0 %v1113, 97
        %v1820 = vpop.permute.xlu0 %1819
        %1821 = vrot.lane.b32.xlu0 %v1114, 97
        %v1822 = vpop.permute.xlu0 %1821
        %1823 = vrot.lane.b32.xlu0 %v1115, 97
        %v1824 = vpop.permute.xlu0 %1823
        %1825 = vrot.lane.b32.xlu0 %v1116, 97
        %v1826 = vpop.permute.xlu0 %1825
        %v1827 = vsel %vm911, %v1820, %v1822
        %v1828 = vsel %vm911, %v1824, %v1826
        %v1833 = vsel %vm911, %v1822, 0.0
        %v1834 = vsel %vm911, %v1826, 0.0
        %v1835 = vmul.f32 %v1827, %v919
        %v1836 = vmul.f32 %v1833, %v923
        %v1837 = vmul.f32 %v1828, %v919
        %v1838 = vmul.f32 %v1834, %v923
        %v1839 = vpack.c.bf16 %v1837, %v1835
        %v1840 = vpack.c.bf16 %v1838, %v1836
        %v1843 = vunpack.c.l.b16 %v1839
        %v1844 = vunpack.c.l.b16 %v1840
        %v1845 = vunpack.c.h.b16 %v1839
        %v1846 = vunpack.c.h.b16 %v1840
        %v1847 = vpack.c.b16 %v1844, %v1843
        %v1848 = vpack.c.b16 %v1846, %v1845
        %1851 = vst [vmem:[#allocation2 + $0x150] sm:$0xff] %v1847
        %1852 = vst [vmem:[#allocation2 + $0x158] sm:$0xff] %v1848
        %1853 = vrot.lane.b32.xlu0 %v1113, 96
        %v1854 = vpop.permute.xlu0 %1853
        %1855 = vrot.lane.b32.xlu0 %v1114, 96
        %v1856 = vpop.permute.xlu0 %1855
        %1857 = vrot.lane.b32.xlu0 %v1115, 96
        %v1858 = vpop.permute.xlu0 %1857
        %1859 = vrot.lane.b32.xlu0 %v1116, 96
        %v1860 = vpop.permute.xlu0 %1859
        %v1861 = vsel %vm938, %v1854, %v1856
        %v1862 = vsel %vm938, %v1858, %v1860
        %v1867 = vsel %vm938, %v1856, 0.0
        %v1868 = vsel %vm938, %v1860, 0.0
        %v1869 = vmul.f32 %v1861, %v946
        %v1870 = vmul.f32 %v1867, %v950
        %v1871 = vmul.f32 %v1862, %v946
        %v1872 = vmul.f32 %v1868, %v950
        %v1873 = vpack.c.bf16 %v1871, %v1869
        %v1874 = vpack.c.bf16 %v1872, %v1870
        %v1877 = vunpack.c.l.b16 %v1873
        %v1878 = vunpack.c.l.b16 %v1874
        %v1879 = vunpack.c.h.b16 %v1873
        %v1880 = vunpack.c.h.b16 %v1874
        %v1881 = vpack.c.b16 %v1878, %v1877
        %v1882 = vpack.c.b16 %v1880, %v1879
        %1885 = vst [vmem:[#allocation2 + $0x160] sm:$0xff] %v1881
        %1886 = vst [vmem:[#allocation2 + $0x168] sm:$0xff] %v1882
        %1887 = vrot.lane.b32.xlu0 %v1113, 95
        %v1888 = vpop.permute.xlu0 %1887
        %1889 = vrot.lane.b32.xlu0 %v1114, 95
        %v1890 = vpop.permute.xlu0 %1889
        %1891 = vrot.lane.b32.xlu0 %v1115, 95
        %v1892 = vpop.permute.xlu0 %1891
        %1893 = vrot.lane.b32.xlu0 %v1116, 95
        %v1894 = vpop.permute.xlu0 %1893
        %v1895 = vsel %vm965, %v1888, %v1890
        %v1896 = vsel %vm965, %v1892, %v1894
        %v1901 = vsel %vm965, %v1890, 0.0
        %v1902 = vsel %vm965, %v1894, 0.0
        %v1903 = vmul.f32 %v1895, %v973
        %v1904 = vmul.f32 %v1901, %v977
        %v1905 = vmul.f32 %v1896, %v973
        %v1906 = vmul.f32 %v1902, %v977
        %v1907 = vpack.c.bf16 %v1905, %v1903
        %v1908 = vpack.c.bf16 %v1906, %v1904
        %v1911 = vunpack.c.l.b16 %v1907
        %v1912 = vunpack.c.l.b16 %v1908
        %v1913 = vunpack.c.h.b16 %v1907
        %v1914 = vunpack.c.h.b16 %v1908
        %v1915 = vpack.c.b16 %v1912, %v1911
        %v1916 = vpack.c.b16 %v1914, %v1913
        %1919 = vst [vmem:[#allocation2 + $0x170] sm:$0xff] %v1915
        %1920 = vst [vmem:[#allocation2 + $0x178] sm:$0xff] %v1916
        %1921 = vrot.lane.b32.xlu0 %v1113, 94
        %v1922 = vpop.permute.xlu0 %1921
        %1923 = vrot.lane.b32.xlu0 %v1114, 94
        %v1924 = vpop.permute.xlu0 %1923
        %1925 = vrot.lane.b32.xlu0 %v1115, 94
        %v1926 = vpop.permute.xlu0 %1925
        %1927 = vrot.lane.b32.xlu0 %v1116, 94
        %v1928 = vpop.permute.xlu0 %1927
        %v1929 = vsel %vm992, %v1922, %v1924
        %v1930 = vsel %vm992, %v1926, %v1928
        %v1935 = vsel %vm992, %v1924, 0.0
        %v1936 = vsel %vm992, %v1928, 0.0
        %v1937 = vmul.f32 %v1929, %v1000
        %v1938 = vmul.f32 %v1935, %v1004
        %v1939 = vmul.f32 %v1930, %v1000
        %v1940 = vmul.f32 %v1936, %v1004
        %v1941 = vpack.c.bf16 %v1939, %v1937
        %v1942 = vpack.c.bf16 %v1940, %v1938
        %v1945 = vunpack.c.l.b16 %v1941
        %v1946 = vunpack.c.l.b16 %v1942
        %v1947 = vunpack.c.h.b16 %v1941
        %v1948 = vunpack.c.h.b16 %v1942
        %v1949 = vpack.c.b16 %v1946, %v1945
        %v1950 = vpack.c.b16 %v1948, %v1947
        %1953 = vst [vmem:[#allocation2 + $0x180] sm:$0xff] %v1949
        %1954 = vst [vmem:[#allocation2 + $0x188] sm:$0xff] %v1950
        %v1955 = vld [vmem:[#allocation6] sm:$0xff]
        %v1956 = vld [vmem:[#allocation6 + $0x8] sm:$0xff]
        %v1957 = vld [vmem:[#allocation6 + $0x10] sm:$0xff]
        %v1958 = vld [vmem:[#allocation6 + $0x18] sm:$0xff]
        %v1959 = vld [vmem:[#allocation2] sm:$0xff]
        %v1960 = vld [vmem:[#allocation2 + $0x8] sm:$0xff]
        %v1961 = vld [vmem:[#allocation2 + $0x10] sm:$0xff]
        %v1962 = vld [vmem:[#allocation2 + $0x18] sm:$0xff]
        %v1963 = vld [vmem:[#allocation2 + $0x20] sm:$0xff]
        %v1964 = vld [vmem:[#allocation2 + $0x28] sm:$0xff]
        %v1965 = vld [vmem:[#allocation2 + $0x30] sm:$0xff]
        %v1966 = vld [vmem:[#allocation2 + $0x38] sm:$0xff]
        %v1967 = vld [vmem:[#allocation2 + $0x40] sm:$0xff]
        %v1968 = vld [vmem:[#allocation2 + $0x48] sm:$0xff]
        %v1969 = vld [vmem:[#allocation2 + $0x50] sm:$0xff]
        %v1970 = vld [vmem:[#allocation2 + $0x58] sm:$0xff]
        %v1971 = vld [vmem:[#allocation2 + $0x60] sm:$0xff]
        %v1972 = vld [vmem:[#allocation2 + $0x68] sm:$0xff]
        %v1973 = vld [vmem:[#allocation2 + $0x70] sm:$0xff]
        %v1974 = vld [vmem:[#allocation2 + $0x78] sm:$0xff]
        %v1975 = vld [vmem:[#allocation2 + $0x80] sm:$0xff]
        %v1976 = vld [vmem:[#allocation2 + $0x88] sm:$0xff]
        %v1977 = vld [vmem:[#allocation2 + $0x90] sm:$0xff]
        %v1978 = vld [vmem:[#allocation2 + $0x98] sm:$0xff]
        %v1979 = vld [vmem:[#allocation2 + $0xa0] sm:$0xff]
        %v1980 = vld [vmem:[#allocation2 + $0xa8] sm:$0xff]
        %v1981 = vld [vmem:[#allocation2 + $0xb0] sm:$0xff]
        %v1982 = vld [vmem:[#allocation2 + $0xb8] sm:$0xff]
        %v1983 = vld [vmem:[#allocation2 + $0xc0] sm:$0xff]
        %v1984 = vld [vmem:[#allocation2 + $0xc8] sm:$0xff]
        %v1985 = vld [vmem:[#allocation2 + $0xd0] sm:$0xff]
        %v1986 = vld [vmem:[#allocation2 + $0xd8] sm:$0xff]
        %v1987 = vld [vmem:[#allocation2 + $0xe0] sm:$0xff]
        %v1988 = vld [vmem:[#allocation2 + $0xe8] sm:$0xff]
        %v1989 = vld [vmem:[#allocation2 + $0xf0] sm:$0xff]
        %v1990 = vld [vmem:[#allocation2 + $0xf8] sm:$0xff]
        %v1991 = vld [vmem:[#allocation2 + $0x100] sm:$0xff]
        %v1992 = vld [vmem:[#allocation2 + $0x108] sm:$0xff]
        %v1993 = vld [vmem:[#allocation2 + $0x110] sm:$0xff]
        %v1994 = vld [vmem:[#allocation2 + $0x118] sm:$0xff]
        %v1995 = vld [vmem:[#allocation2 + $0x120] sm:$0xff]
        %v1996 = vld [vmem:[#allocation2 + $0x128] sm:$0xff]
        %v1997 = vld [vmem:[#allocation2 + $0x130] sm:$0xff]
        %v1998 = vld [vmem:[#allocation2 + $0x138] sm:$0xff]
        %v1999 = vld [vmem:[#allocation2 + $0x140] sm:$0xff]
        %v2000 = vld [vmem:[#allocation2 + $0x148] sm:$0xff]
        %v2001 = vld [vmem:[#allocation2 + $0x150] sm:$0xff]
        %v2002 = vld [vmem:[#allocation2 + $0x158] sm:$0xff]
        %v2003 = vld [vmem:[#allocation2 + $0x160] sm:$0xff]
        %v2004 = vld [vmem:[#allocation2 + $0x168] sm:$0xff]
        %v2005 = vld [vmem:[#allocation2 + $0x170] sm:$0xff]
        %v2006 = vld [vmem:[#allocation2 + $0x178] sm:$0xff]
        %v2007 = vld [vmem:[#allocation2 + $0x180] sm:$0xff]
        %v2008 = vld [vmem:[#allocation2 + $0x188] sm:$0xff]
        %v2013 = vunpack.c.l.b16 %v1955
        %v2014 = vunpack.c.h.b16 %v1955
        %v2015 = vunpack.c.l.b16 %v1956
        %v2016 = vunpack.c.h.b16 %v1956
        %v2017 = vunpack.c.l.b16 %v1957
        %v2018 = vunpack.c.h.b16 %v1957
        %v2019 = vunpack.c.l.b16 %v1958
        %v2020 = vunpack.c.h.b16 %v1958
        %v2021 = vpack.c.b16 %v2017, %v2013
        %v2022 = vpack.c.b16 %v2018, %v2014
        %v2023 = vpack.c.b16 %v2019, %v2015
        %v2024 = vpack.c.b16 %v2020, %v2016
        %v2078 = vunpack.c.l.b16 %v1959
        %v2079 = vunpack.c.h.b16 %v1959
        %v2080 = vunpack.c.l.b16 %v1960
        %v2081 = vunpack.c.h.b16 %v1960
        %v2082 = vunpack.c.l.b16 %v1961
        %v2083 = vunpack.c.h.b16 %v1961
        %v2084 = vunpack.c.l.b16 %v1962
        %v2085 = vunpack.c.h.b16 %v1962
        %v2086 = vunpack.c.l.b16 %v1963
        %v2087 = vunpack.c.h.b16 %v1963
        %v2088 = vunpack.c.l.b16 %v1964
        %v2089 = vunpack.c.h.b16 %v1964
        %v2090 = vunpack.c.l.b16 %v1965
        %v2091 = vunpack.c.h.b16 %v1965
        %v2092 = vunpack.c.l.b16 %v1966
        %v2093 = vunpack.c.h.b16 %v1966
        %v2094 = vunpack.c.l.b16 %v1967
        %v2095 = vunpack.c.h.b16 %v1967
        %v2096 = vunpack.c.l.b16 %v1968
        %v2097 = vunpack.c.h.b16 %v1968
        %v2098 = vunpack.c.l.b16 %v1969
        %v2099 = vunpack.c.h.b16 %v1969
        %v2100 = vunpack.c.l.b16 %v1970
        %v2101 = vunpack.c.h.b16 %v1970
        %v2102 = vunpack.c.l.b16 %v1971
        %v2103 = vunpack.c.h.b16 %v1971
        %v2104 = vunpack.c.l.b16 %v1972
        %v2105 = vunpack.c.h.b16 %v1972
        %v2106 = vunpack.c.l.b16 %v1973
        %v2107 = vunpack.c.h.b16 %v1973
        %v2108 = vunpack.c.l.b16 %v1974
        %v2109 = vunpack.c.h.b16 %v1974
        %v2110 = vunpack.c.l.b16 %v1975
        %v2111 = vunpack.c.h.b16 %v1975
        %v2112 = vunpack.c.l.b16 %v1976
        %v2113 = vunpack.c.h.b16 %v1976
        %v2114 = vunpack.c.l.b16 %v1977
        %v2115 = vunpack.c.h.b16 %v1977
        %v2116 = vunpack.c.l.b16 %v1978
        %v2117 = vunpack.c.h.b16 %v1978
        %v2118 = vunpack.c.l.b16 %v1979
        %v2119 = vunpack.c.h.b16 %v1979
        %v2120 = vunpack.c.l.b16 %v1980
        %v2121 = vunpack.c.h.b16 %v1980
        %v2122 = vunpack.c.l.b16 %v1981
        %v2123 = vunpack.c.h.b16 %v1981
        %v2124 = vunpack.c.l.b16 %v1982
        %v2125 = vunpack.c.h.b16 %v1982
        %v2126 = vunpack.c.l.b16 %v1983
        %v2127 = vunpack.c.h.b16 %v1983
        %v2128 = vunpack.c.l.b16 %v1984
        %v2129 = vunpack.c.h.b16 %v1984
        %v2130 = vunpack.c.l.b16 %v1985
        %v2131 = vunpack.c.h.b16 %v1985
        %v2132 = vunpack.c.l.b16 %v1986
        %v2133 = vunpack.c.h.b16 %v1986
        %v2134 = vunpack.c.l.b16 %v1987
        %v2135 = vunpack.c.h.b16 %v1987
        %v2136 = vunpack.c.l.b16 %v1988
        %v2137 = vunpack.c.h.b16 %v1988
        %v2138 = vunpack.c.l.b16 %v1989
        %v2139 = vunpack.c.h.b16 %v1989
        %v2140 = vunpack.c.l.b16 %v1990
        %v2141 = vunpack.c.h.b16 %v1990
        %v2142 = vunpack.c.l.b16 %v1991
        %v2143 = vunpack.c.h.b16 %v1991
        %v2144 = vunpack.c.l.b16 %v1992
        %v2145 = vunpack.c.h.b16 %v1992
        %v2146 = vunpack.c.l.b16 %v1993
        %v2147 = vunpack.c.h.b16 %v1993
        %v2148 = vunpack.c.l.b16 %v1994
        %v2149 = vunpack.c.h.b16 %v1994
        %v2150 = vunpack.c.l.b16 %v1995
        %v2151 = vunpack.c.h.b16 %v1995
        %v2152 = vunpack.c.l.b16 %v1996
        %v2153 = vunpack.c.h.b16 %v1996
        %v2154 = vunpack.c.l.b16 %v1997
        %v2155 = vunpack.c.h.b16 %v1997
        %v2156 = vunpack.c.l.b16 %v1998
        %v2157 = vunpack.c.h.b16 %v1998
        %v2158 = vunpack.c.l.b16 %v1999
        %v2159 = vunpack.c.h.b16 %v1999
        %v2160 = vunpack.c.l.b16 %v2000
        %v2161 = vunpack.c.h.b16 %v2000
        %v2162 = vunpack.c.l.b16 %v2001
        %v2163 = vunpack.c.h.b16 %v2001
        %v2164 = vunpack.c.l.b16 %v2002
        %v2165 = vunpack.c.h.b16 %v2002
        %v2166 = vunpack.c.l.b16 %v2003
        %v2167 = vunpack.c.h.b16 %v2003
        %v2168 = vunpack.c.l.b16 %v2004
        %v2169 = vunpack.c.h.b16 %v2004
        %v2170 = vunpack.c.l.b16 %v2005
        %v2171 = vunpack.c.h.b16 %v2005
        %v2172 = vunpack.c.l.b16 %v2006
        %v2173 = vunpack.c.h.b16 %v2006
        %v2174 = vunpack.c.l.b16 %v2007
        %v2175 = vunpack.c.h.b16 %v2007
        %v2176 = vunpack.c.l.b16 %v2008
        %v2177 = vunpack.c.h.b16 %v2008
        %v2178 = vpack.c.b16 %v2080, %v2078
        %v2179 = vpack.c.b16 %v2081, %v2079
        %v2180 = vpack.c.b16 %v2084, %v2082
        %v2181 = vpack.c.b16 %v2085, %v2083
        %v2182 = vpack.c.b16 %v2088, %v2086
        %v2183 = vpack.c.b16 %v2089, %v2087
        %v2184 = vpack.c.b16 %v2092, %v2090
        %v2185 = vpack.c.b16 %v2093, %v2091
        %v2186 = vpack.c.b16 %v2096, %v2094
        %v2187 = vpack.c.b16 %v2097, %v2095
        %v2188 = vpack.c.b16 %v2100, %v2098
        %v2189 = vpack.c.b16 %v2101, %v2099
        %v2190 = vpack.c.b16 %v2104, %v2102
        %v2191 = vpack.c.b16 %v2105, %v2103
        %v2192 = vpack.c.b16 %v2108, %v2106
        %v2193 = vpack.c.b16 %v2109, %v2107
        %v2194 = vpack.c.b16 %v2112, %v2110
        %v2195 = vpack.c.b16 %v2113, %v2111
        %v2196 = vpack.c.b16 %v2116, %v2114
        %v2197 = vpack.c.b16 %v2117, %v2115
        %v2198 = vpack.c.b16 %v2120, %v2118
        %v2199 = vpack.c.b16 %v2121, %v2119
        %v2200 = vpack.c.b16 %v2124, %v2122
        %v2201 = vpack.c.b16 %v2125, %v2123
        %v2202 = vpack.c.b16 %v2128, %v2126
        %v2203 = vpack.c.b16 %v2129, %v2127
        %v2204 = vpack.c.b16 %v2132, %v2130
        %v2205 = vpack.c.b16 %v2133, %v2131
        %v2206 = vpack.c.b16 %v2136, %v2134
        %v2207 = vpack.c.b16 %v2137, %v2135
        %v2208 = vpack.c.b16 %v2140, %v2138
        %v2209 = vpack.c.b16 %v2141, %v2139
        %v2210 = vpack.c.b16 %v2144, %v2142
        %v2211 = vpack.c.b16 %v2145, %v2143
        %v2212 = vpack.c.b16 %v2148, %v2146
        %v2213 = vpack.c.b16 %v2149, %v2147
        %v2214 = vpack.c.b16 %v2152, %v2150
        %v2215 = vpack.c.b16 %v2153, %v2151
        %v2216 = vpack.c.b16 %v2156, %v2154
        %v2217 = vpack.c.b16 %v2157, %v2155
        %v2218 = vpack.c.b16 %v2160, %v2158
        %v2219 = vpack.c.b16 %v2161, %v2159
        %v2220 = vpack.c.b16 %v2164, %v2162
        %v2221 = vpack.c.b16 %v2165, %v2163
        %v2222 = vpack.c.b16 %v2168, %v2166
        %v2223 = vpack.c.b16 %v2169, %v2167
        %v2224 = vpack.c.b16 %v2172, %v2170
        %v2225 = vpack.c.b16 %v2173, %v2171
        %v2226 = vpack.c.b16 %v2176, %v2174
        %v2227 = vpack.c.b16 %v2177, %v2175
        %v2279 = vsel %vm542, %v2024, 0
        %2281 = vmatprep.subr.bf16.mxu0 %v2193
        %2282 = vmatpush1.bf16.msra.mxu0 %v2192
        %2283 = vmatprep.subr.bf16.mxu0 %v2191
        %2284 = vmatpush1.bf16.msra.mxu0 %v2190
        %2285 = vmatprep.subr.bf16.mxu0 %v2189
        %2286 = vmatpush1.bf16.msra.mxu0 %v2188
        %2287 = vmatprep.subr.bf16.mxu0 %v2187
        %2288 = vmatpush1.bf16.msra.mxu0 %v2186
        %2289 = vmatprep.subr.bf16.mxu0 %v2185
        %2290 = vmatpush1.bf16.msra.mxu0 %v2184
        %2291 = vmatprep.subr.bf16.mxu0 %v2183
        %2292 = vmatpush1.bf16.msra.mxu0 %v2182
        %2293 = vmatprep.subr.bf16.mxu0 %v2181
        %2294 = vmatpush1.bf16.msra.mxu0 %v2180
        %2295 = vmatprep.subr.bf16.mxu0 %v2179
        %2296 = vmatpush1.bf16.msra.mxu0 %v2178
        %2297 = vmatprep.subr.bf16.mxu0 %v2209
        %2298 = vmatpush2.bf16.msra.mxu0 %v2208
        %2299 = vmatprep.subr.bf16.mxu0 %v2207
        %2300 = vmatpush2.bf16.msra.mxu0 %v2206
        %2301 = vmatprep.subr.bf16.mxu0 %v2205
        %2302 = vmatpush2.bf16.msra.mxu0 %v2204
        %2303 = vmatprep.subr.bf16.mxu0 %v2203
        %2304 = vmatpush2.bf16.msra.mxu0 %v2202
        %2305 = vmatprep.subr.bf16.mxu0 %v2201
        %2306 = vmatpush2.bf16.msra.mxu0 %v2200
        %2307 = vmatprep.subr.bf16.mxu0 %v2199
        %2308 = vmatpush2.bf16.msra.mxu0 %v2198
        %2309 = vmatprep.subr.bf16.mxu0 %v2197
        %2310 = vmatpush2.bf16.msra.mxu0 %v2196
        %2311 = vmatprep.subr.bf16.mxu0 %v2195
        %2312 = vmatpush2.bf16.msra.mxu0 %v2194
        %2313 = vmatprep.mubr.bf16.mxu0 %v2022
        %2314 = vmatmul.mubr.bf16.gmra.mxu0 %v2021
        %v2315 = vpop.f32.mrf.mxu0
        %v2316 = vadd.f32 0.0, %v2315
        %v2317 = vpop.f32.mrf.mxu0
        %v2318 = vadd.f32 0.0, %v2317
        %v2319 = vpop.f32.mrf.mxu0
        %v2320 = vadd.f32 0.0, %v2319
        %v2321 = vpop.f32.mrf.mxu0
        %v2322 = vadd.f32 0.0, %v2321
        %2323 = vdwg.mxu0
        %2324 = vmatprep.subr.bf16.mxu0 %v2225
        %2325 = vmatpush1.bf16.msra.mxu0 %v2224
        %2326 = vmatprep.subr.bf16.mxu0 %v2223
        %2327 = vmatpush1.bf16.msra.mxu0 %v2222
        %2328 = vmatprep.subr.bf16.mxu0 %v2221
        %2329 = vmatpush1.bf16.msra.mxu0 %v2220
        %2330 = vmatprep.subr.bf16.mxu0 %v2219
        %2331 = vmatpush1.bf16.msra.mxu0 %v2218
        %2332 = vmatprep.subr.bf16.mxu0 %v2217
        %2333 = vmatpush1.bf16.msra.mxu0 %v2216
        %2334 = vmatprep.subr.bf16.mxu0 %v2215
        %2335 = vmatpush1.bf16.msra.mxu0 %v2214
        %2336 = vmatprep.subr.bf16.mxu0 %v2213
        %2337 = vmatpush1.bf16.msra.mxu0 %v2212
        %2338 = vmatprep.subr.bf16.mxu0 %v2211
        %2339 = vmatpush1.bf16.msra.mxu0 %v2210
        %2340 = vmatprep.subr.bf16.mxu0 0
        %2341 = vmatpush2.bf16.msra.mxu0 0
        %2342 = vmatprep.subr.bf16.mxu0 0
        %2343 = vmatpush2.bf16.msra.mxu0 0
        %2344 = vmatprep.subr.bf16.mxu0 0
        %2345 = vmatpush2.bf16.msra.mxu0 0
        %2346 = vmatprep.subr.bf16.mxu0 0
        %2347 = vmatpush2.bf16.msra.mxu0 0
        %2348 = vmatprep.subr.bf16.mxu0 0
        %2349 = vmatpush2.bf16.msra.mxu0 0
        %2350 = vmatprep.subr.bf16.mxu0 0
        %2351 = vmatpush2.bf16.msra.mxu0 0
        %2352 = vmatprep.subr.bf16.mxu0 0
        %2353 = vmatpush2.bf16.msra.mxu0 0
        %2354 = vmatprep.subr.bf16.mxu0 %v2227
        %2355 = vmatpush2.bf16.msra.mxu0 %v2226
        %2356 = vmatprep.mubr.bf16.mxu0 %v2279
        %2357 = vmatmul.mubr.bf16.gmra.mxu0 %v2023
        %v2358 = vpop.f32.mrf.mxu0
        %v2359 = vadd.f32 %v2316, %v2358
        %v2360 = vpop.f32.mrf.mxu0
        %v2361 = vadd.f32 %v2318, %v2360
        %v2362 = vpop.f32.mrf.mxu0
        %v2363 = vadd.f32 %v2320, %v2362
        %v2364 = vpop.f32.mrf.mxu0
        %v2365 = vadd.f32 %v2322, %v2364
        %2366 = vdwg.mxu0
        %v2367 = vld [vmem:[%s6] sm:$0xff]
        %v2368 = vld [vmem:[%s7] sm:$0xff]
        %2370 = vset.pattern.permute.xlu0 0
        %2371 = vperm.xlu0 %2370, %v2368
        %v2372 = vpop.permute.xlu0 %2371
        %v2375 = vsel %vm542, %v2367, 0
        %2377 = vmatprep.subr.mxu0 0.0
        %2378 = vmatpush1.msra.mxu0 0.0
        %2379 = vmatprep.subr.mxu0 0.0
        %2380 = vmatpush1.msra.mxu0 0.0
        %2381 = vmatprep.subr.mxu0 0.0
        %2382 = vmatpush1.msra.mxu0 0.0
        %2383 = vmatprep.subr.mxu0 0.0
        %2384 = vmatpush1.msra.mxu0 0.0
        %2385 = vmatprep.subr.mxu0 0.0
        %2386 = vmatpush1.msra.mxu0 0.0
        %2387 = vmatprep.subr.mxu0 0.0
        %2388 = vmatpush1.msra.mxu0 0.0
        %2389 = vmatprep.subr.mxu0 0.0
        %2390 = vmatpush1.msra.mxu0 0.0
        %2391 = vmatprep.subr.mxu0 0.0
        %2392 = vmatpush1.msra.mxu0 0.0
        %2393 = vmatprep.subr.mxu0 0.0
        %2394 = vmatpush1.msra.mxu0 0.0
        %2395 = vmatprep.subr.mxu0 0.0
        %2396 = vmatpush1.msra.mxu0 0.0
        %2397 = vmatprep.subr.mxu0 0.0
        %2398 = vmatpush1.msra.mxu0 0.0
        %2399 = vmatprep.subr.mxu0 0.0
        %2400 = vmatpush1.msra.mxu0 0.0
        %2401 = vmatprep.subr.mxu0 0.0
        %2402 = vmatpush1.msra.mxu0 0.0
        %2403 = vmatprep.subr.mxu0 0.0
        %2404 = vmatpush1.msra.mxu0 0.0
        %2405 = vmatprep.subr.mxu0 %v2365
        %2406 = vmatpush1.msra.mxu0 %v2363
        %2407 = vmatprep.subr.mxu0 %v2361
        %2408 = vmatpush1.msra.mxu0 %v2359
        %2409 = vmatprep.subr.mxu0 0.0
        %2410 = vmatpush2.msra.mxu0 0.0
        %2411 = vmatprep.subr.mxu0 0.0
        %2412 = vmatpush2.msra.mxu0 0.0
        %2413 = vmatprep.subr.mxu0 0.0
        %2414 = vmatpush2.msra.mxu0 0.0
        %2415 = vmatprep.subr.mxu0 0.0
        %2416 = vmatpush2.msra.mxu0 0.0
        %2417 = vmatprep.subr.mxu0 0.0
        %2418 = vmatpush2.msra.mxu0 0.0
        %2419 = vmatprep.subr.mxu0 0.0
        %2420 = vmatpush2.msra.mxu0 0.0
        %2421 = vmatprep.subr.mxu0 0.0
        %2422 = vmatpush2.msra.mxu0 0.0
        %2423 = vmatprep.subr.mxu0 0.0
        %2424 = vmatpush2.msra.mxu0 0.0
        %2425 = vmatprep.subr.mxu0 0.0
        %2426 = vmatpush2.msra.mxu0 0.0
        %2427 = vmatprep.subr.mxu0 0.0
        %2428 = vmatpush2.msra.mxu0 0.0
        %2429 = vmatprep.subr.mxu0 0.0
        %2430 = vmatpush2.msra.mxu0 0.0
        %2431 = vmatprep.subr.mxu0 0.0
        %2432 = vmatpush2.msra.mxu0 0.0
        %2433 = vmatprep.subr.mxu0 0.0
        %2434 = vmatpush2.msra.mxu0 0.0
        %2435 = vmatprep.subr.mxu0 0.0
        %2436 = vmatpush2.msra.mxu0 0.0
        %2437 = vmatprep.subr.mxu0 0.0
        %2438 = vmatpush2.msra.mxu0 0.0
        %2439 = vmatprep.subr.mxu0 0.0
        %2440 = vmatpush2.msra.mxu0 0.0
        %2441 = vmatprep.mubr.f32.mxu0 0.0
        %2442 = vmatmul.mubr.f32.gmra.mxu0 %v2375
        %v2443 = vpop.f32.mrf.mxu0
        %v2444 = vadd.f32 %v2372, %v2443
        %v2445 = vpop.f32.mrf.mxu0
        %v2446 = vadd.f32 %v2372, %v2445
        %2447 = vdwg.mxu0
        %v2448 = vadd.f32 %v2444, %v335
        %v2449 = vadd.f32 %v2446, %v336
        %v2450 = vmax.f32 %v2448, 0.0
        %v2451 = vmax.f32 %v2449, 0.0
        %2452 = vst [vmem:[%s328] sm:$0xff] %v2450
        %2453 = vst [vmem:[%s328 + $0x8] sm:$0xff] %v2451
        %s2454 = sand.u32 %s205, 1
        %s2455 = scalar_lea.sflag [#allocation5], %s2454
        %s2456 = sand.u32 %s205, 1
        %s2457 = smul.addr %s2456, 16
        %s2458 = scalar_lea.vmem [#allocation8], %s2457
        // Predicated region
        $region61: #{tpu_custom_call.1} parent=51 // pred_check
          %p2459 = pneg %p215
        $region62: #{tpu_custom_call.1} parent=51 // pred_check_branch
          %2461 = sbr.rel (%p2459) target = $region64
        $region63: #{tpu_custom_call.1} parent=51 // pred_region
          %s2463 = ssub.s32 256, 256
          %2464 = vsyncadd %s2455, %s2463
          %s2465 = smul.addr %s24, 2
          %s2466 = smul.addr %s2465, 128
          %s2467 = scalar_lea.hbm %s8, %s2466
          %s2469 = sshll.u32 %s2458, 4
          %s2470 = int_to_ptr.vmem [resolvable:$true] %s2469
          %2472 = dma.vmem_to_hbm [thread:$0]  %s2470, 256, %s2467, %s2455
        $region64: #{tpu_custom_call.1} parent=51 // pred_fallthru
          _
      $region52: #{tpu_custom_call.1} parent=5 // pred_fallthru
        _
      %p2473 = scmp.le.s32.totalorder 2, %s19
      // Predicated region
      $region65: #{tpu_custom_call.1} parent=5 // pred_check
        %p2474 = pneg %p2473
      $region66: #{tpu_custom_call.1} parent=5 // pred_check_branch
        %2476 = sbr.rel (%p2474) target = $region68
      $region67: #{tpu_custom_call.1} parent=5 // pred_region
        %s2477 = ssub.s32 %s19, 2
        // Predicated region
        $region69: #{tpu_custom_call.1} parent=67 // pred_check
          %p2478 = pneg %p221
        $region70: #{tpu_custom_call.1} parent=67 // pred_check_branch
          %2480 = sbr.rel (%p2478) target = $region72
        $region71: #{tpu_custom_call.1} parent=67 // pred_region
          %s2481 = sand.u32 %s206, 1
          %s2482 = scalar_lea.sflag [#allocation5], %s2481
          %s2483 = sand.u32 %s206, 1
          %s2484 = smul.addr %s2483, 16
          %s2485 = scalar_lea.vmem [#allocation8], %s2484
          %2486 = dma.done %s2482, 256
        $region72: #{tpu_custom_call.1} parent=67 // pred_fallthru
          _
      $region68: #{tpu_custom_call.1} parent=5 // pred_fallthru
        _
    $region6: #{tpu_custom_call.1} parent=1 // loop_footer
      %s23 = sadd.s32 1, %s19
    $region7: #{tpu_custom_call.1} parent=1 // loop_footer_branch
      %18 = sbr.rel target = $region3
    $region8: #{tpu_custom_call.1} parent=1 // loop_exit
      _
    %2487 = vsyncpa [#allocation4], 1
    %s2488 = scalar_lea.sflag [#allocation4], 1
    %2489 = vsyncpa %s2488, 1
    %2490 = vsyncpa [#allocation7], 1
    %2491 = vsyncpa [#allocation5], 1
    %s2492 = scalar_lea.sflag [#allocation5], 1
    %2493 = vsyncpa %s2492, 1

</llo_original>
